<compile_context>
chip_gen: v5e
topology: v5e:2x2
jax: 0.10.0
libtpu: 0.0.40
codegen_flags: <defaults>
</compile_context>

<pallas_src>
import functools

import jax
import jax.numpy as jnp
from jax.experimental import pallas as pl
from jax.experimental.pallas import tpu as pltpu


CFG = dict(vocab=100, hidden=32, layers=2, heads=4, intermediate=64,
           max_pos=16, type_vocab=2, num_labels=5)
_LANE = 128  # lane-dense width for the padded classifier output / vocab padding


# ---------------------------------------------------------------------------
# In-kernel helpers
# ---------------------------------------------------------------------------

def _erf(x):
    """erf via Abramowitz & Stegun 7.1.26 (|abs err| < 1.5e-7); only uses
    exp / mul / add / where, so it lowers to VPU + EUP ops."""
    a1 = jnp.float32(0.254829592)
    a2 = jnp.float32(-0.284496736)
    a3 = jnp.float32(1.421413741)
    a4 = jnp.float32(-1.453152027)
    a5 = jnp.float32(1.061405429)
    p = jnp.float32(0.3275911)
    ax = jnp.abs(x)
    t = 1.0 / (1.0 + p * ax)
    poly = ((((a5 * t + a4) * t + a3) * t + a2) * t + a1) * t
    y = 1.0 - poly * jnp.exp(-ax * ax)
    return jnp.where(x >= 0, y, -y)


def _gelu_exact(x):
    # HF/PyTorch BERT intermediate activation: exact erf-GELU.
    return 0.5 * x * (1.0 + _erf(x * jnp.float32(0.7071067811865476)))


# ---------------------------------------------------------------------------
# Fused kernel: embeddings -> 2-layer encoder -> [CLS] -> classifier
# ---------------------------------------------------------------------------

def _encoder_kernel(ids_ref, mask_ref, pos_type_ref, wemb_ref,
                    emb_g_ref, emb_b_ref,
                    wqkv_ref, bqkv_ref, wo_ref, bo_ref,
                    ln1_g_ref, ln1_b_ref,
                    w1_ref, b1_ref, w2_ref, b2_ref,
                    ln2_g_ref, ln2_b_ref,
                    cls_w_ref, cls_b_ref,
                    o_ref, *, batch, seq, num_layers, num_heads, head_dim, eps):
    f32 = jnp.float32
    bf16 = jnp.bfloat16
    nh = num_heads
    H = nh * head_dim
    BS = batch * seq

    def layer_norm(y, g, b):
        mu = jnp.mean(y, axis=-1, keepdims=True)
        var = jnp.mean((y - mu) * (y - mu), axis=-1, keepdims=True)
        return (y - mu) * jax.lax.rsqrt(var + eps) * g + b

    # ---- embedding gather in-kernel: one-hot @ word_emb on the MXU ----------
    ids = ids_ref[...]                                            # (BS, 1) i32
    vocab_pad = wemb_ref.shape[0]                                 # lane-aligned
    iota = jax.lax.broadcasted_iota(jnp.int32, (BS, vocab_pad), 1)
    onehot = (iota == ids).astype(f32)                            # (BS, Vpad)
    x = jnp.dot(onehot, wemb_ref[...], preferred_element_type=f32)  # (BS, H)
    x = x + pos_type_ref[...]                                     # + pos + type
    x = layer_norm(x, emb_g_ref[...], emb_b_ref[...])             # (BS, H) f32

    # ---- additive attention masks, hoisted: one (nh, S, S) tile per batch ----
    mask = mask_ref[...]                                          # (B, S) f32
    add_masks = []
    for b in range(batch):
        neg = (1.0 - mask[b:b + 1, :]) * f32(-1e9)                # (1, S)
        add_masks.append(jnp.broadcast_to(neg[None], (nh, seq, seq)))

    for l in range(num_layers):
        wqkv = wqkv_ref[l]                                        # (3nh,H,hd) bf16
        bqkv = bqkv_ref[l]                                        # (3nh,1,hd) f32
        wo = wo_ref[l]                                            # (H, H) bf16

        attn_rows = []
        for b in range(batch):
            # ---- self attention, batched over heads (no lane sub-slices) ----
            xb = x[b * seq:(b + 1) * seq].astype(bf16)            # (S, H)
            xb3 = jnp.broadcast_to(xb[None], (3 * nh, seq, H))
            qkv = jnp.einsum('hsk,hkd->hsd', xb3, wqkv,
                             preferred_element_type=f32) + bqkv   # (3nh, S, hd)
            q = qkv[:nh]          # 1/sqrt(head_dim) folded into Wq at pack time
            k = qkv[nh:2 * nh]
            v = qkv[2 * nh:]
            s = jnp.einsum('hqd,hkd->hqk', q.astype(bf16), k.astype(bf16),
                           preferred_element_type=f32)            # (nh, S, S)
            s = s + add_masks[b]
            s = s - jnp.max(s, axis=-1, keepdims=True)
            p = jnp.exp(s)
            p = p * pl.reciprocal(jnp.sum(p, axis=-1, keepdims=True), approx=True)
            ctx = jnp.einsum('hqk,hkd->hqd', p.astype(bf16), v.astype(bf16),
                             preferred_element_type=f32)          # (nh, S, hd)
            # merge heads along lanes -> single output-projection matmul
            ctx2 = jnp.concatenate([ctx[h] for h in range(nh)], axis=-1)  # (S, H)
            attn_rows.append(jnp.dot(ctx2.astype(bf16), wo,
                                     preferred_element_type=f32))
        attn = jnp.concatenate(attn_rows, axis=0) + bo_ref[l]     # (BS, H)

        # residual + LayerNorm fused into the attention epilogue
        x = layer_norm(x + attn, ln1_g_ref[l], ln1_b_ref[l])

        # ---- feed forward (bias + exact GELU fused), bf16 matmul operands ----
        hmid = jnp.dot(x.astype(bf16), w1_ref[l], preferred_element_type=f32)
        hmid = _gelu_exact(hmid + b1_ref[l])
        ff = jnp.dot(hmid.astype(bf16), w2_ref[l], preferred_element_type=f32)
        x = layer_norm(x + ff + b2_ref[l], ln2_g_ref[l], ln2_b_ref[l])

    # ---- classifier head on the [CLS] row of each batch element only --------
    # dropout(p=0.3) is the identity at inference time.
    cls_rows = jnp.concatenate([x[b * seq:b * seq + 1, :] for b in range(batch)],
                               axis=0)                            # (B, H)
    logits = jnp.dot(cls_rows.astype(bf16), cls_w_ref[...],
                     preferred_element_type=f32) + cls_b_ref[...] # (B, 128)
    o_ref[...] = logits.astype(o_ref.dtype)


# ---------------------------------------------------------------------------
# Parameters (synthetic, packed into kernel-friendly layouts)
# ---------------------------------------------------------------------------

def init_params(key, cfg):
    H, I, L, nh = cfg["hidden"], cfg["intermediate"], cfg["layers"], cfg["heads"]
    hd = H // nh
    vocab_pad = ((cfg["vocab"] + _LANE - 1) // _LANE) * _LANE
    ks = iter(jax.random.split(key, 256))

    def n(shape, s=0.02):
        return (s * jax.random.normal(next(ks), shape)).astype(jnp.float32)

    def heads(w):                         # (H, H) -> (nh, H, hd) per-head pack
        return jnp.transpose(w.reshape(H, nh, hd), (1, 0, 2))

    scale = 1.0 / float(hd) ** 0.5        # folded into Wq (and bq, here zeros)

    wqkv, bqkv, wo, bo = [], [], [], []
    ln1_g, ln1_b, w1, b1, w2, b2, ln2_g, ln2_b = [], [], [], [], [], [], [], []
    for _ in range(L):
        wq, wk, wv = n((H, H)), n((H, H)), n((H, H))
        wqkv.append(jnp.concatenate([heads(wq) * scale, heads(wk), heads(wv)], axis=0))
        bqkv.append(jnp.zeros((3 * nh, 1, hd), jnp.float32))
        wo.append(n((H, H)))
        bo.append(jnp.zeros((1, H), jnp.float32))
        ln1_g.append(jnp.ones((1, H), jnp.float32))
        ln1_b.append(jnp.zeros((1, H), jnp.float32))
        w1.append(n((H, I)))
        b1.append(jnp.zeros((1, I), jnp.float32))
        w2.append(n((I, H)))
        b2.append(jnp.zeros((1, H), jnp.float32))
        ln2_g.append(jnp.ones((1, H), jnp.float32))
        ln2_b.append(jnp.zeros((1, H), jnp.float32))

    word_emb = jnp.zeros((vocab_pad, H), jnp.float32).at[:cfg["vocab"]].set(
        n((cfg["vocab"], H)))
    cls_w = jnp.zeros((H, _LANE), jnp.float32).at[:, :cfg["num_labels"]].set(
        n((H, cfg["num_labels"])))

    bf = jnp.bfloat16
    return {
        "word_emb": word_emb,                              # (Vpad, H) f32
        "pos_emb": n((cfg["max_pos"], H)),
        "type_emb": n((cfg["type_vocab"], H)),
        "emb_ln_g": jnp.ones((1, H), jnp.float32),
        "emb_ln_b": jnp.zeros((1, H), jnp.float32),
        "wqkv": jnp.stack(wqkv).astype(bf),                # (L, 3nh, H, hd) bf16
        "bqkv": jnp.stack(bqkv),                           # (L, 3nh, 1, hd) f32
        "wo": jnp.stack(wo).astype(bf),                    # (L, H, H) bf16
        "bo": jnp.stack(bo),
        "ln1_g": jnp.stack(ln1_g), "ln1_b": jnp.stack(ln1_b),
        "w1": jnp.stack(w1).astype(bf), "b1": jnp.stack(b1),
        "w2": jnp.stack(w2).astype(bf), "b2": jnp.stack(b2),
        "ln2_g": jnp.stack(ln2_g), "ln2_b": jnp.stack(ln2_b),
        "cls_w": cls_w.astype(bf),                         # (H, 128) bf16
        "cls_b": jnp.zeros((1, _LANE), jnp.float32),
    }


# ---------------------------------------------------------------------------
# Forward pass: one grid-less pallas_call, everything resident in VMEM
# ---------------------------------------------------------------------------

def category_classifier_forward(params, input_ids, attention_mask, cfg):
    B, S = input_ids.shape
    H, nh, L = cfg["hidden"], cfg["heads"], cfg["layers"]

    ids = input_ids.reshape(B * S, 1).astype(jnp.int32)
    mask = attention_mask.astype(jnp.float32)                      # (B, S)
    # Positional + segment embeddings are input-independent constants.
    # TODO(synk): token_type_ids assumed all-zero (matches the PyTorch call).
    pos_type = jnp.tile(params["pos_emb"][:S] + params["type_emb"][0][None, :],
                        (B, 1))                                    # (B*S, H)

    kernel = functools.partial(_encoder_kernel, batch=B, seq=S, num_layers=L,
                               num_heads=nh, head_dim=H // nh, eps=1e-12)

    vmem = pl.BlockSpec(memory_space=pltpu.MemorySpace.VMEM)
    logits = pl.pallas_call(
        kernel,
        out_shape=jax.ShapeDtypeStruct((B, _LANE), jnp.float32),
        in_specs=[vmem] * 20,        # whole-array VMEM residents, single buffer
        out_specs=vmem,
    )(ids, mask, pos_type, params["word_emb"],
      params["emb_ln_g"], params["emb_ln_b"],
      params["wqkv"], params["bqkv"], params["wo"], params["bo"],
      params["ln1_g"], params["ln1_b"],
      params["w1"], params["b1"], params["w2"], params["b2"],
      params["ln2_g"], params["ln2_b"],
      params["cls_w"], params["cls_b"])

    # strip the lane padding down to the real number of labels
    return logits[:, :cfg["num_labels"]]


# ---------------------------------------------------------------------------

if __name__ == "__main__":
    key = jax.random.PRNGKey(0)
    pkey, dkey = jax.random.split(key)
    params = init_params(pkey, CFG)

    B, S = 2, 8
    input_ids = jax.random.randint(dkey, (B, S), 0, CFG["vocab"], dtype=jnp.int32)
    attention_mask = jnp.ones((B, S), dtype=jnp.int32)

    logits = category_classifier_forward(params, input_ids, attention_mask, CFG)
    logits = jax.block_until_ready(logits)
    assert logits.shape == (B, CFG["num_labels"])
    assert bool(jnp.all(jnp.isfinite(logits)))
    print("KERNEL_OK")
</pallas_src>

<mosaic_0001>
module attributes {stable_mosaic.version = 11 : i64} {
  func.func @_encoder_kernel(%arg0: memref<16x1xi32, #tpu.memory_space<vmem>>, %arg1: memref<2x8xf32, #tpu.memory_space<vmem>>, %arg2: memref<16x32xf32, #tpu.memory_space<vmem>>, %arg3: memref<128x32xf32, #tpu.memory_space<vmem>>, %arg4: memref<1x32xf32, #tpu.memory_space<vmem>>, %arg5: memref<1x32xf32, #tpu.memory_space<vmem>>, %arg6: memref<2x12x32x8xbf16, #tpu.memory_space<vmem>>, %arg7: memref<2x12x1x8xf32, #tpu.memory_space<vmem>>, %arg8: memref<2x32x32xbf16, #tpu.memory_space<vmem>>, %arg9: memref<2x1x32xf32, #tpu.memory_space<vmem>>, %arg10: memref<2x1x32xf32, #tpu.memory_space<vmem>>, %arg11: memref<2x1x32xf32, #tpu.memory_space<vmem>>, %arg12: memref<2x32x64xbf16, #tpu.memory_space<vmem>>, %arg13: memref<2x1x64xf32, #tpu.memory_space<vmem>>, %arg14: memref<2x64x32xbf16, #tpu.memory_space<vmem>>, %arg15: memref<2x1x32xf32, #tpu.memory_space<vmem>>, %arg16: memref<2x1x32xf32, #tpu.memory_space<vmem>>, %arg17: memref<2x1x32xf32, #tpu.memory_space<vmem>>, %arg18: memref<32x128xbf16, #tpu.memory_space<vmem>>, %arg19: memref<1x128xf32, #tpu.memory_space<vmem>>, %arg20: memref<2x128xf32, #tpu.memory_space<vmem>>) attributes {dimension_semantics = [], scalar_prefetch = 0 : i64, scratch_operands = 0 : i64, tpu.core_type = #tpu.core_type<tc>} {
    %c0 = arith.constant 0 : index
    %c0_0 = arith.constant 0 : index
    %0 = vector.load %arg0[%c0, %c0_0] : memref<16x1xi32, #tpu.memory_space<vmem>>, vector<16x1xi32>
    %1 = tpu.iota {dimensions = array<i32: 1>} : vector<16x128xi32>
    %2 = vector.broadcast %0 : vector<16x1xi32> to vector<16x128xi32>
    %3 = arith.cmpi eq, %1, %2 : vector<16x128xi32>
    %4 = arith.extui %3 : vector<16x128xi1> to vector<16x128xi32>
    %5 = arith.sitofp %4 : vector<16x128xi32> to vector<16x128xf32>
    %c0_1 = arith.constant 0 : index
    %c0_2 = arith.constant 0 : index
    %6 = vector.load %arg3[%c0_1, %c0_2] : memref<128x32xf32, #tpu.memory_space<vmem>>, vector<128x32xf32>
    %cst = arith.constant dense<0.000000e+00> : vector<16x32xf32>
    %7 = tpu.matmul %5, %6, %cst {dimension_numbers = #tpu.dot_dimension_numbers<[1], [0], [0], [1], [0, 0, 1, 1], [], []>} : vector<16x128xf32>, vector<128x32xf32>, vector<16x32xf32> -> vector<16x32xf32>
    %c0_3 = arith.constant 0 : index
    %c0_4 = arith.constant 0 : index
    %8 = vector.load %arg2[%c0_3, %c0_4] : memref<16x32xf32, #tpu.memory_space<vmem>>, vector<16x32xf32>
    %9 = arith.addf %7, %8 : vector<16x32xf32>
    %c0_5 = arith.constant 0 : index
    %c0_6 = arith.constant 0 : index
    %10 = vector.load %arg4[%c0_5, %c0_6] : memref<1x32xf32, #tpu.memory_space<vmem>>, vector<1x32xf32>
    %c0_7 = arith.constant 0 : index
    %c0_8 = arith.constant 0 : index
    %11 = vector.load %arg5[%c0_7, %c0_8] : memref<1x32xf32, #tpu.memory_space<vmem>>, vector<1x32xf32>
    %cst_9 = arith.constant dense<0.000000e+00> : vector<16xf32>
    %12 = vector.multi_reduction <add>, %9, %cst_9 [1] : vector<16x32xf32> to vector<16xf32>
    %13 = vector.shape_cast %12 : vector<16xf32> to vector<16x1xf32>
    %cst_10 = arith.constant 3.200000e+01 : f32
    %14 = vector.broadcast %cst_10 : f32 to vector<16x1xf32>
    %15 = arith.divf %13, %14 : vector<16x1xf32>
    %16 = vector.broadcast %15 : vector<16x1xf32> to vector<16x32xf32>
    %17 = arith.subf %9, %16 : vector<16x32xf32>
    %18 = vector.broadcast %15 : vector<16x1xf32> to vector<16x32xf32>
    %19 = arith.subf %9, %18 : vector<16x32xf32>
    %20 = arith.mulf %17, %19 : vector<16x32xf32>
    %cst_11 = arith.constant dense<0.000000e+00> : vector<16xf32>
    %21 = vector.multi_reduction <add>, %20, %cst_11 [1] : vector<16x32xf32> to vector<16xf32>
    %22 = vector.shape_cast %21 : vector<16xf32> to vector<16x1xf32>
    %cst_12 = arith.constant 3.200000e+01 : f32
    %23 = vector.broadcast %cst_12 : f32 to vector<16x1xf32>
    %24 = arith.divf %22, %23 : vector<16x1xf32>
    %25 = vector.broadcast %15 : vector<16x1xf32> to vector<16x32xf32>
    %26 = arith.subf %9, %25 : vector<16x32xf32>
    %cst_13 = arith.constant 9.99999996E-13 : f32
    %27 = vector.broadcast %cst_13 : f32 to vector<16x1xf32>
    %28 = arith.addf %24, %27 : vector<16x1xf32>
    %29 = math.rsqrt %28 : vector<16x1xf32>
    %30 = vector.broadcast %29 : vector<16x1xf32> to vector<16x32xf32>
    %31 = arith.mulf %26, %30 : vector<16x32xf32>
    %32 = vector.broadcast %10 : vector<1x32xf32> to vector<16x32xf32>
    %33 = arith.mulf %31, %32 : vector<16x32xf32>
    %34 = vector.broadcast %11 : vector<1x32xf32> to vector<16x32xf32>
    %35 = arith.addf %33, %34 : vector<16x32xf32>
    %c0_14 = arith.constant 0 : index
    %c0_15 = arith.constant 0 : index
    %36 = vector.load %arg1[%c0_14, %c0_15] : memref<2x8xf32, #tpu.memory_space<vmem>>, vector<2x8xf32>
    %37 = vector.extract_strided_slice %36 {offsets = [0, 0], sizes = [1, 8], strides = [1, 1]} : vector<2x8xf32> to vector<1x8xf32>
    %cst_16 = arith.constant 1.000000e+00 : f32
    %38 = vector.broadcast %cst_16 : f32 to vector<1x8xf32>
    %39 = arith.subf %38, %37 : vector<1x8xf32>
    %cst_17 = arith.constant -1.000000e+09 : f32
    %40 = vector.broadcast %cst_17 : f32 to vector<1x8xf32>
    %41 = arith.mulf %39, %40 : vector<1x8xf32>
    %42 = vector.shape_cast %41 : vector<1x8xf32> to vector<1x1x8xf32>
    %43 = vector.shape_cast %42 : vector<1x1x8xf32> to vector<1x1x8xf32>
    %44 = vector.broadcast %43 : vector<1x1x8xf32> to vector<4x8x8xf32>
    %45 = vector.extract_strided_slice %36 {offsets = [1, 0], sizes = [1, 8], strides = [1, 1]} : vector<2x8xf32> to vector<1x8xf32>
    %cst_18 = arith.constant 1.000000e+00 : f32
    %46 = vector.broadcast %cst_18 : f32 to vector<1x8xf32>
    %47 = arith.subf %46, %45 : vector<1x8xf32>
    %cst_19 = arith.constant -1.000000e+09 : f32
    %48 = vector.broadcast %cst_19 : f32 to vector<1x8xf32>
    %49 = arith.mulf %47, %48 : vector<1x8xf32>
    %50 = vector.shape_cast %49 : vector<1x8xf32> to vector<1x1x8xf32>
    %51 = vector.shape_cast %50 : vector<1x1x8xf32> to vector<1x1x8xf32>
    %52 = vector.broadcast %51 : vector<1x1x8xf32> to vector<4x8x8xf32>
    %c0_20 = arith.constant 0 : index
    %c0_21 = arith.constant 0 : index
    %c0_22 = arith.constant 0 : index
    %c0_23 = arith.constant 0 : index
    %53 = vector.load %arg6[%c0_20, %c0_21, %c0_22, %c0_23] : memref<2x12x32x8xbf16, #tpu.memory_space<vmem>>, vector<1x12x32x8xbf16>
    %54 = vector.shape_cast %53 : vector<1x12x32x8xbf16> to vector<12x32x8xbf16>
    %c0_24 = arith.constant 0 : index
    %c0_25 = arith.constant 0 : index
    %c0_26 = arith.constant 0 : index
    %c0_27 = arith.constant 0 : index
    %55 = vector.load %arg7[%c0_24, %c0_25, %c0_26, %c0_27] : memref<2x12x1x8xf32, #tpu.memory_space<vmem>>, vector<1x12x1x8xf32>
    %56 = vector.shape_cast %55 : vector<1x12x1x8xf32> to vector<12x1x8xf32>
    %c0_28 = arith.constant 0 : index
    %c0_29 = arith.constant 0 : index
    %c0_30 = arith.constant 0 : index
    %57 = vector.load %arg8[%c0_28, %c0_29, %c0_30] : memref<2x32x32xbf16, #tpu.memory_space<vmem>>, vector<1x32x32xbf16>
    %58 = vector.shape_cast %57 : vector<1x32x32xbf16> to vector<32x32xbf16>
    %59 = vector.extract_strided_slice %35 {offsets = [0, 0], sizes = [8, 32], strides = [1, 1]} : vector<16x32xf32> to vector<8x32xf32>
    %60 = arith.truncf %59 : vector<8x32xf32> to vector<8x32xbf16>
    %61 = vector.shape_cast %60 : vector<8x32xbf16> to vector<1x8x32xbf16>
    %62 = vector.shape_cast %61 : vector<1x8x32xbf16> to vector<1x8x32xbf16>
    %63 = vector.broadcast %62 : vector<1x8x32xbf16> to vector<12x8x32xbf16>
    "tpu.trace_start"() <{level = 10 : i32, message = "hsk,hkd->hsd"}> : () -> ()
    %cst_31 = arith.constant dense<0.000000e+00> : vector<12x8x8xf32>
    %64 = tpu.matmul %63, %54, %cst_31 {dimension_numbers = #tpu.dot_dimension_numbers<[2], [1], [1], [2], [0, 0, 0, 1, 1, 2], [0], [0]>} : vector<12x8x32xbf16>, vector<12x32x8xbf16>, vector<12x8x8xf32> -> vector<12x8x8xf32>
    "tpu.trace_stop"() : () -> ()
    %65 = vector.broadcast %56 : vector<12x1x8xf32> to vector<12x8x8xf32>
    %66 = arith.addf %64, %65 : vector<12x8x8xf32>
    %67 = vector.extract_strided_slice %66 {offsets = [0, 0, 0], sizes = [4, 8, 8], strides = [1, 1, 1]} : vector<12x8x8xf32> to vector<4x8x8xf32>
    %68 = vector.extract_strided_slice %66 {offsets = [4, 0, 0], sizes = [4, 8, 8], strides = [1, 1, 1]} : vector<12x8x8xf32> to vector<4x8x8xf32>
    %69 = vector.extract_strided_slice %66 {offsets = [8, 0, 0], sizes = [4, 8, 8], strides = [1, 1, 1]} : vector<12x8x8xf32> to vector<4x8x8xf32>
    %70 = arith.truncf %67 : vector<4x8x8xf32> to vector<4x8x8xbf16>
    %71 = arith.truncf %68 : vector<4x8x8xf32> to vector<4x8x8xbf16>
    "tpu.trace_start"() <{level = 10 : i32, message = "hqd,hkd->hqk"}> : () -> ()
    %cst_32 = arith.constant dense<0.000000e+00> : vector<4x8x8xf32>
    %72 = tpu.matmul %70, %71, %cst_32 {dimension_numbers = #tpu.dot_dimension_numbers<[2], [2], [1], [1], [0, 0, 0, 1, 1, 1], [0], [0]>} : vector<4x8x8xbf16>, vector<4x8x8xbf16>, vector<4x8x8xf32> -> vector<4x8x8xf32>
    "tpu.trace_stop"() : () -> ()
    %73 = arith.addf %72, %44 : vector<4x8x8xf32>
    %cst_33 = arith.constant dense<0xFF800000> : vector<4x8xf32>
    %74 = vector.multi_reduction <maximumf>, %73, %cst_33 [2] : vector<4x8x8xf32> to vector<4x8xf32>
    %75 = vector.shape_cast %74 : vector<4x8xf32> to vector<4x8x1xf32>
    %76 = vector.broadcast %75 : vector<4x8x1xf32> to vector<4x8x8xf32>
    %77 = arith.subf %73, %76 : vector<4x8x8xf32>
    %78 = math.exp %77 : vector<4x8x8xf32>
    %cst_34 = arith.constant dense<0.000000e+00> : vector<4x8xf32>
    %79 = vector.multi_reduction <add>, %78, %cst_34 [2] : vector<4x8x8xf32> to vector<4x8xf32>
    %80 = vector.shape_cast %79 : vector<4x8xf32> to vector<4x8x1xf32>
    %81 = tpu.reciprocal %80 {approx = true} : vector<4x8x1xf32> -> vector<4x8x1xf32>
    %82 = vector.broadcast %81 : vector<4x8x1xf32> to vector<4x8x8xf32>
    %83 = arith.mulf %78, %82 : vector<4x8x8xf32>
    %84 = arith.truncf %83 : vector<4x8x8xf32> to vector<4x8x8xbf16>
    %85 = arith.truncf %69 : vector<4x8x8xf32> to vector<4x8x8xbf16>
    "tpu.trace_start"() <{level = 10 : i32, message = "hqk,hkd->hqd"}> : () -> ()
    %cst_35 = arith.constant dense<0.000000e+00> : vector<4x8x8xf32>
    %86 = tpu.matmul %84, %85, %cst_35 {dimension_numbers = #tpu.dot_dimension_numbers<[2], [1], [1], [2], [0, 0, 0, 1, 1, 2], [0], [0]>} : vector<4x8x8xbf16>, vector<4x8x8xbf16>, vector<4x8x8xf32> -> vector<4x8x8xf32>
    "tpu.trace_stop"() : () -> ()
    %87 = vector.extract_strided_slice %86 {offsets = [0, 0, 0], sizes = [1, 8, 8], strides = [1, 1, 1]} : vector<4x8x8xf32> to vector<1x8x8xf32>
    %88 = vector.shape_cast %87 : vector<1x8x8xf32> to vector<8x8xf32>
    %89 = vector.extract_strided_slice %86 {offsets = [1, 0, 0], sizes = [1, 8, 8], strides = [1, 1, 1]} : vector<4x8x8xf32> to vector<1x8x8xf32>
    %90 = vector.shape_cast %89 : vector<1x8x8xf32> to vector<8x8xf32>
    %91 = vector.extract_strided_slice %86 {offsets = [2, 0, 0], sizes = [1, 8, 8], strides = [1, 1, 1]} : vector<4x8x8xf32> to vector<1x8x8xf32>
    %92 = vector.shape_cast %91 : vector<1x8x8xf32> to vector<8x8xf32>
    %93 = vector.extract_strided_slice %86 {offsets = [3, 0, 0], sizes = [1, 8, 8], strides = [1, 1, 1]} : vector<4x8x8xf32> to vector<1x8x8xf32>
    %94 = vector.shape_cast %93 : vector<1x8x8xf32> to vector<8x8xf32>
    %95 = tpu.concatenate %88, %90, %92, %94 in 1 : vector<8x8xf32>, vector<8x8xf32>, vector<8x8xf32>, vector<8x8xf32> -> vector<8x32xf32>
    %96 = arith.truncf %95 : vector<8x32xf32> to vector<8x32xbf16>
    %cst_36 = arith.constant dense<0.000000e+00> : vector<8x32xf32>
    %97 = tpu.matmul %96, %58, %cst_36 {dimension_numbers = #tpu.dot_dimension_numbers<[1], [0], [0], [1], [0, 0, 1, 1], [], []>} : vector<8x32xbf16>, vector<32x32xbf16>, vector<8x32xf32> -> vector<8x32xf32>
    %98 = vector.extract_strided_slice %35 {offsets = [8, 0], sizes = [8, 32], strides = [1, 1]} : vector<16x32xf32> to vector<8x32xf32>
    %99 = arith.truncf %98 : vector<8x32xf32> to vector<8x32xbf16>
    %100 = vector.shape_cast %99 : vector<8x32xbf16> to vector<1x8x32xbf16>
    %101 = vector.shape_cast %100 : vector<1x8x32xbf16> to vector<1x8x32xbf16>
    %102 = vector.broadcast %101 : vector<1x8x32xbf16> to vector<12x8x32xbf16>
    "tpu.trace_start"() <{level = 10 : i32, message = "hsk,hkd->hsd"}> : () -> ()
    %cst_37 = arith.constant dense<0.000000e+00> : vector<12x8x8xf32>
    %103 = tpu.matmul %102, %54, %cst_37 {dimension_numbers = #tpu.dot_dimension_numbers<[2], [1], [1], [2], [0, 0, 0, 1, 1, 2], [0], [0]>} : vector<12x8x32xbf16>, vector<12x32x8xbf16>, vector<12x8x8xf32> -> vector<12x8x8xf32>
    "tpu.trace_stop"() : () -> ()
    %104 = vector.broadcast %56 : vector<12x1x8xf32> to vector<12x8x8xf32>
    %105 = arith.addf %103, %104 : vector<12x8x8xf32>
    %106 = vector.extract_strided_slice %105 {offsets = [0, 0, 0], sizes = [4, 8, 8], strides = [1, 1, 1]} : vector<12x8x8xf32> to vector<4x8x8xf32>
    %107 = vector.extract_strided_slice %105 {offsets = [4, 0, 0], sizes = [4, 8, 8], strides = [1, 1, 1]} : vector<12x8x8xf32> to vector<4x8x8xf32>
    %108 = vector.extract_strided_slice %105 {offsets = [8, 0, 0], sizes = [4, 8, 8], strides = [1, 1, 1]} : vector<12x8x8xf32> to vector<4x8x8xf32>
    %109 = arith.truncf %106 : vector<4x8x8xf32> to vector<4x8x8xbf16>
    %110 = arith.truncf %107 : vector<4x8x8xf32> to vector<4x8x8xbf16>
    "tpu.trace_start"() <{level = 10 : i32, message = "hqd,hkd->hqk"}> : () -> ()
    %cst_38 = arith.constant dense<0.000000e+00> : vector<4x8x8xf32>
    %111 = tpu.matmul %109, %110, %cst_38 {dimension_numbers = #tpu.dot_dimension_numbers<[2], [2], [1], [1], [0, 0, 0, 1, 1, 1], [0], [0]>} : vector<4x8x8xbf16>, vector<4x8x8xbf16>, vector<4x8x8xf32> -> vector<4x8x8xf32>
    "tpu.trace_stop"() : () -> ()
    %112 = arith.addf %111, %52 : vector<4x8x8xf32>
    %cst_39 = arith.constant dense<0xFF800000> : vector<4x8xf32>
    %113 = vector.multi_reduction <maximumf>, %112, %cst_39 [2] : vector<4x8x8xf32> to vector<4x8xf32>
    %114 = vector.shape_cast %113 : vector<4x8xf32> to vector<4x8x1xf32>
    %115 = vector.broadcast %114 : vector<4x8x1xf32> to vector<4x8x8xf32>
    %116 = arith.subf %112, %115 : vector<4x8x8xf32>
    %117 = math.exp %116 : vector<4x8x8xf32>
    %cst_40 = arith.constant dense<0.000000e+00> : vector<4x8xf32>
    %118 = vector.multi_reduction <add>, %117, %cst_40 [2] : vector<4x8x8xf32> to vector<4x8xf32>
    %119 = vector.shape_cast %118 : vector<4x8xf32> to vector<4x8x1xf32>
    %120 = tpu.reciprocal %119 {approx = true} : vector<4x8x1xf32> -> vector<4x8x1xf32>
    %121 = vector.broadcast %120 : vector<4x8x1xf32> to vector<4x8x8xf32>
    %122 = arith.mulf %117, %121 : vector<4x8x8xf32>
    %123 = arith.truncf %122 : vector<4x8x8xf32> to vector<4x8x8xbf16>
    %124 = arith.truncf %108 : vector<4x8x8xf32> to vector<4x8x8xbf16>
    "tpu.trace_start"() <{level = 10 : i32, message = "hqk,hkd->hqd"}> : () -> ()
    %cst_41 = arith.constant dense<0.000000e+00> : vector<4x8x8xf32>
    %125 = tpu.matmul %123, %124, %cst_41 {dimension_numbers = #tpu.dot_dimension_numbers<[2], [1], [1], [2], [0, 0, 0, 1, 1, 2], [0], [0]>} : vector<4x8x8xbf16>, vector<4x8x8xbf16>, vector<4x8x8xf32> -> vector<4x8x8xf32>
    "tpu.trace_stop"() : () -> ()
    %126 = vector.extract_strided_slice %125 {offsets = [0, 0, 0], sizes = [1, 8, 8], strides = [1, 1, 1]} : vector<4x8x8xf32> to vector<1x8x8xf32>
    %127 = vector.shape_cast %126 : vector<1x8x8xf32> to vector<8x8xf32>
    %128 = vector.extract_strided_slice %125 {offsets = [1, 0, 0], sizes = [1, 8, 8], strides = [1, 1, 1]} : vector<4x8x8xf32> to vector<1x8x8xf32>
    %129 = vector.shape_cast %128 : vector<1x8x8xf32> to vector<8x8xf32>
    %130 = vector.extract_strided_slice %125 {offsets = [2, 0, 0], sizes = [1, 8, 8], strides = [1, 1, 1]} : vector<4x8x8xf32> to vector<1x8x8xf32>
    %131 = vector.shape_cast %130 : vector<1x8x8xf32> to vector<8x8xf32>
    %132 = vector.extract_strided_slice %125 {offsets = [3, 0, 0], sizes = [1, 8, 8], strides = [1, 1, 1]} : vector<4x8x8xf32> to vector<1x8x8xf32>
    %133 = vector.shape_cast %132 : vector<1x8x8xf32> to vector<8x8xf32>
    %134 = tpu.concatenate %127, %129, %131, %133 in 1 : vector<8x8xf32>, vector<8x8xf32>, vector<8x8xf32>, vector<8x8xf32> -> vector<8x32xf32>
    %135 = arith.truncf %134 : vector<8x32xf32> to vector<8x32xbf16>
    %cst_42 = arith.constant dense<0.000000e+00> : vector<8x32xf32>
    %136 = tpu.matmul %135, %58, %cst_42 {dimension_numbers = #tpu.dot_dimension_numbers<[1], [0], [0], [1], [0, 0, 1, 1], [], []>} : vector<8x32xbf16>, vector<32x32xbf16>, vector<8x32xf32> -> vector<8x32xf32>
    %137 = tpu.concatenate %97, %136 in 0 : vector<8x32xf32>, vector<8x32xf32> -> vector<16x32xf32>
    %c0_43 = arith.constant 0 : index
    %c0_44 = arith.constant 0 : index
    %c0_45 = arith.constant 0 : index
    %138 = vector.load %arg9[%c0_43, %c0_44, %c0_45] : memref<2x1x32xf32, #tpu.memory_space<vmem>>, vector<1x1x32xf32>
    %139 = vector.shape_cast %138 : vector<1x1x32xf32> to vector<1x32xf32>
    %140 = vector.broadcast %139 : vector<1x32xf32> to vector<16x32xf32>
    %141 = arith.addf %137, %140 : vector<16x32xf32>
    %142 = arith.addf %35, %141 : vector<16x32xf32>
    %c0_46 = arith.constant 0 : index
    %c0_47 = arith.constant 0 : index
    %c0_48 = arith.constant 0 : index
    %143 = vector.load %arg10[%c0_46, %c0_47, %c0_48] : memref<2x1x32xf32, #tpu.memory_space<vmem>>, vector<1x1x32xf32>
    %144 = vector.shape_cast %143 : vector<1x1x32xf32> to vector<1x32xf32>
    %c0_49 = arith.constant 0 : index
    %c0_50 = arith.constant 0 : index
    %c0_51 = arith.constant 0 : index
    %145 = vector.load %arg11[%c0_49, %c0_50, %c0_51] : memref<2x1x32xf32, #tpu.memory_space<vmem>>, vector<1x1x32xf32>
    %146 = vector.shape_cast %145 : vector<1x1x32xf32> to vector<1x32xf32>
    %cst_52 = arith.constant dense<0.000000e+00> : vector<16xf32>
    %147 = vector.multi_reduction <add>, %142, %cst_52 [1] : vector<16x32xf32> to vector<16xf32>
    %148 = vector.shape_cast %147 : vector<16xf32> to vector<16x1xf32>
    %cst_53 = arith.constant 3.200000e+01 : f32
    %149 = vector.broadcast %cst_53 : f32 to vector<16x1xf32>
    %150 = arith.divf %148, %149 : vector<16x1xf32>
    %151 = vector.broadcast %150 : vector<16x1xf32> to vector<16x32xf32>
    %152 = arith.subf %142, %151 : vector<16x32xf32>
    %153 = vector.broadcast %150 : vector<16x1xf32> to vector<16x32xf32>
    %154 = arith.subf %142, %153 : vector<16x32xf32>
    %155 = arith.mulf %152, %154 : vector<16x32xf32>
    %cst_54 = arith.constant dense<0.000000e+00> : vector<16xf32>
    %156 = vector.multi_reduction <add>, %155, %cst_54 [1] : vector<16x32xf32> to vector<16xf32>
    %157 = vector.shape_cast %156 : vector<16xf32> to vector<16x1xf32>
    %cst_55 = arith.constant 3.200000e+01 : f32
    %158 = vector.broadcast %cst_55 : f32 to vector<16x1xf32>
    %159 = arith.divf %157, %158 : vector<16x1xf32>
    %160 = vector.broadcast %150 : vector<16x1xf32> to vector<16x32xf32>
    %161 = arith.subf %142, %160 : vector<16x32xf32>
    %cst_56 = arith.constant 9.99999996E-13 : f32
    %162 = vector.broadcast %cst_56 : f32 to vector<16x1xf32>
    %163 = arith.addf %159, %162 : vector<16x1xf32>
    %164 = math.rsqrt %163 : vector<16x1xf32>
    %165 = vector.broadcast %164 : vector<16x1xf32> to vector<16x32xf32>
    %166 = arith.mulf %161, %165 : vector<16x32xf32>
    %167 = vector.broadcast %144 : vector<1x32xf32> to vector<16x32xf32>
    %168 = arith.mulf %166, %167 : vector<16x32xf32>
    %169 = vector.broadcast %146 : vector<1x32xf32> to vector<16x32xf32>
    %170 = arith.addf %168, %169 : vector<16x32xf32>
    %171 = arith.truncf %170 : vector<16x32xf32> to vector<16x32xbf16>
    %c0_57 = arith.constant 0 : index
    %c0_58 = arith.constant 0 : index
    %c0_59 = arith.constant 0 : index
    %172 = vector.load %arg12[%c0_57, %c0_58, %c0_59] : memref<2x32x64xbf16, #tpu.memory_space<vmem>>, vector<1x32x64xbf16>
    %173 = vector.shape_cast %172 : vector<1x32x64xbf16> to vector<32x64xbf16>
    %cst_60 = arith.constant dense<0.000000e+00> : vector<16x64xf32>
    %174 = tpu.matmul %171, %173, %cst_60 {dimension_numbers = #tpu.dot_dimension_numbers<[1], [0], [0], [1], [0, 0, 1, 1], [], []>} : vector<16x32xbf16>, vector<32x64xbf16>, vector<16x64xf32> -> vector<16x64xf32>
    %c0_61 = arith.constant 0 : index
    %c0_62 = arith.constant 0 : index
    %c0_63 = arith.constant 0 : index
    %175 = vector.load %arg13[%c0_61, %c0_62, %c0_63] : memref<2x1x64xf32, #tpu.memory_space<vmem>>, vector<1x1x64xf32>
    %176 = vector.shape_cast %175 : vector<1x1x64xf32> to vector<1x64xf32>
    %177 = vector.broadcast %176 : vector<1x64xf32> to vector<16x64xf32>
    %178 = arith.addf %174, %177 : vector<16x64xf32>
    %cst_64 = arith.constant 5.000000e-01 : f32
    %179 = vector.broadcast %cst_64 : f32 to vector<16x64xf32>
    %180 = arith.mulf %179, %178 : vector<16x64xf32>
    %cst_65 = arith.constant 0.707106769 : f32
    %181 = vector.broadcast %cst_65 : f32 to vector<16x64xf32>
    %182 = arith.mulf %178, %181 : vector<16x64xf32>
    %183 = math.absf %182 : vector<16x64xf32>
    %cst_66 = arith.constant 0.327591091 : f32
    %184 = vector.broadcast %cst_66 : f32 to vector<16x64xf32>
    %185 = arith.mulf %184, %183 : vector<16x64xf32>
    %cst_67 = arith.constant 1.000000e+00 : f32
    %186 = vector.broadcast %cst_67 : f32 to vector<16x64xf32>
    %187 = arith.addf %186, %185 : vector<16x64xf32>
    %cst_68 = arith.constant 1.000000e+00 : f32
    %188 = vector.broadcast %cst_68 : f32 to vector<16x64xf32>
    %189 = arith.divf %188, %187 : vector<16x64xf32>
    %cst_69 = arith.constant 1.06140542 : f32
    %190 = vector.broadcast %cst_69 : f32 to vector<16x64xf32>
    %191 = arith.mulf %190, %189 : vector<16x64xf32>
    %cst_70 = arith.constant -1.45315206 : f32
    %192 = vector.broadcast %cst_70 : f32 to vector<16x64xf32>
    %193 = arith.addf %191, %192 : vector<16x64xf32>
    %194 = arith.mulf %193, %189 : vector<16x64xf32>
    %cst_71 = arith.constant 1.42141378 : f32
    %195 = vector.broadcast %cst_71 : f32 to vector<16x64xf32>
    %196 = arith.addf %194, %195 : vector<16x64xf32>
    %197 = arith.mulf %196, %189 : vector<16x64xf32>
    %cst_72 = arith.constant -0.284496725 : f32
    %198 = vector.broadcast %cst_72 : f32 to vector<16x64xf32>
    %199 = arith.addf %197, %198 : vector<16x64xf32>
    %200 = arith.mulf %199, %189 : vector<16x64xf32>
    %cst_73 = arith.constant 0.254829586 : f32
    %201 = vector.broadcast %cst_73 : f32 to vector<16x64xf32>
    %202 = arith.addf %200, %201 : vector<16x64xf32>
    %203 = arith.mulf %202, %189 : vector<16x64xf32>
    %cst_74 = arith.constant 0.000000e+00 : f32
    %204 = vector.broadcast %cst_74 : f32 to vector<16x64xf32>
    %205 = arith.subf %204, %183 : vector<16x64xf32>
    %206 = arith.mulf %205, %183 : vector<16x64xf32>
    %207 = math.exp %206 : vector<16x64xf32>
    %208 = arith.mulf %203, %207 : vector<16x64xf32>
    %cst_75 = arith.constant 1.000000e+00 : f32
    %209 = vector.broadcast %cst_75 : f32 to vector<16x64xf32>
    %210 = arith.subf %209, %208 : vector<16x64xf32>
    %cst_76 = arith.constant 0.000000e+00 : f32
    %211 = vector.broadcast %cst_76 : f32 to vector<16x64xf32>
    %212 = arith.cmpf oge, %182, %211 : vector<16x64xf32>
    %cst_77 = arith.constant 0.000000e+00 : f32
    %213 = vector.broadcast %cst_77 : f32 to vector<16x64xf32>
    %214 = arith.subf %213, %210 : vector<16x64xf32>
    %215 = arith.select %212, %210, %214 : vector<16x64xi1>, vector<16x64xf32>
    %cst_78 = arith.constant 1.000000e+00 : f32
    %216 = vector.broadcast %cst_78 : f32 to vector<16x64xf32>
    %217 = arith.addf %216, %215 : vector<16x64xf32>
    %218 = arith.mulf %180, %217 : vector<16x64xf32>
    %219 = arith.truncf %218 : vector<16x64xf32> to vector<16x64xbf16>
    %c0_79 = arith.constant 0 : index
    %c0_80 = arith.constant 0 : index
    %c0_81 = arith.constant 0 : index
    %220 = vector.load %arg14[%c0_79, %c0_80, %c0_81] : memref<2x64x32xbf16, #tpu.memory_space<vmem>>, vector<1x64x32xbf16>
    %221 = vector.shape_cast %220 : vector<1x64x32xbf16> to vector<64x32xbf16>
    %cst_82 = arith.constant dense<0.000000e+00> : vector<16x32xf32>
    %222 = tpu.matmul %219, %221, %cst_82 {dimension_numbers = #tpu.dot_dimension_numbers<[1], [0], [0], [1], [0, 0, 1, 1], [], []>} : vector<16x64xbf16>, vector<64x32xbf16>, vector<16x32xf32> -> vector<16x32xf32>
    %223 = arith.addf %170, %222 : vector<16x32xf32>
    %c0_83 = arith.constant 0 : index
    %c0_84 = arith.constant 0 : index
    %c0_85 = arith.constant 0 : index
    %224 = vector.load %arg15[%c0_83, %c0_84, %c0_85] : memref<2x1x32xf32, #tpu.memory_space<vmem>>, vector<1x1x32xf32>
    %225 = vector.shape_cast %224 : vector<1x1x32xf32> to vector<1x32xf32>
    %226 = vector.broadcast %225 : vector<1x32xf32> to vector<16x32xf32>
    %227 = arith.addf %223, %226 : vector<16x32xf32>
    %c0_86 = arith.constant 0 : index
    %c0_87 = arith.constant 0 : index
    %c0_88 = arith.constant 0 : index
    %228 = vector.load %arg16[%c0_86, %c0_87, %c0_88] : memref<2x1x32xf32, #tpu.memory_space<vmem>>, vector<1x1x32xf32>
    %229 = vector.shape_cast %228 : vector<1x1x32xf32> to vector<1x32xf32>
    %c0_89 = arith.constant 0 : index
    %c0_90 = arith.constant 0 : index
    %c0_91 = arith.constant 0 : index
    %230 = vector.load %arg17[%c0_89, %c0_90, %c0_91] : memref<2x1x32xf32, #tpu.memory_space<vmem>>, vector<1x1x32xf32>
    %231 = vector.shape_cast %230 : vector<1x1x32xf32> to vector<1x32xf32>
    %cst_92 = arith.constant dense<0.000000e+00> : vector<16xf32>
    %232 = vector.multi_reduction <add>, %227, %cst_92 [1] : vector<16x32xf32> to vector<16xf32>
    %233 = vector.shape_cast %232 : vector<16xf32> to vector<16x1xf32>
    %cst_93 = arith.constant 3.200000e+01 : f32
    %234 = vector.broadcast %cst_93 : f32 to vector<16x1xf32>
    %235 = arith.divf %233, %234 : vector<16x1xf32>
    %236 = vector.broadcast %235 : vector<16x1xf32> to vector<16x32xf32>
    %237 = arith.subf %227, %236 : vector<16x32xf32>
    %238 = vector.broadcast %235 : vector<16x1xf32> to vector<16x32xf32>
    %239 = arith.subf %227, %238 : vector<16x32xf32>
    %240 = arith.mulf %237, %239 : vector<16x32xf32>
    %cst_94 = arith.constant dense<0.000000e+00> : vector<16xf32>
    %241 = vector.multi_reduction <add>, %240, %cst_94 [1] : vector<16x32xf32> to vector<16xf32>
    %242 = vector.shape_cast %241 : vector<16xf32> to vector<16x1xf32>
    %cst_95 = arith.constant 3.200000e+01 : f32
    %243 = vector.broadcast %cst_95 : f32 to vector<16x1xf32>
    %244 = arith.divf %242, %243 : vector<16x1xf32>
    %245 = vector.broadcast %235 : vector<16x1xf32> to vector<16x32xf32>
    %246 = arith.subf %227, %245 : vector<16x32xf32>
    %cst_96 = arith.constant 9.99999996E-13 : f32
    %247 = vector.broadcast %cst_96 : f32 to vector<16x1xf32>
    %248 = arith.addf %244, %247 : vector<16x1xf32>
    %249 = math.rsqrt %248 : vector<16x1xf32>
    %250 = vector.broadcast %249 : vector<16x1xf32> to vector<16x32xf32>
    %251 = arith.mulf %246, %250 : vector<16x32xf32>
    %252 = vector.broadcast %229 : vector<1x32xf32> to vector<16x32xf32>
    %253 = arith.mulf %251, %252 : vector<16x32xf32>
    %254 = vector.broadcast %231 : vector<1x32xf32> to vector<16x32xf32>
    %255 = arith.addf %253, %254 : vector<16x32xf32>
    %c1 = arith.constant 1 : index
    %c0_97 = arith.constant 0 : index
    %c0_98 = arith.constant 0 : index
    %c0_99 = arith.constant 0 : index
    %256 = vector.load %arg6[%c1, %c0_97, %c0_98, %c0_99] : memref<2x12x32x8xbf16, #tpu.memory_space<vmem>>, vector<1x12x32x8xbf16>
    %257 = vector.shape_cast %256 : vector<1x12x32x8xbf16> to vector<12x32x8xbf16>
    %c1_100 = arith.constant 1 : index
    %c0_101 = arith.constant 0 : index
    %c0_102 = arith.constant 0 : index
    %c0_103 = arith.constant 0 : index
    %258 = vector.load %arg7[%c1_100, %c0_101, %c0_102, %c0_103] : memref<2x12x1x8xf32, #tpu.memory_space<vmem>>, vector<1x12x1x8xf32>
    %259 = vector.shape_cast %258 : vector<1x12x1x8xf32> to vector<12x1x8xf32>
    %c1_104 = arith.constant 1 : index
    %c0_105 = arith.constant 0 : index
    %c0_106 = arith.constant 0 : index
    %260 = vector.load %arg8[%c1_104, %c0_105, %c0_106] : memref<2x32x32xbf16, #tpu.memory_space<vmem>>, vector<1x32x32xbf16>
    %261 = vector.shape_cast %260 : vector<1x32x32xbf16> to vector<32x32xbf16>
    %262 = vector.extract_strided_slice %255 {offsets = [0, 0], sizes = [8, 32], strides = [1, 1]} : vector<16x32xf32> to vector<8x32xf32>
    %263 = arith.truncf %262 : vector<8x32xf32> to vector<8x32xbf16>
    %264 = vector.shape_cast %263 : vector<8x32xbf16> to vector<1x8x32xbf16>
    %265 = vector.shape_cast %264 : vector<1x8x32xbf16> to vector<1x8x32xbf16>
    %266 = vector.broadcast %265 : vector<1x8x32xbf16> to vector<12x8x32xbf16>
    "tpu.trace_start"() <{level = 10 : i32, message = "hsk,hkd->hsd"}> : () -> ()
    %cst_107 = arith.constant dense<0.000000e+00> : vector<12x8x8xf32>
    %267 = tpu.matmul %266, %257, %cst_107 {dimension_numbers = #tpu.dot_dimension_numbers<[2], [1], [1], [2], [0, 0, 0, 1, 1, 2], [0], [0]>} : vector<12x8x32xbf16>, vector<12x32x8xbf16>, vector<12x8x8xf32> -> vector<12x8x8xf32>
    "tpu.trace_stop"() : () -> ()
    %268 = vector.broadcast %259 : vector<12x1x8xf32> to vector<12x8x8xf32>
    %269 = arith.addf %267, %268 : vector<12x8x8xf32>
    %270 = vector.extract_strided_slice %269 {offsets = [0, 0, 0], sizes = [4, 8, 8], strides = [1, 1, 1]} : vector<12x8x8xf32> to vector<4x8x8xf32>
    %271 = vector.extract_strided_slice %269 {offsets = [4, 0, 0], sizes = [4, 8, 8], strides = [1, 1, 1]} : vector<12x8x8xf32> to vector<4x8x8xf32>
    %272 = vector.extract_strided_slice %269 {offsets = [8, 0, 0], sizes = [4, 8, 8], strides = [1, 1, 1]} : vector<12x8x8xf32> to vector<4x8x8xf32>
    %273 = arith.truncf %270 : vector<4x8x8xf32> to vector<4x8x8xbf16>
    %274 = arith.truncf %271 : vector<4x8x8xf32> to vector<4x8x8xbf16>
    "tpu.trace_start"() <{level = 10 : i32, message = "hqd,hkd->hqk"}> : () -> ()
    %cst_108 = arith.constant dense<0.000000e+00> : vector<4x8x8xf32>
    %275 = tpu.matmul %273, %274, %cst_108 {dimension_numbers = #tpu.dot_dimension_numbers<[2], [2], [1], [1], [0, 0, 0, 1, 1, 1], [0], [0]>} : vector<4x8x8xbf16>, vector<4x8x8xbf16>, vector<4x8x8xf32> -> vector<4x8x8xf32>
    "tpu.trace_stop"() : () -> ()
    %276 = arith.addf %275, %44 : vector<4x8x8xf32>
    %cst_109 = arith.constant dense<0xFF800000> : vector<4x8xf32>
    %277 = vector.multi_reduction <maximumf>, %276, %cst_109 [2] : vector<4x8x8xf32> to vector<4x8xf32>
    %278 = vector.shape_cast %277 : vector<4x8xf32> to vector<4x8x1xf32>
    %279 = vector.broadcast %278 : vector<4x8x1xf32> to vector<4x8x8xf32>
    %280 = arith.subf %276, %279 : vector<4x8x8xf32>
    %281 = math.exp %280 : vector<4x8x8xf32>
    %cst_110 = arith.constant dense<0.000000e+00> : vector<4x8xf32>
    %282 = vector.multi_reduction <add>, %281, %cst_110 [2] : vector<4x8x8xf32> to vector<4x8xf32>
    %283 = vector.shape_cast %282 : vector<4x8xf32> to vector<4x8x1xf32>
    %284 = tpu.reciprocal %283 {approx = true} : vector<4x8x1xf32> -> vector<4x8x1xf32>
    %285 = vector.broadcast %284 : vector<4x8x1xf32> to vector<4x8x8xf32>
    %286 = arith.mulf %281, %285 : vector<4x8x8xf32>
    %287 = arith.truncf %286 : vector<4x8x8xf32> to vector<4x8x8xbf16>
    %288 = arith.truncf %272 : vector<4x8x8xf32> to vector<4x8x8xbf16>
    "tpu.trace_start"() <{level = 10 : i32, message = "hqk,hkd->hqd"}> : () -> ()
    %cst_111 = arith.constant dense<0.000000e+00> : vector<4x8x8xf32>
    %289 = tpu.matmul %287, %288, %cst_111 {dimension_numbers = #tpu.dot_dimension_numbers<[2], [1], [1], [2], [0, 0, 0, 1, 1, 2], [0], [0]>} : vector<4x8x8xbf16>, vector<4x8x8xbf16>, vector<4x8x8xf32> -> vector<4x8x8xf32>
    "tpu.trace_stop"() : () -> ()
    %290 = vector.extract_strided_slice %289 {offsets = [0, 0, 0], sizes = [1, 8, 8], strides = [1, 1, 1]} : vector<4x8x8xf32> to vector<1x8x8xf32>
    %291 = vector.shape_cast %290 : vector<1x8x8xf32> to vector<8x8xf32>
    %292 = vector.extract_strided_slice %289 {offsets = [1, 0, 0], sizes = [1, 8, 8], strides = [1, 1, 1]} : vector<4x8x8xf32> to vector<1x8x8xf32>
    %293 = vector.shape_cast %292 : vector<1x8x8xf32> to vector<8x8xf32>
    %294 = vector.extract_strided_slice %289 {offsets = [2, 0, 0], sizes = [1, 8, 8], strides = [1, 1, 1]} : vector<4x8x8xf32> to vector<1x8x8xf32>
    %295 = vector.shape_cast %294 : vector<1x8x8xf32> to vector<8x8xf32>
    %296 = vector.extract_strided_slice %289 {offsets = [3, 0, 0], sizes = [1, 8, 8], strides = [1, 1, 1]} : vector<4x8x8xf32> to vector<1x8x8xf32>
    %297 = vector.shape_cast %296 : vector<1x8x8xf32> to vector<8x8xf32>
    %298 = tpu.concatenate %291, %293, %295, %297 in 1 : vector<8x8xf32>, vector<8x8xf32>, vector<8x8xf32>, vector<8x8xf32> -> vector<8x32xf32>
    %299 = arith.truncf %298 : vector<8x32xf32> to vector<8x32xbf16>
    %cst_112 = arith.constant dense<0.000000e+00> : vector<8x32xf32>
    %300 = tpu.matmul %299, %261, %cst_112 {dimension_numbers = #tpu.dot_dimension_numbers<[1], [0], [0], [1], [0, 0, 1, 1], [], []>} : vector<8x32xbf16>, vector<32x32xbf16>, vector<8x32xf32> -> vector<8x32xf32>
    %301 = vector.extract_strided_slice %255 {offsets = [8, 0], sizes = [8, 32], strides = [1, 1]} : vector<16x32xf32> to vector<8x32xf32>
    %302 = arith.truncf %301 : vector<8x32xf32> to vector<8x32xbf16>
    %303 = vector.shape_cast %302 : vector<8x32xbf16> to vector<1x8x32xbf16>
    %304 = vector.shape_cast %303 : vector<1x8x32xbf16> to vector<1x8x32xbf16>
    %305 = vector.broadcast %304 : vector<1x8x32xbf16> to vector<12x8x32xbf16>
    "tpu.trace_start"() <{level = 10 : i32, message = "hsk,hkd->hsd"}> : () -> ()
    %cst_113 = arith.constant dense<0.000000e+00> : vector<12x8x8xf32>
    %306 = tpu.matmul %305, %257, %cst_113 {dimension_numbers = #tpu.dot_dimension_numbers<[2], [1], [1], [2], [0, 0, 0, 1, 1, 2], [0], [0]>} : vector<12x8x32xbf16>, vector<12x32x8xbf16>, vector<12x8x8xf32> -> vector<12x8x8xf32>
    "tpu.trace_stop"() : () -> ()
    %307 = vector.broadcast %259 : vector<12x1x8xf32> to vector<12x8x8xf32>
    %308 = arith.addf %306, %307 : vector<12x8x8xf32>
    %309 = vector.extract_strided_slice %308 {offsets = [0, 0, 0], sizes = [4, 8, 8], strides = [1, 1, 1]} : vector<12x8x8xf32> to vector<4x8x8xf32>
    %310 = vector.extract_strided_slice %308 {offsets = [4, 0, 0], sizes = [4, 8, 8], strides = [1, 1, 1]} : vector<12x8x8xf32> to vector<4x8x8xf32>
    %311 = vector.extract_strided_slice %308 {offsets = [8, 0, 0], sizes = [4, 8, 8], strides = [1, 1, 1]} : vector<12x8x8xf32> to vector<4x8x8xf32>
    %312 = arith.truncf %309 : vector<4x8x8xf32> to vector<4x8x8xbf16>
    %313 = arith.truncf %310 : vector<4x8x8xf32> to vector<4x8x8xbf16>
    "tpu.trace_start"() <{level = 10 : i32, message = "hqd,hkd->hqk"}> : () -> ()
    %cst_114 = arith.constant dense<0.000000e+00> : vector<4x8x8xf32>
    %314 = tpu.matmul %312, %313, %cst_114 {dimension_numbers = #tpu.dot_dimension_numbers<[2], [2], [1], [1], [0, 0, 0, 1, 1, 1], [0], [0]>} : vector<4x8x8xbf16>, vector<4x8x8xbf16>, vector<4x8x8xf32> -> vector<4x8x8xf32>
    "tpu.trace_stop"() : () -> ()
    %315 = arith.addf %314, %52 : vector<4x8x8xf32>
    %cst_115 = arith.constant dense<0xFF800000> : vector<4x8xf32>
    %316 = vector.multi_reduction <maximumf>, %315, %cst_115 [2] : vector<4x8x8xf32> to vector<4x8xf32>
    %317 = vector.shape_cast %316 : vector<4x8xf32> to vector<4x8x1xf32>
    %318 = vector.broadcast %317 : vector<4x8x1xf32> to vector<4x8x8xf32>
    %319 = arith.subf %315, %318 : vector<4x8x8xf32>
    %320 = math.exp %319 : vector<4x8x8xf32>
    %cst_116 = arith.constant dense<0.000000e+00> : vector<4x8xf32>
    %321 = vector.multi_reduction <add>, %320, %cst_116 [2] : vector<4x8x8xf32> to vector<4x8xf32>
    %322 = vector.shape_cast %321 : vector<4x8xf32> to vector<4x8x1xf32>
    %323 = tpu.reciprocal %322 {approx = true} : vector<4x8x1xf32> -> vector<4x8x1xf32>
    %324 = vector.broadcast %323 : vector<4x8x1xf32> to vector<4x8x8xf32>
    %325 = arith.mulf %320, %324 : vector<4x8x8xf32>
    %326 = arith.truncf %325 : vector<4x8x8xf32> to vector<4x8x8xbf16>
    %327 = arith.truncf %311 : vector<4x8x8xf32> to vector<4x8x8xbf16>
    "tpu.trace_start"() <{level = 10 : i32, message = "hqk,hkd->hqd"}> : () -> ()
    %cst_117 = arith.constant dense<0.000000e+00> : vector<4x8x8xf32>
    %328 = tpu.matmul %326, %327, %cst_117 {dimension_numbers = #tpu.dot_dimension_numbers<[2], [1], [1], [2], [0, 0, 0, 1, 1, 2], [0], [0]>} : vector<4x8x8xbf16>, vector<4x8x8xbf16>, vector<4x8x8xf32> -> vector<4x8x8xf32>
    "tpu.trace_stop"() : () -> ()
    %329 = vector.extract_strided_slice %328 {offsets = [0, 0, 0], sizes = [1, 8, 8], strides = [1, 1, 1]} : vector<4x8x8xf32> to vector<1x8x8xf32>
    %330 = vector.shape_cast %329 : vector<1x8x8xf32> to vector<8x8xf32>
    %331 = vector.extract_strided_slice %328 {offsets = [1, 0, 0], sizes = [1, 8, 8], strides = [1, 1, 1]} : vector<4x8x8xf32> to vector<1x8x8xf32>
    %332 = vector.shape_cast %331 : vector<1x8x8xf32> to vector<8x8xf32>
    %333 = vector.extract_strided_slice %328 {offsets = [2, 0, 0], sizes = [1, 8, 8], strides = [1, 1, 1]} : vector<4x8x8xf32> to vector<1x8x8xf32>
    %334 = vector.shape_cast %333 : vector<1x8x8xf32> to vector<8x8xf32>
    %335 = vector.extract_strided_slice %328 {offsets = [3, 0, 0], sizes = [1, 8, 8], strides = [1, 1, 1]} : vector<4x8x8xf32> to vector<1x8x8xf32>
    %336 = vector.shape_cast %335 : vector<1x8x8xf32> to vector<8x8xf32>
    %337 = tpu.concatenate %330, %332, %334, %336 in 1 : vector<8x8xf32>, vector<8x8xf32>, vector<8x8xf32>, vector<8x8xf32> -> vector<8x32xf32>
    %338 = arith.truncf %337 : vector<8x32xf32> to vector<8x32xbf16>
    %cst_118 = arith.constant dense<0.000000e+00> : vector<8x32xf32>
    %339 = tpu.matmul %338, %261, %cst_118 {dimension_numbers = #tpu.dot_dimension_numbers<[1], [0], [0], [1], [0, 0, 1, 1], [], []>} : vector<8x32xbf16>, vector<32x32xbf16>, vector<8x32xf32> -> vector<8x32xf32>
    %340 = tpu.concatenate %300, %339 in 0 : vector<8x32xf32>, vector<8x32xf32> -> vector<16x32xf32>
    %c1_119 = arith.constant 1 : index
    %c0_120 = arith.constant 0 : index
    %c0_121 = arith.constant 0 : index
    %341 = vector.load %arg9[%c1_119, %c0_120, %c0_121] : memref<2x1x32xf32, #tpu.memory_space<vmem>>, vector<1x1x32xf32>
    %342 = vector.shape_cast %341 : vector<1x1x32xf32> to vector<1x32xf32>
    %343 = vector.broadcast %342 : vector<1x32xf32> to vector<16x32xf32>
    %344 = arith.addf %340, %343 : vector<16x32xf32>
    %345 = arith.addf %255, %344 : vector<16x32xf32>
    %c1_122 = arith.constant 1 : index
    %c0_123 = arith.constant 0 : index
    %c0_124 = arith.constant 0 : index
    %346 = vector.load %arg10[%c1_122, %c0_123, %c0_124] : memref<2x1x32xf32, #tpu.memory_space<vmem>>, vector<1x1x32xf32>
    %347 = vector.shape_cast %346 : vector<1x1x32xf32> to vector<1x32xf32>
    %c1_125 = arith.constant 1 : index
    %c0_126 = arith.constant 0 : index
    %c0_127 = arith.constant 0 : index
    %348 = vector.load %arg11[%c1_125, %c0_126, %c0_127] : memref<2x1x32xf32, #tpu.memory_space<vmem>>, vector<1x1x32xf32>
    %349 = vector.shape_cast %348 : vector<1x1x32xf32> to vector<1x32xf32>
    %cst_128 = arith.constant dense<0.000000e+00> : vector<16xf32>
    %350 = vector.multi_reduction <add>, %345, %cst_128 [1] : vector<16x32xf32> to vector<16xf32>
    %351 = vector.shape_cast %350 : vector<16xf32> to vector<16x1xf32>
    %cst_129 = arith.constant 3.200000e+01 : f32
    %352 = vector.broadcast %cst_129 : f32 to vector<16x1xf32>
    %353 = arith.divf %351, %352 : vector<16x1xf32>
    %354 = vector.broadcast %353 : vector<16x1xf32> to vector<16x32xf32>
    %355 = arith.subf %345, %354 : vector<16x32xf32>
    %356 = vector.broadcast %353 : vector<16x1xf32> to vector<16x32xf32>
    %357 = arith.subf %345, %356 : vector<16x32xf32>
    %358 = arith.mulf %355, %357 : vector<16x32xf32>
    %cst_130 = arith.constant dense<0.000000e+00> : vector<16xf32>
    %359 = vector.multi_reduction <add>, %358, %cst_130 [1] : vector<16x32xf32> to vector<16xf32>
    %360 = vector.shape_cast %359 : vector<16xf32> to vector<16x1xf32>
    %cst_131 = arith.constant 3.200000e+01 : f32
    %361 = vector.broadcast %cst_131 : f32 to vector<16x1xf32>
    %362 = arith.divf %360, %361 : vector<16x1xf32>
    %363 = vector.broadcast %353 : vector<16x1xf32> to vector<16x32xf32>
    %364 = arith.subf %345, %363 : vector<16x32xf32>
    %cst_132 = arith.constant 9.99999996E-13 : f32
    %365 = vector.broadcast %cst_132 : f32 to vector<16x1xf32>
    %366 = arith.addf %362, %365 : vector<16x1xf32>
    %367 = math.rsqrt %366 : vector<16x1xf32>
    %368 = vector.broadcast %367 : vector<16x1xf32> to vector<16x32xf32>
    %369 = arith.mulf %364, %368 : vector<16x32xf32>
    %370 = vector.broadcast %347 : vector<1x32xf32> to vector<16x32xf32>
    %371 = arith.mulf %369, %370 : vector<16x32xf32>
    %372 = vector.broadcast %349 : vector<1x32xf32> to vector<16x32xf32>
    %373 = arith.addf %371, %372 : vector<16x32xf32>
    %374 = arith.truncf %373 : vector<16x32xf32> to vector<16x32xbf16>
    %c1_133 = arith.constant 1 : index
    %c0_134 = arith.constant 0 : index
    %c0_135 = arith.constant 0 : index
    %375 = vector.load %arg12[%c1_133, %c0_134, %c0_135] : memref<2x32x64xbf16, #tpu.memory_space<vmem>>, vector<1x32x64xbf16>
    %376 = vector.shape_cast %375 : vector<1x32x64xbf16> to vector<32x64xbf16>
    %cst_136 = arith.constant dense<0.000000e+00> : vector<16x64xf32>
    %377 = tpu.matmul %374, %376, %cst_136 {dimension_numbers = #tpu.dot_dimension_numbers<[1], [0], [0], [1], [0, 0, 1, 1], [], []>} : vector<16x32xbf16>, vector<32x64xbf16>, vector<16x64xf32> -> vector<16x64xf32>
    %c1_137 = arith.constant 1 : index
    %c0_138 = arith.constant 0 : index
    %c0_139 = arith.constant 0 : index
    %378 = vector.load %arg13[%c1_137, %c0_138, %c0_139] : memref<2x1x64xf32, #tpu.memory_space<vmem>>, vector<1x1x64xf32>
    %379 = vector.shape_cast %378 : vector<1x1x64xf32> to vector<1x64xf32>
    %380 = vector.broadcast %379 : vector<1x64xf32> to vector<16x64xf32>
    %381 = arith.addf %377, %380 : vector<16x64xf32>
    %cst_140 = arith.constant 5.000000e-01 : f32
    %382 = vector.broadcast %cst_140 : f32 to vector<16x64xf32>
    %383 = arith.mulf %382, %381 : vector<16x64xf32>
    %cst_141 = arith.constant 0.707106769 : f32
    %384 = vector.broadcast %cst_141 : f32 to vector<16x64xf32>
    %385 = arith.mulf %381, %384 : vector<16x64xf32>
    %386 = math.absf %385 : vector<16x64xf32>
    %cst_142 = arith.constant 0.327591091 : f32
    %387 = vector.broadcast %cst_142 : f32 to vector<16x64xf32>
    %388 = arith.mulf %387, %386 : vector<16x64xf32>
    %cst_143 = arith.constant 1.000000e+00 : f32
    %389 = vector.broadcast %cst_143 : f32 to vector<16x64xf32>
    %390 = arith.addf %389, %388 : vector<16x64xf32>
    %cst_144 = arith.constant 1.000000e+00 : f32
    %391 = vector.broadcast %cst_144 : f32 to vector<16x64xf32>
    %392 = arith.divf %391, %390 : vector<16x64xf32>
    %cst_145 = arith.constant 1.06140542 : f32
    %393 = vector.broadcast %cst_145 : f32 to vector<16x64xf32>
    %394 = arith.mulf %393, %392 : vector<16x64xf32>
    %cst_146 = arith.constant -1.45315206 : f32
    %395 = vector.broadcast %cst_146 : f32 to vector<16x64xf32>
    %396 = arith.addf %394, %395 : vector<16x64xf32>
    %397 = arith.mulf %396, %392 : vector<16x64xf32>
    %cst_147 = arith.constant 1.42141378 : f32
    %398 = vector.broadcast %cst_147 : f32 to vector<16x64xf32>
    %399 = arith.addf %397, %398 : vector<16x64xf32>
    %400 = arith.mulf %399, %392 : vector<16x64xf32>
    %cst_148 = arith.constant -0.284496725 : f32
    %401 = vector.broadcast %cst_148 : f32 to vector<16x64xf32>
    %402 = arith.addf %400, %401 : vector<16x64xf32>
    %403 = arith.mulf %402, %392 : vector<16x64xf32>
    %cst_149 = arith.constant 0.254829586 : f32
    %404 = vector.broadcast %cst_149 : f32 to vector<16x64xf32>
    %405 = arith.addf %403, %404 : vector<16x64xf32>
    %406 = arith.mulf %405, %392 : vector<16x64xf32>
    %cst_150 = arith.constant 0.000000e+00 : f32
    %407 = vector.broadcast %cst_150 : f32 to vector<16x64xf32>
    %408 = arith.subf %407, %386 : vector<16x64xf32>
    %409 = arith.mulf %408, %386 : vector<16x64xf32>
    %410 = math.exp %409 : vector<16x64xf32>
    %411 = arith.mulf %406, %410 : vector<16x64xf32>
    %cst_151 = arith.constant 1.000000e+00 : f32
    %412 = vector.broadcast %cst_151 : f32 to vector<16x64xf32>
    %413 = arith.subf %412, %411 : vector<16x64xf32>
    %cst_152 = arith.constant 0.000000e+00 : f32
    %414 = vector.broadcast %cst_152 : f32 to vector<16x64xf32>
    %415 = arith.cmpf oge, %385, %414 : vector<16x64xf32>
    %cst_153 = arith.constant 0.000000e+00 : f32
    %416 = vector.broadcast %cst_153 : f32 to vector<16x64xf32>
    %417 = arith.subf %416, %413 : vector<16x64xf32>
    %418 = arith.select %415, %413, %417 : vector<16x64xi1>, vector<16x64xf32>
    %cst_154 = arith.constant 1.000000e+00 : f32
    %419 = vector.broadcast %cst_154 : f32 to vector<16x64xf32>
    %420 = arith.addf %419, %418 : vector<16x64xf32>
    %421 = arith.mulf %383, %420 : vector<16x64xf32>
    %422 = arith.truncf %421 : vector<16x64xf32> to vector<16x64xbf16>
    %c1_155 = arith.constant 1 : index
    %c0_156 = arith.constant 0 : index
    %c0_157 = arith.constant 0 : index
    %423 = vector.load %arg14[%c1_155, %c0_156, %c0_157] : memref<2x64x32xbf16, #tpu.memory_space<vmem>>, vector<1x64x32xbf16>
    %424 = vector.shape_cast %423 : vector<1x64x32xbf16> to vector<64x32xbf16>
    %cst_158 = arith.constant dense<0.000000e+00> : vector<16x32xf32>
    %425 = tpu.matmul %422, %424, %cst_158 {dimension_numbers = #tpu.dot_dimension_numbers<[1], [0], [0], [1], [0, 0, 1, 1], [], []>} : vector<16x64xbf16>, vector<64x32xbf16>, vector<16x32xf32> -> vector<16x32xf32>
    %426 = arith.addf %373, %425 : vector<16x32xf32>
    %c1_159 = arith.constant 1 : index
    %c0_160 = arith.constant 0 : index
    %c0_161 = arith.constant 0 : index
    %427 = vector.load %arg15[%c1_159, %c0_160, %c0_161] : memref<2x1x32xf32, #tpu.memory_space<vmem>>, vector<1x1x32xf32>
    %428 = vector.shape_cast %427 : vector<1x1x32xf32> to vector<1x32xf32>
    %429 = vector.broadcast %428 : vector<1x32xf32> to vector<16x32xf32>
    %430 = arith.addf %426, %429 : vector<16x32xf32>
    %c1_162 = arith.constant 1 : index
    %c0_163 = arith.constant 0 : index
    %c0_164 = arith.constant 0 : index
    %431 = vector.load %arg16[%c1_162, %c0_163, %c0_164] : memref<2x1x32xf32, #tpu.memory_space<vmem>>, vector<1x1x32xf32>
    %432 = vector.shape_cast %431 : vector<1x1x32xf32> to vector<1x32xf32>
    %c1_165 = arith.constant 1 : index
    %c0_166 = arith.constant 0 : index
    %c0_167 = arith.constant 0 : index
    %433 = vector.load %arg17[%c1_165, %c0_166, %c0_167] : memref<2x1x32xf32, #tpu.memory_space<vmem>>, vector<1x1x32xf32>
    %434 = vector.shape_cast %433 : vector<1x1x32xf32> to vector<1x32xf32>
    %cst_168 = arith.constant dense<0.000000e+00> : vector<16xf32>
    %435 = vector.multi_reduction <add>, %430, %cst_168 [1] : vector<16x32xf32> to vector<16xf32>
    %436 = vector.shape_cast %435 : vector<16xf32> to vector<16x1xf32>
    %cst_169 = arith.constant 3.200000e+01 : f32
    %437 = vector.broadcast %cst_169 : f32 to vector<16x1xf32>
    %438 = arith.divf %436, %437 : vector<16x1xf32>
    %439 = vector.broadcast %438 : vector<16x1xf32> to vector<16x32xf32>
    %440 = arith.subf %430, %439 : vector<16x32xf32>
    %441 = vector.broadcast %438 : vector<16x1xf32> to vector<16x32xf32>
    %442 = arith.subf %430, %441 : vector<16x32xf32>
    %443 = arith.mulf %440, %442 : vector<16x32xf32>
    %cst_170 = arith.constant dense<0.000000e+00> : vector<16xf32>
    %444 = vector.multi_reduction <add>, %443, %cst_170 [1] : vector<16x32xf32> to vector<16xf32>
    %445 = vector.shape_cast %444 : vector<16xf32> to vector<16x1xf32>
    %cst_171 = arith.constant 3.200000e+01 : f32
    %446 = vector.broadcast %cst_171 : f32 to vector<16x1xf32>
    %447 = arith.divf %445, %446 : vector<16x1xf32>
    %448 = vector.broadcast %438 : vector<16x1xf32> to vector<16x32xf32>
    %449 = arith.subf %430, %448 : vector<16x32xf32>
    %cst_172 = arith.constant 9.99999996E-13 : f32
    %450 = vector.broadcast %cst_172 : f32 to vector<16x1xf32>
    %451 = arith.addf %447, %450 : vector<16x1xf32>
    %452 = math.rsqrt %451 : vector<16x1xf32>
    %453 = vector.broadcast %452 : vector<16x1xf32> to vector<16x32xf32>
    %454 = arith.mulf %449, %453 : vector<16x32xf32>
    %455 = vector.broadcast %432 : vector<1x32xf32> to vector<16x32xf32>
    %456 = arith.mulf %454, %455 : vector<16x32xf32>
    %457 = vector.broadcast %434 : vector<1x32xf32> to vector<16x32xf32>
    %458 = arith.addf %456, %457 : vector<16x32xf32>
    %459 = vector.extract_strided_slice %458 {offsets = [0, 0], sizes = [1, 32], strides = [1, 1]} : vector<16x32xf32> to vector<1x32xf32>
    %460 = vector.extract_strided_slice %458 {offsets = [8, 0], sizes = [1, 32], strides = [1, 1]} : vector<16x32xf32> to vector<1x32xf32>
    %461 = tpu.concatenate %459, %460 in 0 : vector<1x32xf32>, vector<1x32xf32> -> vector<2x32xf32>
    %462 = arith.truncf %461 : vector<2x32xf32> to vector<2x32xbf16>
    %c0_173 = arith.constant 0 : index
    %c0_174 = arith.constant 0 : index
    %463 = vector.load %arg18[%c0_173, %c0_174] : memref<32x128xbf16, #tpu.memory_space<vmem>>, vector<32x128xbf16>
    %cst_175 = arith.constant dense<0.000000e+00> : vector<2x128xf32>
    %464 = tpu.matmul %462, %463, %cst_175 {dimension_numbers = #tpu.dot_dimension_numbers<[1], [0], [0], [1], [0, 0, 1, 1], [], []>} : vector<2x32xbf16>, vector<32x128xbf16>, vector<2x128xf32> -> vector<2x128xf32>
    %c0_176 = arith.constant 0 : index
    %c0_177 = arith.constant 0 : index
    %465 = vector.load %arg19[%c0_176, %c0_177] : memref<1x128xf32, #tpu.memory_space<vmem>>, vector<1x128xf32>
    %466 = vector.broadcast %465 : vector<1x128xf32> to vector<2x128xf32>
    %467 = arith.addf %464, %466 : vector<2x128xf32>
    %c0_178 = arith.constant 0 : index
    %c0_179 = arith.constant 0 : index
    %468 = vector.load %arg20[%c0_178, %c0_179] : memref<2x128xf32, #tpu.memory_space<vmem>>, vector<2x128xf32>
    tpu.vector_store %arg20[%c0_178, %c0_179], %467 {strides = array<i32>} : memref<2x128xf32, #tpu.memory_space<vmem>>, vector<2x128xf32>,
    return
  }
}

</mosaic_0001>

<llo_original>
// kernel: tpu_custom_call.1
$region0: #{tpu_custom_call.1}
  #allocation0 [shape = 'u32[]', space=smem, size = 0x4, offset = 0x4, fixed_abs, tag = 'smem constant byte address 0x4 - core index']
  #allocation1 [shape = 'u32[72,128]{1,0:T(1,128)}', space=vmem, size = 0x9000, scoped, tag = 'internal scratch']
  %s0 = inlined_call_operand.vmem [shape: s32[16,1], index: 0, kind: input, shape index: {}]
  %s1 = inlined_call_operand.vmem [shape: f32[2,8], index: 1, kind: input, shape index: {}]
  %s2 = inlined_call_operand.vmem [shape: f32[16,32], index: 2, kind: input, shape index: {}]
  %s3 = inlined_call_operand.vmem [shape: f32[128,32], index: 3, kind: input, shape index: {}]
  %s4 = inlined_call_operand.vmem [shape: f32[1,32], index: 4, kind: input, shape index: {}]
  %s5 = inlined_call_operand.vmem [shape: f32[1,32], index: 5, kind: input, shape index: {}]
  %s6 = inlined_call_operand.vmem [shape: bf16[2,12,32,8], index: 6, kind: input, shape index: {}]
  %s7 = inlined_call_operand.vmem [shape: f32[2,12,1,8], index: 7, kind: input, shape index: {}]
  %s8 = inlined_call_operand.vmem [shape: bf16[2,32,32], index: 8, kind: input, shape index: {}]
  %s9 = inlined_call_operand.vmem [shape: f32[2,1,32], index: 9, kind: input, shape index: {}]
  %s10 = inlined_call_operand.vmem [shape: f32[2,1,32], index: 10, kind: input, shape index: {}]
  %s11 = inlined_call_operand.vmem [shape: f32[2,1,32], index: 11, kind: input, shape index: {}]
  %s12 = inlined_call_operand.vmem [shape: bf16[2,32,64], index: 12, kind: input, shape index: {}]
  %s13 = inlined_call_operand.vmem [shape: f32[2,1,64], index: 13, kind: input, shape index: {}]
  %s14 = inlined_call_operand.vmem [shape: bf16[2,64,32], index: 14, kind: input, shape index: {}]
  %s15 = inlined_call_operand.vmem [shape: f32[2,1,32], index: 15, kind: input, shape index: {}]
  %s16 = inlined_call_operand.vmem [shape: f32[2,1,32], index: 16, kind: input, shape index: {}]
  %s17 = inlined_call_operand.vmem [shape: f32[2,1,32], index: 17, kind: input, shape index: {}]
  %s18 = inlined_call_operand.vmem [shape: bf16[32,128], index: 18, kind: input, shape index: {}]
  %s19 = inlined_call_operand.vmem [shape: f32[1,128], index: 19, kind: input, shape index: {}]
  %s20 = inlined_call_operand.hbm [shape: f32[2,128], index: 20, kind: output, shape index: {}]
  %s21 = sld [smem:[#allocation0]]
  $region90: #{tpu_custom_call.1} parent=0
    _
  %s23 = ssub.s32 1, %s21
  %s24 = scalar_select 0, %s23, %s21
  $region1: #{tpu_custom_call.1} parent=0
    #allocation2 [shape = 'u8[1024]{0}', space=vmem, size = 0x400, scoped, tag = 'output window, operand 0, single buffered']
    #allocation3 [shape = 's32[1]{0}', space=sflag, size = 0x4, scoped, tag = 'scoped memory for tpu_custom_call.1']
    %25 = vsyncpa [#allocation3], 0
    // Predicated region
    $region2: #{tpu_custom_call.1} parent=1 // pred_check
      _
    $region3: #{tpu_custom_call.1} parent=1 // pred_check_branch
      %27 = sbr.rel (0) target = $region5
    $region4: #{tpu_custom_call.1} parent=1 // pred_region
      _
    $region5: #{tpu_custom_call.1} parent=1 // pred_fallthru
      _
    // Predicated region
    $region6: #{tpu_custom_call.1} parent=1 // pred_check
      _
    $region7: #{tpu_custom_call.1} parent=1 // pred_check_branch
      %29 = sbr.rel (0) target = $region9
    $region8: #{tpu_custom_call.1} parent=1 // pred_region
      _
    $region9: #{tpu_custom_call.1} parent=1 // pred_fallthru
      _
    // Predicated region
    $region10: #{tpu_custom_call.1} parent=1 // pred_check
      _
    $region11: #{tpu_custom_call.1} parent=1 // pred_check_branch
      %31 = sbr.rel (0) target = $region13
    $region12: #{tpu_custom_call.1} parent=1 // pred_region
      _
    $region13: #{tpu_custom_call.1} parent=1 // pred_fallthru
      _
    // Predicated region
    $region14: #{tpu_custom_call.1} parent=1 // pred_check
      _
    $region15: #{tpu_custom_call.1} parent=1 // pred_check_branch
      %33 = sbr.rel (0) target = $region17
    $region16: #{tpu_custom_call.1} parent=1 // pred_region
      _
    $region17: #{tpu_custom_call.1} parent=1 // pred_fallthru
      _
    // Predicated region
    $region18: #{tpu_custom_call.1} parent=1 // pred_check
      _
    $region19: #{tpu_custom_call.1} parent=1 // pred_check_branch
      %35 = sbr.rel (0) target = $region21
    $region20: #{tpu_custom_call.1} parent=1 // pred_region
      _
    $region21: #{tpu_custom_call.1} parent=1 // pred_fallthru
      _
    // Predicated region
    $region22: #{tpu_custom_call.1} parent=1 // pred_check
      _
    $region23: #{tpu_custom_call.1} parent=1 // pred_check_branch
      %37 = sbr.rel (0) target = $region25
    $region24: #{tpu_custom_call.1} parent=1 // pred_region
      _
    $region25: #{tpu_custom_call.1} parent=1 // pred_fallthru
      _
    // Predicated region
    $region26: #{tpu_custom_call.1} parent=1 // pred_check
      _
    $region27: #{tpu_custom_call.1} parent=1 // pred_check_branch
      %39 = sbr.rel (0) target = $region29
    $region28: #{tpu_custom_call.1} parent=1 // pred_region
      _
    $region29: #{tpu_custom_call.1} parent=1 // pred_fallthru
      _
    // Predicated region
    $region30: #{tpu_custom_call.1} parent=1 // pred_check
      _
    $region31: #{tpu_custom_call.1} parent=1 // pred_check_branch
      %41 = sbr.rel (0) target = $region33
    $region32: #{tpu_custom_call.1} parent=1 // pred_region
      _
    $region33: #{tpu_custom_call.1} parent=1 // pred_fallthru
      _
    // Predicated region
    $region34: #{tpu_custom_call.1} parent=1 // pred_check
      _
    $region35: #{tpu_custom_call.1} parent=1 // pred_check_branch
      %43 = sbr.rel (0) target = $region37
    $region36: #{tpu_custom_call.1} parent=1 // pred_region
      _
    $region37: #{tpu_custom_call.1} parent=1 // pred_fallthru
      _
    // Predicated region
    $region38: #{tpu_custom_call.1} parent=1 // pred_check
      _
    $region39: #{tpu_custom_call.1} parent=1 // pred_check_branch
      %45 = sbr.rel (0) target = $region41
    $region40: #{tpu_custom_call.1} parent=1 // pred_region
      _
    $region41: #{tpu_custom_call.1} parent=1 // pred_fallthru
      _
    // Predicated region
    $region42: #{tpu_custom_call.1} parent=1 // pred_check
      _
    $region43: #{tpu_custom_call.1} parent=1 // pred_check_branch
      %47 = sbr.rel (0) target = $region45
    $region44: #{tpu_custom_call.1} parent=1 // pred_region
      _
    $region45: #{tpu_custom_call.1} parent=1 // pred_fallthru
      _
    // Predicated region
    $region46: #{tpu_custom_call.1} parent=1 // pred_check
      _
    $region47: #{tpu_custom_call.1} parent=1 // pred_check_branch
      %49 = sbr.rel (0) target = $region49
    $region48: #{tpu_custom_call.1} parent=1 // pred_region
      _
    $region49: #{tpu_custom_call.1} parent=1 // pred_fallthru
      _
    // Predicated region
    $region50: #{tpu_custom_call.1} parent=1 // pred_check
      _
    $region51: #{tpu_custom_call.1} parent=1 // pred_check_branch
      %51 = sbr.rel (0) target = $region53
    $region52: #{tpu_custom_call.1} parent=1 // pred_region
      _
    $region53: #{tpu_custom_call.1} parent=1 // pred_fallthru
      _
    // Predicated region
    $region54: #{tpu_custom_call.1} parent=1 // pred_check
      _
    $region55: #{tpu_custom_call.1} parent=1 // pred_check_branch
      %53 = sbr.rel (0) target = $region57
    $region56: #{tpu_custom_call.1} parent=1 // pred_region
      _
    $region57: #{tpu_custom_call.1} parent=1 // pred_fallthru
      _
    // Predicated region
    $region58: #{tpu_custom_call.1} parent=1 // pred_check
      _
    $region59: #{tpu_custom_call.1} parent=1 // pred_check_branch
      %55 = sbr.rel (0) target = $region61
    $region60: #{tpu_custom_call.1} parent=1 // pred_region
      _
    $region61: #{tpu_custom_call.1} parent=1 // pred_fallthru
      _
    // Predicated region
    $region62: #{tpu_custom_call.1} parent=1 // pred_check
      _
    $region63: #{tpu_custom_call.1} parent=1 // pred_check_branch
      %57 = sbr.rel (0) target = $region65
    $region64: #{tpu_custom_call.1} parent=1 // pred_region
      _
    $region65: #{tpu_custom_call.1} parent=1 // pred_fallthru
      _
    // Predicated region
    $region66: #{tpu_custom_call.1} parent=1 // pred_check
      _
    $region67: #{tpu_custom_call.1} parent=1 // pred_check_branch
      %59 = sbr.rel (0) target = $region69
    $region68: #{tpu_custom_call.1} parent=1 // pred_region
      _
    $region69: #{tpu_custom_call.1} parent=1 // pred_fallthru
      _
    // Predicated region
    $region70: #{tpu_custom_call.1} parent=1 // pred_check
      _
    $region71: #{tpu_custom_call.1} parent=1 // pred_check_branch
      %61 = sbr.rel (0) target = $region73
    $region72: #{tpu_custom_call.1} parent=1 // pred_region
      _
    $region73: #{tpu_custom_call.1} parent=1 // pred_fallthru
      _
    // Predicated region
    $region74: #{tpu_custom_call.1} parent=1 // pred_check
      _
    $region75: #{tpu_custom_call.1} parent=1 // pred_check_branch
      %63 = sbr.rel (0) target = $region77
    $region76: #{tpu_custom_call.1} parent=1 // pred_region
      _
    $region77: #{tpu_custom_call.1} parent=1 // pred_fallthru
      _
    // Predicated region
    $region78: #{tpu_custom_call.1} parent=1 // pred_check
      _
    $region79: #{tpu_custom_call.1} parent=1 // pred_check_branch
      %65 = sbr.rel (0) target = $region81
    $region80: #{tpu_custom_call.1} parent=1 // pred_region
      _
    $region81: #{tpu_custom_call.1} parent=1 // pred_fallthru
      _
    %v67 = vld [vmem:[%s0] sm:$0xff]
    %v68 = vld [vmem:[%s0 + $0x8] sm:$0xff]
    %v69 = vlaneseq
    %v70 = vand.u32 %v69, 127
    %71 = vset.pattern.permute.xlu0 0
    %72 = vperm.xlu0 %71, %v67
    %v73 = vpop.permute.xlu0 %72
    %74 = vset.pattern.permute.xlu0 0
    %75 = vperm.xlu0 %74, %v68
    %v76 = vpop.permute.xlu0 %75
    %vm77 = vcmp.eq.s32.totalorder %v70, %v73
    %vm78 = vcmp.eq.s32.totalorder %v70, %v76
    %v79 = vsel %vm77, 1, 0
    %v80 = vsel %vm78, 1, 0
    %v81 = vcvt.s32.f32 %v79
    %v82 = vcvt.s32.f32 %v80
    %v83 = vld [vmem:[%s3] sm:$0xff]
    %v84 = vld [vmem:[%s3 + $0x8] sm:$0xff]
    %v85 = vld [vmem:[%s3 + $0x10] sm:$0xff]
    %v86 = vld [vmem:[%s3 + $0x18] sm:$0xff]
    %v87 = vld [vmem:[%s3 + $0x20] sm:$0xff]
    %v88 = vld [vmem:[%s3 + $0x28] sm:$0xff]
    %v89 = vld [vmem:[%s3 + $0x30] sm:$0xff]
    %v90 = vld [vmem:[%s3 + $0x38] sm:$0xff]
    %v91 = vld [vmem:[%s3 + $0x40] sm:$0xff]
    %v92 = vld [vmem:[%s3 + $0x48] sm:$0xff]
    %v93 = vld [vmem:[%s3 + $0x50] sm:$0xff]
    %v94 = vld [vmem:[%s3 + $0x58] sm:$0xff]
    %v95 = vld [vmem:[%s3 + $0x60] sm:$0xff]
    %v96 = vld [vmem:[%s3 + $0x68] sm:$0xff]
    %v97 = vld [vmem:[%s3 + $0x70] sm:$0xff]
    %v98 = vld [vmem:[%s3 + $0x78] sm:$0xff]
    %v99 = vld [vmem:[%s2] sm:$0xff]
    %v100 = vld [vmem:[%s2 + $0x8] sm:$0xff]
    %101 = vmatpush.msra.mxu0 %v98
    %102 = vmatpush.msra.mxu0 %v97
    %103 = vmatpush.msra.mxu0 %v96
    %104 = vmatpush.msra.mxu0 %v95
    %105 = vmatpush.msra.mxu0 %v94
    %106 = vmatpush.msra.mxu0 %v93
    %107 = vmatpush.msra.mxu0 %v92
    %108 = vmatpush.msra.mxu0 %v91
    %109 = vmatpush.msra.mxu0 %v90
    %110 = vmatpush.msra.mxu0 %v89
    %111 = vmatpush.msra.mxu0 %v88
    %112 = vmatpush.msra.mxu0 %v87
    %113 = vmatpush.msra.mxu0 %v86
    %114 = vmatpush.msra.mxu0 %v85
    %115 = vmatpush.msra.mxu0 %v84
    %116 = vmatpush.msra.mxu0 %v83
    %117 = vmatmul.f32.gmra.mxu0 %v81
    %v118 = vpop.f32.mrf.mxu0
    %v119 = vadd.f32 %v99, %v118
    %120 = vmatmul.f32.gmra.mxu0 %v82
    %v121 = vpop.f32.mrf.mxu0
    %v122 = vadd.f32 %v100, %v121
    %123 = vdwg.mxu0
    %v124 = vld [vmem:[%s4] sm:$0x1]
    %v125 = vld [vmem:[%s5] sm:$0x1]
    %vm126 = vcmask 261120
    %v127 = vsel %vm126, %v119, 0.0
    %128 = vadd.xlane.f32.xlu0 %v127
    %v129 = vpop.xlane.xlu0 %128
    %v130 = vsel %vm126, %v122, 0.0
    %131 = vadd.xlane.f32.xlu0 %v130
    %v132 = vpop.xlane.xlu0 %131
    %v133 = vrcp.pop 32.0
    %v134 = vmul.f32 32.0, %v133
    %v135 = vsub.f32 1.0, %v134
    %v136 = vmul.f32 %v133, %v135
    %v137 = vadd.f32 %v133, %v136
    %vm138 = vweird.f32 %v133
    %v139 = vsel %vm138, %v133, %v137
    %v140 = vmul.f32 %v129, %v139
    %v141 = vmul.f32 %v132, %v139
    %v142 = vsub.f32 %v119, %v140
    %v143 = vsub.f32 %v122, %v141
    %v144 = vmul.f32 %v142, %v142
    %v145 = vmul.f32 %v143, %v143
    %v146 = vsel %vm126, %v144, 0.0
    %147 = vadd.xlane.f32.xlu0 %v146
    %v148 = vpop.xlane.xlu0 %147
    %v149 = vsel %vm126, %v145, 0.0
    %150 = vadd.xlane.f32.xlu0 %v149
    %v151 = vpop.xlane.xlu0 %150
    %v152 = vmul.f32 %v148, %v139
    %v153 = vmul.f32 %v151, %v139
    %v154 = vadd.f32 %v152, 1e-12
    %v155 = vadd.f32 %v153, 1e-12
    %v156 = vrsqrt.pop %v154
    %v157 = vmul.f32 %v156, %v154
    %v158 = vmul.f32 %v157, %v156
    %v159 = vmul.f32 0.5, %v158
    %v160 = vsub.f32 1.5, %v159
    %v161 = vmul.f32 %v156, %v160
    %vm162 = vweird.f32 %v154
    %vm163 = vweird.f32 %v156
    %vm164 = vmor %vm162, %vm163
    %v165 = vsel %vm164, %v156, %v161
    %v166 = vrsqrt.pop %v155
    %v167 = vmul.f32 %v166, %v155
    %v168 = vmul.f32 %v167, %v166
    %v169 = vmul.f32 0.5, %v168
    %v170 = vsub.f32 1.5, %v169
    %v171 = vmul.f32 %v166, %v170
    %vm172 = vweird.f32 %v155
    %vm173 = vweird.f32 %v166
    %vm174 = vmor %vm172, %vm173
    %v175 = vsel %vm174, %v166, %v171
    %v176 = vmul.f32 %v142, %v165
    %v177 = vmul.f32 %v143, %v175
    %v179 = vperm.slane %v124, 0
    %v181 = vmul.f32 %v176, %v179
    %v182 = vmul.f32 %v177, %v179
    %v184 = vperm.slane %v125, 0
    %v186 = vadd.f32 %v181, %v184
    %v187 = vadd.f32 %v182, %v184
    %v188 = vld [vmem:[%s1] sm:$0x3]
    %v189 = vsub.f32 1.0, %v188
    %v190 = vmul.f32 %v189, -1e+09
    %v191 = vperm.slane %v190, 0
    %v192 = vperm.slane %v190, 1
    %v193 = vld [vmem:[%s6] sm:$0xf]
    %v194 = vld [vmem:[%s6 + $0x4] sm:$0xf]
    %v195 = vld [vmem:[%s6 + $0x8] sm:$0xf]
    %v196 = vld [vmem:[%s6 + $0xc] sm:$0xf]
    %v197 = vld [vmem:[%s6 + $0x10] sm:$0xf]
    %v198 = vld [vmem:[%s6 + $0x14] sm:$0xf]
    %v199 = vld [vmem:[%s6 + $0x18] sm:$0xf]
    %v200 = vld [vmem:[%s6 + $0x1c] sm:$0xf]
    %v201 = vld [vmem:[%s6 + $0x20] sm:$0xf]
    %v202 = vld [vmem:[%s6 + $0x24] sm:$0xf]
    %v203 = vld [vmem:[%s6 + $0x28] sm:$0xf]
    %v204 = vld [vmem:[%s6 + $0x2c] sm:$0xf]
    %v205 = vld [vmem:[%s6 + $0x30] sm:$0xf]
    %v206 = vld [vmem:[%s6 + $0x34] sm:$0xf]
    %v207 = vld [vmem:[%s6 + $0x38] sm:$0xf]
    %v208 = vld [vmem:[%s6 + $0x3c] sm:$0xf]
    %v209 = vld [vmem:[%s6 + $0x40] sm:$0xf]
    %v210 = vld [vmem:[%s6 + $0x44] sm:$0xf]
    %v211 = vld [vmem:[%s6 + $0x48] sm:$0xf]
    %v212 = vld [vmem:[%s6 + $0x4c] sm:$0xf]
    %v213 = vld [vmem:[%s6 + $0x50] sm:$0xf]
    %v214 = vld [vmem:[%s6 + $0x54] sm:$0xf]
    %v215 = vld [vmem:[%s6 + $0x58] sm:$0xf]
    %v216 = vld [vmem:[%s6 + $0x5c] sm:$0xf]
    %v217 = vld [vmem:[%s6 + $0x60] sm:$0xf]
    %v218 = vld [vmem:[%s6 + $0x64] sm:$0xf]
    %v219 = vld [vmem:[%s6 + $0x68] sm:$0xf]
    %v220 = vld [vmem:[%s6 + $0x6c] sm:$0xf]
    %v221 = vld [vmem:[%s6 + $0x70] sm:$0xf]
    %v222 = vld [vmem:[%s6 + $0x74] sm:$0xf]
    %v223 = vld [vmem:[%s6 + $0x78] sm:$0xf]
    %v224 = vld [vmem:[%s6 + $0x7c] sm:$0xf]
    %v225 = vld [vmem:[%s6 + $0x80] sm:$0xf]
    %v226 = vld [vmem:[%s6 + $0x84] sm:$0xf]
    %v227 = vld [vmem:[%s6 + $0x88] sm:$0xf]
    %v228 = vld [vmem:[%s6 + $0x8c] sm:$0xf]
    %v229 = vld [vmem:[%s6 + $0x90] sm:$0xf]
    %v230 = vld [vmem:[%s6 + $0x94] sm:$0xf]
    %v231 = vld [vmem:[%s6 + $0x98] sm:$0xf]
    %v232 = vld [vmem:[%s6 + $0x9c] sm:$0xf]
    %v233 = vld [vmem:[%s6 + $0xa0] sm:$0xf]
    %v234 = vld [vmem:[%s6 + $0xa4] sm:$0xf]
    %v235 = vld [vmem:[%s6 + $0xa8] sm:$0xf]
    %v236 = vld [vmem:[%s6 + $0xac] sm:$0xf]
    %v237 = vld [vmem:[%s6 + $0xb0] sm:$0xf]
    %v238 = vld [vmem:[%s6 + $0xb4] sm:$0xf]
    %v239 = vld [vmem:[%s6 + $0xb8] sm:$0xf]
    %v240 = vld [vmem:[%s6 + $0xbc] sm:$0xf]
    %v241 = vld [vmem:[%s7] sm:$0x1]
    %v242 = vld [vmem:[%s7 + $0x1] sm:$0x1]
    %v243 = vld [vmem:[%s7 + $0x2] sm:$0x1]
    %v244 = vld [vmem:[%s7 + $0x3] sm:$0x1]
    %v245 = vld [vmem:[%s7 + $0x4] sm:$0x1]
    %v246 = vld [vmem:[%s7 + $0x5] sm:$0x1]
    %v247 = vld [vmem:[%s7 + $0x6] sm:$0x1]
    %v248 = vld [vmem:[%s7 + $0x7] sm:$0x1]
    %v249 = vld [vmem:[%s7 + $0x8] sm:$0x1]
    %v250 = vld [vmem:[%s7 + $0x9] sm:$0x1]
    %v251 = vld [vmem:[%s7 + $0xa] sm:$0x1]
    %v252 = vld [vmem:[%s7 + $0xb] sm:$0x1]
    %v253 = vld [vmem:[%s8] sm:$0xf]
    %v254 = vld [vmem:[%s8 + $0x4] sm:$0xf]
    %v255 = vld [vmem:[%s8 + $0x8] sm:$0xf]
    %v256 = vld [vmem:[%s8 + $0xc] sm:$0xf]
    %v257 = vpack.c.bf16 %v186, %v186
    %v270 = vperm.slane %v241, 0
    %v271 = vperm.slane %v242, 0
    %v272 = vperm.slane %v243, 0
    %v273 = vperm.slane %v244, 0
    %v274 = vperm.slane %v245, 0
    %v275 = vperm.slane %v246, 0
    %v276 = vperm.slane %v247, 0
    %v277 = vperm.slane %v248, 0
    %v278 = vperm.slane %v249, 0
    %v279 = vperm.slane %v250, 0
    %v280 = vperm.slane %v251, 0
    %v281 = vperm.slane %v252, 0
    %v298 = vunpack.c.l.b16 %v193
    %v299 = vunpack.c.l.b16 %v194
    %v300 = vunpack.c.l.b16 %v195
    %v301 = vunpack.c.l.b16 %v196
    %v302 = vpack.c.b16 %v299, %v298
    %v303 = vpack.c.b16 %v301, %v300
    %v307 = vsel %vm126, %v257, 0
    %309 = vmatpush.bf16.msra.mxu0 0
    %310 = vmatpush.bf16.msra.mxu0 0
    %311 = vmatpush.bf16.msra.mxu0 0
    %312 = vmatpush.bf16.msra.mxu0 0
    %313 = vmatpush.bf16.msra.mxu0 0
    %314 = vmatpush.bf16.msra.mxu0 0
    %315 = vmatpush.bf16.msra.mxu0 %v303
    %316 = vmatpush.bf16.msra.mxu0 %v302
    %317 = vmatmul.bf16.gmra.mxu0 %v307
    %v318 = vpop.f32.mrf.mxu0
    %v319 = vadd.f32 %v270, %v318
    %v320 = vpop.f32.mrf.mxu0
    %321 = vdwg.mxu0
    %v326 = vunpack.c.l.b16 %v197
    %v327 = vunpack.c.l.b16 %v198
    %v328 = vunpack.c.l.b16 %v199
    %v329 = vunpack.c.l.b16 %v200
    %v330 = vpack.c.b16 %v327, %v326
    %v331 = vpack.c.b16 %v329, %v328
    %334 = vmatpush.bf16.msra.mxu0 0
    %335 = vmatpush.bf16.msra.mxu0 0
    %336 = vmatpush.bf16.msra.mxu0 0
    %337 = vmatpush.bf16.msra.mxu0 0
    %338 = vmatpush.bf16.msra.mxu0 0
    %339 = vmatpush.bf16.msra.mxu0 0
    %340 = vmatpush.bf16.msra.mxu0 %v331
    %341 = vmatpush.bf16.msra.mxu0 %v330
    %342 = vmatmul.bf16.gmra.mxu0 %v307
    %v343 = vpop.f32.mrf.mxu0
    %v344 = vadd.f32 %v271, %v343
    %v345 = vpop.f32.mrf.mxu0
    %346 = vdwg.mxu0
    %v351 = vunpack.c.l.b16 %v201
    %v352 = vunpack.c.l.b16 %v202
    %v353 = vunpack.c.l.b16 %v203
    %v354 = vunpack.c.l.b16 %v204
    %v355 = vpack.c.b16 %v352, %v351
    %v356 = vpack.c.b16 %v354, %v353
    %359 = vmatpush.bf16.msra.mxu0 0
    %360 = vmatpush.bf16.msra.mxu0 0
    %361 = vmatpush.bf16.msra.mxu0 0
    %362 = vmatpush.bf16.msra.mxu0 0
    %363 = vmatpush.bf16.msra.mxu0 0
    %364 = vmatpush.bf16.msra.mxu0 0
    %365 = vmatpush.bf16.msra.mxu0 %v356
    %366 = vmatpush.bf16.msra.mxu0 %v355
    %367 = vmatmul.bf16.gmra.mxu0 %v307
    %v368 = vpop.f32.mrf.mxu0
    %v369 = vadd.f32 %v272, %v368
    %v370 = vpop.f32.mrf.mxu0
    %371 = vdwg.mxu0
    %v376 = vunpack.c.l.b16 %v205
    %v377 = vunpack.c.l.b16 %v206
    %v378 = vunpack.c.l.b16 %v207
    %v379 = vunpack.c.l.b16 %v208
    %v380 = vpack.c.b16 %v377, %v376
    %v381 = vpack.c.b16 %v379, %v378
    %384 = vmatpush.bf16.msra.mxu0 0
    %385 = vmatpush.bf16.msra.mxu0 0
    %386 = vmatpush.bf16.msra.mxu0 0
    %387 = vmatpush.bf16.msra.mxu0 0
    %388 = vmatpush.bf16.msra.mxu0 0
    %389 = vmatpush.bf16.msra.mxu0 0
    %390 = vmatpush.bf16.msra.mxu0 %v381
    %391 = vmatpush.bf16.msra.mxu0 %v380
    %392 = vmatmul.bf16.gmra.mxu0 %v307
    %v393 = vpop.f32.mrf.mxu0
    %v394 = vadd.f32 %v273, %v393
    %v395 = vpop.f32.mrf.mxu0
    %396 = vdwg.mxu0
    %v401 = vunpack.c.l.b16 %v209
    %v402 = vunpack.c.l.b16 %v210
    %v403 = vunpack.c.l.b16 %v211
    %v404 = vunpack.c.l.b16 %v212
    %v405 = vpack.c.b16 %v402, %v401
    %v406 = vpack.c.b16 %v404, %v403
    %409 = vmatpush.bf16.msra.mxu0 0
    %410 = vmatpush.bf16.msra.mxu0 0
    %411 = vmatpush.bf16.msra.mxu0 0
    %412 = vmatpush.bf16.msra.mxu0 0
    %413 = vmatpush.bf16.msra.mxu0 0
    %414 = vmatpush.bf16.msra.mxu0 0
    %415 = vmatpush.bf16.msra.mxu0 %v406
    %416 = vmatpush.bf16.msra.mxu0 %v405
    %417 = vmatmul.bf16.gmra.mxu0 %v307
    %v418 = vpop.f32.mrf.mxu0
    %v419 = vadd.f32 %v274, %v418
    %v420 = vpop.f32.mrf.mxu0
    %421 = vdwg.mxu0
    %v426 = vunpack.c.l.b16 %v213
    %v427 = vunpack.c.l.b16 %v214
    %v428 = vunpack.c.l.b16 %v215
    %v429 = vunpack.c.l.b16 %v216
    %v430 = vpack.c.b16 %v427, %v426
    %v431 = vpack.c.b16 %v429, %v428
    %434 = vmatpush.bf16.msra.mxu0 0
    %435 = vmatpush.bf16.msra.mxu0 0
    %436 = vmatpush.bf16.msra.mxu0 0
    %437 = vmatpush.bf16.msra.mxu0 0
    %438 = vmatpush.bf16.msra.mxu0 0
    %439 = vmatpush.bf16.msra.mxu0 0
    %440 = vmatpush.bf16.msra.mxu0 %v431
    %441 = vmatpush.bf16.msra.mxu0 %v430
    %442 = vmatmul.bf16.gmra.mxu0 %v307
    %v443 = vpop.f32.mrf.mxu0
    %v444 = vadd.f32 %v275, %v443
    %v445 = vpop.f32.mrf.mxu0
    %446 = vdwg.mxu0
    %v451 = vunpack.c.l.b16 %v217
    %v452 = vunpack.c.l.b16 %v218
    %v453 = vunpack.c.l.b16 %v219
    %v454 = vunpack.c.l.b16 %v220
    %v455 = vpack.c.b16 %v452, %v451
    %v456 = vpack.c.b16 %v454, %v453
    %459 = vmatpush.bf16.msra.mxu0 0
    %460 = vmatpush.bf16.msra.mxu0 0
    %461 = vmatpush.bf16.msra.mxu0 0
    %462 = vmatpush.bf16.msra.mxu0 0
    %463 = vmatpush.bf16.msra.mxu0 0
    %464 = vmatpush.bf16.msra.mxu0 0
    %465 = vmatpush.bf16.msra.mxu0 %v456
    %466 = vmatpush.bf16.msra.mxu0 %v455
    %467 = vmatmul.bf16.gmra.mxu0 %v307
    %v468 = vpop.f32.mrf.mxu0
    %v469 = vadd.f32 %v276, %v468
    %v470 = vpop.f32.mrf.mxu0
    %471 = vdwg.mxu0
    %v476 = vunpack.c.l.b16 %v221
    %v477 = vunpack.c.l.b16 %v222
    %v478 = vunpack.c.l.b16 %v223
    %v479 = vunpack.c.l.b16 %v224
    %v480 = vpack.c.b16 %v477, %v476
    %v481 = vpack.c.b16 %v479, %v478
    %484 = vmatpush.bf16.msra.mxu0 0
    %485 = vmatpush.bf16.msra.mxu0 0
    %486 = vmatpush.bf16.msra.mxu0 0
    %487 = vmatpush.bf16.msra.mxu0 0
    %488 = vmatpush.bf16.msra.mxu0 0
    %489 = vmatpush.bf16.msra.mxu0 0
    %490 = vmatpush.bf16.msra.mxu0 %v481
    %491 = vmatpush.bf16.msra.mxu0 %v480
    %492 = vmatmul.bf16.gmra.mxu0 %v307
    %v493 = vpop.f32.mrf.mxu0
    %v494 = vadd.f32 %v277, %v493
    %v495 = vpop.f32.mrf.mxu0
    %496 = vdwg.mxu0
    %v501 = vunpack.c.l.b16 %v225
    %v502 = vunpack.c.l.b16 %v226
    %v503 = vunpack.c.l.b16 %v227
    %v504 = vunpack.c.l.b16 %v228
    %v505 = vpack.c.b16 %v502, %v501
    %v506 = vpack.c.b16 %v504, %v503
    %509 = vmatpush.bf16.msra.mxu0 0
    %510 = vmatpush.bf16.msra.mxu0 0
    %511 = vmatpush.bf16.msra.mxu0 0
    %512 = vmatpush.bf16.msra.mxu0 0
    %513 = vmatpush.bf16.msra.mxu0 0
    %514 = vmatpush.bf16.msra.mxu0 0
    %515 = vmatpush.bf16.msra.mxu0 %v506
    %516 = vmatpush.bf16.msra.mxu0 %v505
    %517 = vmatmul.bf16.gmra.mxu0 %v307
    %v518 = vpop.f32.mrf.mxu0
    %v519 = vadd.f32 %v278, %v518
    %v520 = vpop.f32.mrf.mxu0
    %521 = vdwg.mxu0
    %v526 = vunpack.c.l.b16 %v229
    %v527 = vunpack.c.l.b16 %v230
    %v528 = vunpack.c.l.b16 %v231
    %v529 = vunpack.c.l.b16 %v232
    %v530 = vpack.c.b16 %v527, %v526
    %v531 = vpack.c.b16 %v529, %v528
    %534 = vmatpush.bf16.msra.mxu0 0
    %535 = vmatpush.bf16.msra.mxu0 0
    %536 = vmatpush.bf16.msra.mxu0 0
    %537 = vmatpush.bf16.msra.mxu0 0
    %538 = vmatpush.bf16.msra.mxu0 0
    %539 = vmatpush.bf16.msra.mxu0 0
    %540 = vmatpush.bf16.msra.mxu0 %v531
    %541 = vmatpush.bf16.msra.mxu0 %v530
    %542 = vmatmul.bf16.gmra.mxu0 %v307
    %v543 = vpop.f32.mrf.mxu0
    %v544 = vadd.f32 %v279, %v543
    %v545 = vpop.f32.mrf.mxu0
    %546 = vdwg.mxu0
    %v551 = vunpack.c.l.b16 %v233
    %v552 = vunpack.c.l.b16 %v234
    %v553 = vunpack.c.l.b16 %v235
    %v554 = vunpack.c.l.b16 %v236
    %v555 = vpack.c.b16 %v552, %v551
    %v556 = vpack.c.b16 %v554, %v553
    %559 = vmatpush.bf16.msra.mxu0 0
    %560 = vmatpush.bf16.msra.mxu0 0
    %561 = vmatpush.bf16.msra.mxu0 0
    %562 = vmatpush.bf16.msra.mxu0 0
    %563 = vmatpush.bf16.msra.mxu0 0
    %564 = vmatpush.bf16.msra.mxu0 0
    %565 = vmatpush.bf16.msra.mxu0 %v556
    %566 = vmatpush.bf16.msra.mxu0 %v555
    %567 = vmatmul.bf16.gmra.mxu0 %v307
    %v568 = vpop.f32.mrf.mxu0
    %v569 = vadd.f32 %v280, %v568
    %v570 = vpop.f32.mrf.mxu0
    %571 = vdwg.mxu0
    %v576 = vunpack.c.l.b16 %v237
    %v577 = vunpack.c.l.b16 %v238
    %v578 = vunpack.c.l.b16 %v239
    %v579 = vunpack.c.l.b16 %v240
    %v580 = vpack.c.b16 %v577, %v576
    %v581 = vpack.c.b16 %v579, %v578
    %584 = vmatpush.bf16.msra.mxu0 0
    %585 = vmatpush.bf16.msra.mxu0 0
    %586 = vmatpush.bf16.msra.mxu0 0
    %587 = vmatpush.bf16.msra.mxu0 0
    %588 = vmatpush.bf16.msra.mxu0 0
    %589 = vmatpush.bf16.msra.mxu0 0
    %590 = vmatpush.bf16.msra.mxu0 %v581
    %591 = vmatpush.bf16.msra.mxu0 %v580
    %592 = vmatmul.bf16.gmra.mxu0 %v307
    %v593 = vpop.f32.mrf.mxu0
    %v594 = vadd.f32 %v281, %v593
    %v595 = vpop.f32.mrf.mxu0
    %596 = vdwg.mxu0
    %v597 = vpack.c.bf16 %v319, %v319
    %v598 = vpack.c.bf16 %v344, %v344
    %v599 = vpack.c.bf16 %v369, %v369
    %v600 = vpack.c.bf16 %v394, %v394
    %v601 = vpack.c.bf16 %v419, %v419
    %v602 = vpack.c.bf16 %v444, %v444
    %v603 = vpack.c.bf16 %v469, %v469
    %v604 = vpack.c.bf16 %v494, %v494
    %vm605 = vcmask 64512
    %v607 = vsel %vm605, %v597, 0
    %v610 = vsel %vm605, %v601, 0
    %612 = vmatpush.bf16.xpose.msra.mxu0 0
    %613 = vmatpush.bf16.xpose.msra.mxu0 0
    %614 = vmatpush.bf16.xpose.msra.mxu0 0
    %615 = vmatpush.bf16.xpose.msra.mxu0 0
    %616 = vmatpush.bf16.xpose.msra.mxu0 0
    %617 = vmatpush.bf16.xpose.msra.mxu0 0
    %618 = vmatpush.bf16.xpose.msra.mxu0 0
    %619 = vmatpush.bf16.xpose.msra.mxu0 %v610
    %620 = vmatmul.bf16.gmra.mxu0 %v607
    %v621 = vpop.f32.mrf.mxu0
    %v622 = vadd.f32 %v191, %v621
    %v623 = vpop.f32.mrf.mxu0
    %624 = vdwg.mxu0
    %v626 = vsel %vm605, %v598, 0
    %v629 = vsel %vm605, %v602, 0
    %631 = vmatpush.bf16.xpose.msra.mxu0 0
    %632 = vmatpush.bf16.xpose.msra.mxu0 0
    %633 = vmatpush.bf16.xpose.msra.mxu0 0
    %634 = vmatpush.bf16.xpose.msra.mxu0 0
    %635 = vmatpush.bf16.xpose.msra.mxu0 0
    %636 = vmatpush.bf16.xpose.msra.mxu0 0
    %637 = vmatpush.bf16.xpose.msra.mxu0 0
    %638 = vmatpush.bf16.xpose.msra.mxu0 %v629
    %639 = vmatmul.bf16.gmra.mxu0 %v626
    %v640 = vpop.f32.mrf.mxu0
    %v641 = vadd.f32 %v191, %v640
    %v642 = vpop.f32.mrf.mxu0
    %643 = vdwg.mxu0
    %v645 = vsel %vm605, %v599, 0
    %v648 = vsel %vm605, %v603, 0
    %650 = vmatpush.bf16.xpose.msra.mxu0 0
    %651 = vmatpush.bf16.xpose.msra.mxu0 0
    %652 = vmatpush.bf16.xpose.msra.mxu0 0
    %653 = vmatpush.bf16.xpose.msra.mxu0 0
    %654 = vmatpush.bf16.xpose.msra.mxu0 0
    %655 = vmatpush.bf16.xpose.msra.mxu0 0
    %656 = vmatpush.bf16.xpose.msra.mxu0 0
    %657 = vmatpush.bf16.xpose.msra.mxu0 %v648
    %658 = vmatmul.bf16.gmra.mxu0 %v645
    %v659 = vpop.f32.mrf.mxu0
    %v660 = vadd.f32 %v191, %v659
    %v661 = vpop.f32.mrf.mxu0
    %662 = vdwg.mxu0
    %v664 = vsel %vm605, %v600, 0
    %v667 = vsel %vm605, %v604, 0
    %669 = vmatpush.bf16.xpose.msra.mxu0 0
    %670 = vmatpush.bf16.xpose.msra.mxu0 0
    %671 = vmatpush.bf16.xpose.msra.mxu0 0
    %672 = vmatpush.bf16.xpose.msra.mxu0 0
    %673 = vmatpush.bf16.xpose.msra.mxu0 0
    %674 = vmatpush.bf16.xpose.msra.mxu0 0
    %675 = vmatpush.bf16.xpose.msra.mxu0 0
    %676 = vmatpush.bf16.xpose.msra.mxu0 %v667
    %677 = vmatmul.bf16.gmra.mxu0 %v664
    %v678 = vpop.f32.mrf.mxu0
    %v679 = vadd.f32 %v191, %v678
    %v680 = vpop.f32.mrf.mxu0
    %681 = vdwg.mxu0
    %v682 = vsel %vm605, %v622, -inf
    %683 = vmax.xlane.f32.xlu0 %v682
    %v684 = vpop.xlane.xlu0 %683
    %v685 = vsel %vm605, %v641, -inf
    %686 = vmax.xlane.f32.xlu0 %v685
    %v687 = vpop.xlane.xlu0 %686
    %v688 = vsel %vm605, %v660, -inf
    %689 = vmax.xlane.f32.xlu0 %v688
    %v690 = vpop.xlane.xlu0 %689
    %v691 = vsel %vm605, %v679, -inf
    %692 = vmax.xlane.f32.xlu0 %v691
    %v693 = vpop.xlane.xlu0 %692
    %v694 = vsub.f32 %v622, %v684
    %v695 = vsub.f32 %v641, %v687
    %v696 = vsub.f32 %v660, %v690
    %v697 = vsub.f32 %v679, %v693
    %v698 = vmul.f32 %v694, 1.442695
    %v699 = vpow.pop %v698
    %v700 = vmul.f32 %v695, 1.442695
    %v701 = vpow.pop %v700
    %v702 = vmul.f32 %v696, 1.442695
    %v703 = vpow.pop %v702
    %v704 = vmul.f32 %v697, 1.442695
    %v705 = vpow.pop %v704
    %v706 = vsel %vm605, %v699, 0.0
    %707 = vadd.xlane.f32.xlu0 %v706
    %v708 = vpop.xlane.xlu0 %707
    %v709 = vsel %vm605, %v701, 0.0
    %710 = vadd.xlane.f32.xlu0 %v709
    %v711 = vpop.xlane.xlu0 %710
    %v712 = vsel %vm605, %v703, 0.0
    %713 = vadd.xlane.f32.xlu0 %v712
    %v714 = vpop.xlane.xlu0 %713
    %v715 = vsel %vm605, %v705, 0.0
    %716 = vadd.xlane.f32.xlu0 %v715
    %v717 = vpop.xlane.xlu0 %716
    %v718 = vrcp.pop %v708
    %v719 = vrcp.pop %v711
    %v720 = vrcp.pop %v714
    %v721 = vrcp.pop %v717
    %v722 = vmul.f32 %v699, %v718
    %v723 = vmul.f32 %v701, %v719
    %v724 = vmul.f32 %v703, %v720
    %v725 = vmul.f32 %v705, %v721
    %v726 = vpack.c.bf16 %v722, %v722
    %v727 = vpack.c.bf16 %v723, %v723
    %v728 = vpack.c.bf16 %v724, %v724
    %v729 = vpack.c.bf16 %v725, %v725
    %v730 = vpack.c.bf16 %v519, %v519
    %v731 = vpack.c.bf16 %v544, %v544
    %v732 = vpack.c.bf16 %v569, %v569
    %v733 = vpack.c.bf16 %v594, %v594
    %v735 = vsel %vm605, %v726, 0
    %vm737 = vcmask 1043456
    %v739 = vsel %vm737, %v730, 0
    %741 = vmatpush.bf16.msra.mxu0 0
    %742 = vmatpush.bf16.msra.mxu0 0
    %743 = vmatpush.bf16.msra.mxu0 0
    %744 = vmatpush.bf16.msra.mxu0 0
    %745 = vmatpush.bf16.msra.mxu0 0
    %746 = vmatpush.bf16.msra.mxu0 0
    %747 = vmatpush.bf16.msra.mxu0 0
    %748 = vmatpush.bf16.msra.mxu0 %v739
    %749 = vmatmul.bf16.gmra.mxu0 %v735
    %v750 = vpop.f32.mrf.mxu0
    %v751 = vadd.f32 0.0, %v750
    %v752 = vpop.f32.mrf.mxu0
    %753 = vdwg.mxu0
    %v755 = vsel %vm605, %v727, 0
    %v758 = vsel %vm737, %v731, 0
    %760 = vmatpush.bf16.msra.mxu0 0
    %761 = vmatpush.bf16.msra.mxu0 0
    %762 = vmatpush.bf16.msra.mxu0 0
    %763 = vmatpush.bf16.msra.mxu0 0
    %764 = vmatpush.bf16.msra.mxu0 0
    %765 = vmatpush.bf16.msra.mxu0 0
    %766 = vmatpush.bf16.msra.mxu0 0
    %767 = vmatpush.bf16.msra.mxu0 %v758
    %768 = vmatmul.bf16.gmra.mxu0 %v755
    %v769 = vpop.f32.mrf.mxu0
    %v770 = vadd.f32 0.0, %v769
    %v771 = vpop.f32.mrf.mxu0
    %772 = vdwg.mxu0
    %v774 = vsel %vm605, %v728, 0
    %v777 = vsel %vm737, %v732, 0
    %779 = vmatpush.bf16.msra.mxu0 0
    %780 = vmatpush.bf16.msra.mxu0 0
    %781 = vmatpush.bf16.msra.mxu0 0
    %782 = vmatpush.bf16.msra.mxu0 0
    %783 = vmatpush.bf16.msra.mxu0 0
    %784 = vmatpush.bf16.msra.mxu0 0
    %785 = vmatpush.bf16.msra.mxu0 0
    %786 = vmatpush.bf16.msra.mxu0 %v777
    %787 = vmatmul.bf16.gmra.mxu0 %v774
    %v788 = vpop.f32.mrf.mxu0
    %v789 = vadd.f32 0.0, %v788
    %v790 = vpop.f32.mrf.mxu0
    %791 = vdwg.mxu0
    %v793 = vsel %vm605, %v729, 0
    %v796 = vsel %vm737, %v733, 0
    %798 = vmatpush.bf16.msra.mxu0 0
    %799 = vmatpush.bf16.msra.mxu0 0
    %800 = vmatpush.bf16.msra.mxu0 0
    %801 = vmatpush.bf16.msra.mxu0 0
    %802 = vmatpush.bf16.msra.mxu0 0
    %803 = vmatpush.bf16.msra.mxu0 0
    %804 = vmatpush.bf16.msra.mxu0 0
    %805 = vmatpush.bf16.msra.mxu0 %v796
    %806 = vmatmul.bf16.gmra.mxu0 %v793
    %v807 = vpop.f32.mrf.mxu0
    %v808 = vadd.f32 0.0, %v807
    %v809 = vpop.f32.mrf.mxu0
    %810 = vdwg.mxu0
    %812 = vrot.lane.b32.xlu0 %v770, 8
    %v813 = vpop.permute.xlu0 %812
    %816 = vrot.lane.b32.xlu0 %v789, 16
    %v817 = vpop.permute.xlu0 %816
    %820 = vrot.lane.b32.xlu0 %v808, 24
    %v821 = vpop.permute.xlu0 %820
    %v823 = vsel %vm605, %v751, %v813
    %vm824 = vcmask 130048
    %v825 = vsel %vm824, %v823, %v817
    %vm826 = vcmask 195584
    %v827 = vsel %vm826, %v825, %v821
    %v828 = vpack.c.bf16 %v827, %v827
    %v833 = vunpack.c.l.b16 %v253
    %v834 = vunpack.c.l.b16 %v254
    %v835 = vunpack.c.l.b16 %v255
    %v836 = vunpack.c.l.b16 %v256
    %v837 = vpack.c.b16 %v834, %v833
    %v838 = vpack.c.b16 %v836, %v835
    %v842 = vsel %vm126, %v828, 0
    %844 = vmatpush.bf16.msra.mxu0 0
    %845 = vmatpush.bf16.msra.mxu0 0
    %846 = vmatpush.bf16.msra.mxu0 0
    %847 = vmatpush.bf16.msra.mxu0 0
    %848 = vmatpush.bf16.msra.mxu0 0
    %849 = vmatpush.bf16.msra.mxu0 0
    %850 = vmatpush.bf16.msra.mxu0 %v838
    %851 = vmatpush.bf16.msra.mxu0 %v837
    %852 = vmatmul.bf16.gmra.mxu0 %v842
    %v853 = vpop.f32.mrf.mxu0
    %v854 = vadd.f32 0.0, %v853
    %v855 = vpop.f32.mrf.mxu0
    %856 = vdwg.mxu0
    %v857 = vpack.c.bf16 %v187, %v187
    %v859 = vsel %vm126, %v857, 0
    %861 = vmatpush.bf16.msra.mxu0 0
    %862 = vmatpush.bf16.msra.mxu0 0
    %863 = vmatpush.bf16.msra.mxu0 0
    %864 = vmatpush.bf16.msra.mxu0 0
    %865 = vmatpush.bf16.msra.mxu0 0
    %866 = vmatpush.bf16.msra.mxu0 0
    %867 = vmatpush.bf16.msra.mxu0 %v303
    %868 = vmatpush.bf16.msra.mxu0 %v302
    %869 = vmatmul.bf16.gmra.mxu0 %v859
    %v870 = vpop.f32.mrf.mxu0
    %v871 = vadd.f32 %v270, %v870
    %v872 = vpop.f32.mrf.mxu0
    %873 = vdwg.mxu0
    %874 = vmatpush.bf16.msra.mxu0 0
    %875 = vmatpush.bf16.msra.mxu0 0
    %876 = vmatpush.bf16.msra.mxu0 0
    %877 = vmatpush.bf16.msra.mxu0 0
    %878 = vmatpush.bf16.msra.mxu0 0
    %879 = vmatpush.bf16.msra.mxu0 0
    %880 = vmatpush.bf16.msra.mxu0 %v331
    %881 = vmatpush.bf16.msra.mxu0 %v330
    %882 = vmatmul.bf16.gmra.mxu0 %v859
    %v883 = vpop.f32.mrf.mxu0
    %v884 = vadd.f32 %v271, %v883
    %v885 = vpop.f32.mrf.mxu0
    %886 = vdwg.mxu0
    %887 = vmatpush.bf16.msra.mxu0 0
    %888 = vmatpush.bf16.msra.mxu0 0
    %889 = vmatpush.bf16.msra.mxu0 0
    %890 = vmatpush.bf16.msra.mxu0 0
    %891 = vmatpush.bf16.msra.mxu0 0
    %892 = vmatpush.bf16.msra.mxu0 0
    %893 = vmatpush.bf16.msra.mxu0 %v356
    %894 = vmatpush.bf16.msra.mxu0 %v355
    %895 = vmatmul.bf16.gmra.mxu0 %v859
    %v896 = vpop.f32.mrf.mxu0
    %v897 = vadd.f32 %v272, %v896
    %v898 = vpop.f32.mrf.mxu0
    %899 = vdwg.mxu0
    %900 = vmatpush.bf16.msra.mxu0 0
    %901 = vmatpush.bf16.msra.mxu0 0
    %902 = vmatpush.bf16.msra.mxu0 0
    %903 = vmatpush.bf16.msra.mxu0 0
    %904 = vmatpush.bf16.msra.mxu0 0
    %905 = vmatpush.bf16.msra.mxu0 0
    %906 = vmatpush.bf16.msra.mxu0 %v381
    %907 = vmatpush.bf16.msra.mxu0 %v380
    %908 = vmatmul.bf16.gmra.mxu0 %v859
    %v909 = vpop.f32.mrf.mxu0
    %v910 = vadd.f32 %v273, %v909
    %v911 = vpop.f32.mrf.mxu0
    %912 = vdwg.mxu0
    %913 = vmatpush.bf16.msra.mxu0 0
    %914 = vmatpush.bf16.msra.mxu0 0
    %915 = vmatpush.bf16.msra.mxu0 0
    %916 = vmatpush.bf16.msra.mxu0 0
    %917 = vmatpush.bf16.msra.mxu0 0
    %918 = vmatpush.bf16.msra.mxu0 0
    %919 = vmatpush.bf16.msra.mxu0 %v406
    %920 = vmatpush.bf16.msra.mxu0 %v405
    %921 = vmatmul.bf16.gmra.mxu0 %v859
    %v922 = vpop.f32.mrf.mxu0
    %v923 = vadd.f32 %v274, %v922
    %v924 = vpop.f32.mrf.mxu0
    %925 = vdwg.mxu0
    %926 = vmatpush.bf16.msra.mxu0 0
    %927 = vmatpush.bf16.msra.mxu0 0
    %928 = vmatpush.bf16.msra.mxu0 0
    %929 = vmatpush.bf16.msra.mxu0 0
    %930 = vmatpush.bf16.msra.mxu0 0
    %931 = vmatpush.bf16.msra.mxu0 0
    %932 = vmatpush.bf16.msra.mxu0 %v431
    %933 = vmatpush.bf16.msra.mxu0 %v430
    %934 = vmatmul.bf16.gmra.mxu0 %v859
    %v935 = vpop.f32.mrf.mxu0
    %v936 = vadd.f32 %v275, %v935
    %v937 = vpop.f32.mrf.mxu0
    %938 = vdwg.mxu0
    %939 = vmatpush.bf16.msra.mxu0 0
    %940 = vmatpush.bf16.msra.mxu0 0
    %941 = vmatpush.bf16.msra.mxu0 0
    %942 = vmatpush.bf16.msra.mxu0 0
    %943 = vmatpush.bf16.msra.mxu0 0
    %944 = vmatpush.bf16.msra.mxu0 0
    %945 = vmatpush.bf16.msra.mxu0 %v456
    %946 = vmatpush.bf16.msra.mxu0 %v455
    %947 = vmatmul.bf16.gmra.mxu0 %v859
    %v948 = vpop.f32.mrf.mxu0
    %v949 = vadd.f32 %v276, %v948
    %v950 = vpop.f32.mrf.mxu0
    %951 = vdwg.mxu0
    %952 = vmatpush.bf16.msra.mxu0 0
    %953 = vmatpush.bf16.msra.mxu0 0
    %954 = vmatpush.bf16.msra.mxu0 0
    %955 = vmatpush.bf16.msra.mxu0 0
    %956 = vmatpush.bf16.msra.mxu0 0
    %957 = vmatpush.bf16.msra.mxu0 0
    %958 = vmatpush.bf16.msra.mxu0 %v481
    %959 = vmatpush.bf16.msra.mxu0 %v480
    %960 = vmatmul.bf16.gmra.mxu0 %v859
    %v961 = vpop.f32.mrf.mxu0
    %v962 = vadd.f32 %v277, %v961
    %v963 = vpop.f32.mrf.mxu0
    %964 = vdwg.mxu0
    %965 = vmatpush.bf16.msra.mxu0 0
    %966 = vmatpush.bf16.msra.mxu0 0
    %967 = vmatpush.bf16.msra.mxu0 0
    %968 = vmatpush.bf16.msra.mxu0 0
    %969 = vmatpush.bf16.msra.mxu0 0
    %970 = vmatpush.bf16.msra.mxu0 0
    %971 = vmatpush.bf16.msra.mxu0 %v506
    %972 = vmatpush.bf16.msra.mxu0 %v505
    %973 = vmatmul.bf16.gmra.mxu0 %v859
    %v974 = vpop.f32.mrf.mxu0
    %v975 = vadd.f32 %v278, %v974
    %v976 = vpop.f32.mrf.mxu0
    %977 = vdwg.mxu0
    %978 = vmatpush.bf16.msra.mxu0 0
    %979 = vmatpush.bf16.msra.mxu0 0
    %980 = vmatpush.bf16.msra.mxu0 0
    %981 = vmatpush.bf16.msra.mxu0 0
    %982 = vmatpush.bf16.msra.mxu0 0
    %983 = vmatpush.bf16.msra.mxu0 0
    %984 = vmatpush.bf16.msra.mxu0 %v531
    %985 = vmatpush.bf16.msra.mxu0 %v530
    %986 = vmatmul.bf16.gmra.mxu0 %v859
    %v987 = vpop.f32.mrf.mxu0
    %v988 = vadd.f32 %v279, %v987
    %v989 = vpop.f32.mrf.mxu0
    %990 = vdwg.mxu0
    %991 = vmatpush.bf16.msra.mxu0 0
    %992 = vmatpush.bf16.msra.mxu0 0
    %993 = vmatpush.bf16.msra.mxu0 0
    %994 = vmatpush.bf16.msra.mxu0 0
    %995 = vmatpush.bf16.msra.mxu0 0
    %996 = vmatpush.bf16.msra.mxu0 0
    %997 = vmatpush.bf16.msra.mxu0 %v556
    %998 = vmatpush.bf16.msra.mxu0 %v555
    %999 = vmatmul.bf16.gmra.mxu0 %v859
    %v1000 = vpop.f32.mrf.mxu0
    %v1001 = vadd.f32 %v280, %v1000
    %v1002 = vpop.f32.mrf.mxu0
    %1003 = vdwg.mxu0
    %1004 = vmatpush.bf16.msra.mxu0 0
    %1005 = vmatpush.bf16.msra.mxu0 0
    %1006 = vmatpush.bf16.msra.mxu0 0
    %1007 = vmatpush.bf16.msra.mxu0 0
    %1008 = vmatpush.bf16.msra.mxu0 0
    %1009 = vmatpush.bf16.msra.mxu0 0
    %1010 = vmatpush.bf16.msra.mxu0 %v581
    %1011 = vmatpush.bf16.msra.mxu0 %v580
    %1012 = vmatmul.bf16.gmra.mxu0 %v859
    %v1013 = vpop.f32.mrf.mxu0
    %v1014 = vadd.f32 %v281, %v1013
    %v1015 = vpop.f32.mrf.mxu0
    %1016 = vdwg.mxu0
    %v1017 = vpack.c.bf16 %v871, %v871
    %v1018 = vpack.c.bf16 %v884, %v884
    %v1019 = vpack.c.bf16 %v897, %v897
    %v1020 = vpack.c.bf16 %v910, %v910
    %v1021 = vpack.c.bf16 %v923, %v923
    %v1022 = vpack.c.bf16 %v936, %v936
    %v1023 = vpack.c.bf16 %v949, %v949
    %v1024 = vpack.c.bf16 %v962, %v962
    %v1026 = vsel %vm605, %v1017, 0
    %v1029 = vsel %vm605, %v1021, 0
    %1031 = vmatpush.bf16.xpose.msra.mxu0 0
    %1032 = vmatpush.bf16.xpose.msra.mxu0 0
    %1033 = vmatpush.bf16.xpose.msra.mxu0 0
    %1034 = vmatpush.bf16.xpose.msra.mxu0 0
    %1035 = vmatpush.bf16.xpose.msra.mxu0 0
    %1036 = vmatpush.bf16.xpose.msra.mxu0 0
    %1037 = vmatpush.bf16.xpose.msra.mxu0 0
    %1038 = vmatpush.bf16.xpose.msra.mxu0 %v1029
    %1039 = vmatmul.bf16.gmra.mxu0 %v1026
    %v1040 = vpop.f32.mrf.mxu0
    %v1041 = vadd.f32 %v192, %v1040
    %v1042 = vpop.f32.mrf.mxu0
    %1043 = vdwg.mxu0
    %v1045 = vsel %vm605, %v1018, 0
    %v1048 = vsel %vm605, %v1022, 0
    %1050 = vmatpush.bf16.xpose.msra.mxu0 0
    %1051 = vmatpush.bf16.xpose.msra.mxu0 0
    %1052 = vmatpush.bf16.xpose.msra.mxu0 0
    %1053 = vmatpush.bf16.xpose.msra.mxu0 0
    %1054 = vmatpush.bf16.xpose.msra.mxu0 0
    %1055 = vmatpush.bf16.xpose.msra.mxu0 0
    %1056 = vmatpush.bf16.xpose.msra.mxu0 0
    %1057 = vmatpush.bf16.xpose.msra.mxu0 %v1048
    %1058 = vmatmul.bf16.gmra.mxu0 %v1045
    %v1059 = vpop.f32.mrf.mxu0
    %v1060 = vadd.f32 %v192, %v1059
    %v1061 = vpop.f32.mrf.mxu0
    %1062 = vdwg.mxu0
    %v1064 = vsel %vm605, %v1019, 0
    %v1067 = vsel %vm605, %v1023, 0
    %1069 = vmatpush.bf16.xpose.msra.mxu0 0
    %1070 = vmatpush.bf16.xpose.msra.mxu0 0
    %1071 = vmatpush.bf16.xpose.msra.mxu0 0
    %1072 = vmatpush.bf16.xpose.msra.mxu0 0
    %1073 = vmatpush.bf16.xpose.msra.mxu0 0
    %1074 = vmatpush.bf16.xpose.msra.mxu0 0
    %1075 = vmatpush.bf16.xpose.msra.mxu0 0
    %1076 = vmatpush.bf16.xpose.msra.mxu0 %v1067
    %1077 = vmatmul.bf16.gmra.mxu0 %v1064
    %v1078 = vpop.f32.mrf.mxu0
    %v1079 = vadd.f32 %v192, %v1078
    %v1080 = vpop.f32.mrf.mxu0
    %1081 = vdwg.mxu0
    %v1083 = vsel %vm605, %v1020, 0
    %v1086 = vsel %vm605, %v1024, 0
    %1088 = vmatpush.bf16.xpose.msra.mxu0 0
    %1089 = vmatpush.bf16.xpose.msra.mxu0 0
    %1090 = vmatpush.bf16.xpose.msra.mxu0 0
    %1091 = vmatpush.bf16.xpose.msra.mxu0 0
    %1092 = vmatpush.bf16.xpose.msra.mxu0 0
    %1093 = vmatpush.bf16.xpose.msra.mxu0 0
    %1094 = vmatpush.bf16.xpose.msra.mxu0 0
    %1095 = vmatpush.bf16.xpose.msra.mxu0 %v1086
    %1096 = vmatmul.bf16.gmra.mxu0 %v1083
    %v1097 = vpop.f32.mrf.mxu0
    %v1098 = vadd.f32 %v192, %v1097
    %v1099 = vpop.f32.mrf.mxu0
    %1100 = vdwg.mxu0
    %v1101 = vsel %vm605, %v1041, -inf
    %1102 = vmax.xlane.f32.xlu0 %v1101
    %v1103 = vpop.xlane.xlu0 %1102
    %v1104 = vsel %vm605, %v1060, -inf
    %1105 = vmax.xlane.f32.xlu0 %v1104
    %v1106 = vpop.xlane.xlu0 %1105
    %v1107 = vsel %vm605, %v1079, -inf
    %1108 = vmax.xlane.f32.xlu0 %v1107
    %v1109 = vpop.xlane.xlu0 %1108
    %v1110 = vsel %vm605, %v1098, -inf
    %1111 = vmax.xlane.f32.xlu0 %v1110
    %v1112 = vpop.xlane.xlu0 %1111
    %v1113 = vsub.f32 %v1041, %v1103
    %v1114 = vsub.f32 %v1060, %v1106
    %v1115 = vsub.f32 %v1079, %v1109
    %v1116 = vsub.f32 %v1098, %v1112
    %v1117 = vmul.f32 %v1113, 1.442695
    %v1118 = vpow.pop %v1117
    %v1119 = vmul.f32 %v1114, 1.442695
    %v1120 = vpow.pop %v1119
    %v1121 = vmul.f32 %v1115, 1.442695
    %v1122 = vpow.pop %v1121
    %v1123 = vmul.f32 %v1116, 1.442695
    %v1124 = vpow.pop %v1123
    %v1125 = vsel %vm605, %v1118, 0.0
    %1126 = vadd.xlane.f32.xlu0 %v1125
    %v1127 = vpop.xlane.xlu0 %1126
    %v1128 = vsel %vm605, %v1120, 0.0
    %1129 = vadd.xlane.f32.xlu0 %v1128
    %v1130 = vpop.xlane.xlu0 %1129
    %v1131 = vsel %vm605, %v1122, 0.0
    %1132 = vadd.xlane.f32.xlu0 %v1131
    %v1133 = vpop.xlane.xlu0 %1132
    %v1134 = vsel %vm605, %v1124, 0.0
    %1135 = vadd.xlane.f32.xlu0 %v1134
    %v1136 = vpop.xlane.xlu0 %1135
    %v1137 = vrcp.pop %v1127
    %v1138 = vrcp.pop %v1130
    %v1139 = vrcp.pop %v1133
    %v1140 = vrcp.pop %v1136
    %v1141 = vmul.f32 %v1118, %v1137
    %v1142 = vmul.f32 %v1120, %v1138
    %v1143 = vmul.f32 %v1122, %v1139
    %v1144 = vmul.f32 %v1124, %v1140
    %v1145 = vpack.c.bf16 %v1141, %v1141
    %v1146 = vpack.c.bf16 %v1142, %v1142
    %v1147 = vpack.c.bf16 %v1143, %v1143
    %v1148 = vpack.c.bf16 %v1144, %v1144
    %v1149 = vpack.c.bf16 %v975, %v975
    %v1150 = vpack.c.bf16 %v988, %v988
    %v1151 = vpack.c.bf16 %v1001, %v1001
    %v1152 = vpack.c.bf16 %v1014, %v1014
    %v1154 = vsel %vm605, %v1145, 0
    %v1157 = vsel %vm737, %v1149, 0
    %1159 = vmatpush.bf16.msra.mxu0 0
    %1160 = vmatpush.bf16.msra.mxu0 0
    %1161 = vmatpush.bf16.msra.mxu0 0
    %1162 = vmatpush.bf16.msra.mxu0 0
    %1163 = vmatpush.bf16.msra.mxu0 0
    %1164 = vmatpush.bf16.msra.mxu0 0
    %1165 = vmatpush.bf16.msra.mxu0 0
    %1166 = vmatpush.bf16.msra.mxu0 %v1157
    %1167 = vmatmul.bf16.gmra.mxu0 %v1154
    %v1168 = vpop.f32.mrf.mxu0
    %v1169 = vadd.f32 0.0, %v1168
    %v1170 = vpop.f32.mrf.mxu0
    %1171 = vdwg.mxu0
    %v1173 = vsel %vm605, %v1146, 0
    %v1176 = vsel %vm737, %v1150, 0
    %1178 = vmatpush.bf16.msra.mxu0 0
    %1179 = vmatpush.bf16.msra.mxu0 0
    %1180 = vmatpush.bf16.msra.mxu0 0
    %1181 = vmatpush.bf16.msra.mxu0 0
    %1182 = vmatpush.bf16.msra.mxu0 0
    %1183 = vmatpush.bf16.msra.mxu0 0
    %1184 = vmatpush.bf16.msra.mxu0 0
    %1185 = vmatpush.bf16.msra.mxu0 %v1176
    %1186 = vmatmul.bf16.gmra.mxu0 %v1173
    %v1187 = vpop.f32.mrf.mxu0
    %v1188 = vadd.f32 0.0, %v1187
    %v1189 = vpop.f32.mrf.mxu0
    %1190 = vdwg.mxu0
    %v1192 = vsel %vm605, %v1147, 0
    %v1195 = vsel %vm737, %v1151, 0
    %1197 = vmatpush.bf16.msra.mxu0 0
    %1198 = vmatpush.bf16.msra.mxu0 0
    %1199 = vmatpush.bf16.msra.mxu0 0
    %1200 = vmatpush.bf16.msra.mxu0 0
    %1201 = vmatpush.bf16.msra.mxu0 0
    %1202 = vmatpush.bf16.msra.mxu0 0
    %1203 = vmatpush.bf16.msra.mxu0 0
    %1204 = vmatpush.bf16.msra.mxu0 %v1195
    %1205 = vmatmul.bf16.gmra.mxu0 %v1192
    %v1206 = vpop.f32.mrf.mxu0
    %v1207 = vadd.f32 0.0, %v1206
    %v1208 = vpop.f32.mrf.mxu0
    %1209 = vdwg.mxu0
    %v1211 = vsel %vm605, %v1148, 0
    %v1214 = vsel %vm737, %v1152, 0
    %1216 = vmatpush.bf16.msra.mxu0 0
    %1217 = vmatpush.bf16.msra.mxu0 0
    %1218 = vmatpush.bf16.msra.mxu0 0
    %1219 = vmatpush.bf16.msra.mxu0 0
    %1220 = vmatpush.bf16.msra.mxu0 0
    %1221 = vmatpush.bf16.msra.mxu0 0
    %1222 = vmatpush.bf16.msra.mxu0 0
    %1223 = vmatpush.bf16.msra.mxu0 %v1214
    %1224 = vmatmul.bf16.gmra.mxu0 %v1211
    %v1225 = vpop.f32.mrf.mxu0
    %v1226 = vadd.f32 0.0, %v1225
    %v1227 = vpop.f32.mrf.mxu0
    %1228 = vdwg.mxu0
    %1230 = vrot.lane.b32.xlu0 %v1188, 8
    %v1231 = vpop.permute.xlu0 %1230
    %1234 = vrot.lane.b32.xlu0 %v1207, 16
    %v1235 = vpop.permute.xlu0 %1234
    %1238 = vrot.lane.b32.xlu0 %v1226, 24
    %v1239 = vpop.permute.xlu0 %1238
    %v1241 = vsel %vm605, %v1169, %v1231
    %v1242 = vsel %vm824, %v1241, %v1235
    %v1243 = vsel %vm826, %v1242, %v1239
    %v1244 = vpack.c.bf16 %v1243, %v1243
    %v1246 = vsel %vm126, %v1244, 0
    %1248 = vmatpush.bf16.msra.mxu0 0
    %1249 = vmatpush.bf16.msra.mxu0 0
    %1250 = vmatpush.bf16.msra.mxu0 0
    %1251 = vmatpush.bf16.msra.mxu0 0
    %1252 = vmatpush.bf16.msra.mxu0 0
    %1253 = vmatpush.bf16.msra.mxu0 0
    %1254 = vmatpush.bf16.msra.mxu0 %v838
    %1255 = vmatpush.bf16.msra.mxu0 %v837
    %1256 = vmatmul.bf16.gmra.mxu0 %v1246
    %v1257 = vpop.f32.mrf.mxu0
    %v1258 = vadd.f32 0.0, %v1257
    %v1259 = vpop.f32.mrf.mxu0
    %1260 = vdwg.mxu0
    %v1261 = vld [vmem:[%s9] sm:$0x1]
    %v1263 = vperm.slane %v1261, 0
    %v1265 = vadd.f32 %v854, %v1263
    %v1266 = vadd.f32 %v1258, %v1263
    %v1267 = vadd.f32 %v186, %v1265
    %v1268 = vadd.f32 %v187, %v1266
    %v1269 = vld [vmem:[%s10] sm:$0x1]
    %v1270 = vld [vmem:[%s11] sm:$0x1]
    %v1271 = vsel %vm126, %v1267, 0.0
    %1272 = vadd.xlane.f32.xlu0 %v1271
    %v1273 = vpop.xlane.xlu0 %1272
    %v1274 = vsel %vm126, %v1268, 0.0
    %1275 = vadd.xlane.f32.xlu0 %v1274
    %v1276 = vpop.xlane.xlu0 %1275
    %v1277 = vmul.f32 %v1273, %v139
    %v1278 = vmul.f32 %v1276, %v139
    %v1279 = vsub.f32 %v1267, %v1277
    %v1280 = vsub.f32 %v1268, %v1278
    %v1281 = vmul.f32 %v1279, %v1279
    %v1282 = vmul.f32 %v1280, %v1280
    %v1283 = vsel %vm126, %v1281, 0.0
    %1284 = vadd.xlane.f32.xlu0 %v1283
    %v1285 = vpop.xlane.xlu0 %1284
    %v1286 = vsel %vm126, %v1282, 0.0
    %1287 = vadd.xlane.f32.xlu0 %v1286
    %v1288 = vpop.xlane.xlu0 %1287
    %v1289 = vmul.f32 %v1285, %v139
    %v1290 = vmul.f32 %v1288, %v139
    %v1291 = vadd.f32 %v1289, 1e-12
    %v1292 = vadd.f32 %v1290, 1e-12
    %v1293 = vrsqrt.pop %v1291
    %v1294 = vmul.f32 %v1293, %v1291
    %v1295 = vmul.f32 %v1294, %v1293
    %v1296 = vmul.f32 0.5, %v1295
    %v1297 = vsub.f32 1.5, %v1296
    %v1298 = vmul.f32 %v1293, %v1297
    %vm1299 = vweird.f32 %v1291
    %vm1300 = vweird.f32 %v1293
    %vm1301 = vmor %vm1299, %vm1300
    %v1302 = vsel %vm1301, %v1293, %v1298
    %v1303 = vrsqrt.pop %v1292
    %v1304 = vmul.f32 %v1303, %v1292
    %v1305 = vmul.f32 %v1304, %v1303
    %v1306 = vmul.f32 0.5, %v1305
    %v1307 = vsub.f32 1.5, %v1306
    %v1308 = vmul.f32 %v1303, %v1307
    %vm1309 = vweird.f32 %v1292
    %vm1310 = vweird.f32 %v1303
    %vm1311 = vmor %vm1309, %vm1310
    %v1312 = vsel %vm1311, %v1303, %v1308
    %v1313 = vmul.f32 %v1279, %v1302
    %v1314 = vmul.f32 %v1280, %v1312
    %v1316 = vperm.slane %v1269, 0
    %v1318 = vmul.f32 %v1313, %v1316
    %v1319 = vmul.f32 %v1314, %v1316
    %v1321 = vperm.slane %v1270, 0
    %v1323 = vadd.f32 %v1318, %v1321
    %v1324 = vadd.f32 %v1319, %v1321
    %v1325 = vpack.c.bf16 %v1324, %v1323
    %v1326 = vld [vmem:[%s12] sm:$0xf]
    %v1327 = vld [vmem:[%s12 + $0x4] sm:$0xf]
    %v1328 = vld [vmem:[%s12 + $0x8] sm:$0xf]
    %v1329 = vld [vmem:[%s12 + $0xc] sm:$0xf]
    %v1330 = vld [vmem:[%s13] sm:$0x1]
    %v1332 = vperm.slane %v1330, 0
    %v1338 = vunpack.c.l.b16 %v1326
    %v1339 = vunpack.c.l.b16 %v1327
    %v1340 = vunpack.c.l.b16 %v1328
    %v1341 = vunpack.c.l.b16 %v1329
    %v1342 = vpack.c.b16 %v1339, %v1338
    %v1343 = vpack.c.b16 %v1341, %v1340
    %v1347 = vsel %vm126, %v1325, 0
    %1349 = vmatpush.bf16.msra.mxu0 0
    %1350 = vmatpush.bf16.msra.mxu0 0
    %1351 = vmatpush.bf16.msra.mxu0 0
    %1352 = vmatpush.bf16.msra.mxu0 0
    %1353 = vmatpush.bf16.msra.mxu0 0
    %1354 = vmatpush.bf16.msra.mxu0 0
    %1355 = vmatpush.bf16.msra.mxu0 %v1343
    %1356 = vmatpush.bf16.msra.mxu0 %v1342
    %1357 = vmatmul.bf16.gmra.mxu0 %v1347
    %v1358 = vpop.f32.mrf.mxu0
    %v1359 = vadd.f32 %v1332, %v1358
    %v1360 = vpop.f32.mrf.mxu0
    %v1361 = vadd.f32 %v1332, %v1360
    %1362 = vdwg.mxu0
    %v1363 = vmul.f32 %v1359, 0.5
    %v1364 = vmul.f32 %v1361, 0.5
    %v1365 = vmul.f32 %v1359, 0.70710677
    %v1366 = vmul.f32 %v1361, 0.70710677
    %v1367 = vand.u32 2147483647, %v1365
    %v1368 = vand.u32 2147483647, %v1366
    %v1369 = vmul.f32 %v1367, 0.3275911
    %v1370 = vmul.f32 %v1368, 0.3275911
    %v1371 = vadd.f32 %v1369, 1.0
    %v1372 = vadd.f32 %v1370, 1.0
    %v1373 = vrcp.pop %v1371
    %v1374 = vmul.f32 %v1371, %v1373
    %v1375 = vsub.f32 1.0, %v1374
    %v1376 = vmul.f32 %v1373, %v1375
    %v1377 = vadd.f32 %v1373, %v1376
    %vm1378 = vweird.f32 %v1371
    %vm1379 = vweird.f32 %v1373
    %vm1380 = vmor %vm1378, %vm1379
    %v1381 = vsel %vm1380, %v1373, %v1377
    %v1382 = vand.u32 2147483647, %v1371
    %vm1383 = vcmp.eq.f32.partialorder %v1382, 8.507059e+37
    %v1384 = vand.u32 %v1371, 2147483648
    %v1385 = vor.u32 1.1754944e-38, %v1384
    %v1386 = vsel %vm1383, %v1385, %v1381
    %v1387 = vmul.f32 1.0, %v1386
    %v1388 = vrcp.pop %v1372
    %v1389 = vmul.f32 %v1372, %v1388
    %v1390 = vsub.f32 1.0, %v1389
    %v1391 = vmul.f32 %v1388, %v1390
    %v1392 = vadd.f32 %v1388, %v1391
    %vm1393 = vweird.f32 %v1372
    %vm1394 = vweird.f32 %v1388
    %vm1395 = vmor %vm1393, %vm1394
    %v1396 = vsel %vm1395, %v1388, %v1392
    %v1397 = vand.u32 2147483647, %v1372
    %vm1398 = vcmp.eq.f32.partialorder %v1397, 8.507059e+37
    %v1399 = vand.u32 %v1372, 2147483648
    %v1400 = vor.u32 1.1754944e-38, %v1399
    %v1401 = vsel %vm1398, %v1400, %v1396
    %v1402 = vmul.f32 1.0, %v1401
    %v1403 = vmul.f32 %v1387, 1.0614054
    %v1404 = vmul.f32 %v1402, 1.0614054
    %v1405 = vadd.f32 %v1403, -1.4531521
    %v1406 = vadd.f32 %v1404, -1.4531521
    %v1407 = vmul.f32 %v1405, %v1387
    %v1408 = vmul.f32 %v1406, %v1402
    %v1409 = vadd.f32 %v1407, 1.4214138
    %v1410 = vadd.f32 %v1408, 1.4214138
    %v1411 = vmul.f32 %v1409, %v1387
    %v1412 = vmul.f32 %v1410, %v1402
    %v1413 = vadd.f32 %v1411, -0.28449672
    %v1414 = vadd.f32 %v1412, -0.28449672
    %v1415 = vmul.f32 %v1413, %v1387
    %v1416 = vmul.f32 %v1414, %v1402
    %v1417 = vadd.f32 %v1415, 0.2548296
    %v1418 = vadd.f32 %v1416, 0.2548296
    %v1419 = vmul.f32 %v1417, %v1387
    %v1420 = vmul.f32 %v1418, %v1402
    %v1421 = vsub.f32 0.0, %v1367
    %v1422 = vsub.f32 0.0, %v1368
    %v1423 = vmul.f32 %v1421, %v1367
    %v1424 = vmul.f32 %v1422, %v1368
    %v1425 = vmul.f32 %v1423, 1.442695
    %v1426 = vpow.pop %v1425
    %v1427 = vmul.f32 %v1424, 1.442695
    %v1428 = vpow.pop %v1427
    %v1429 = vmul.f32 %v1419, %v1426
    %v1430 = vmul.f32 %v1420, %v1428
    %v1431 = vsub.f32 1.0, %v1429
    %v1432 = vsub.f32 1.0, %v1430
    %vm1433 = vcmp.ge.f32.partialorder %v1365, 0.0
    %vm1434 = vcmp.ge.f32.partialorder %v1366, 0.0
    %v1435 = vsub.f32 0.0, %v1431
    %v1436 = vsub.f32 0.0, %v1432
    %v1437 = vsel %vm1433, %v1431, %v1435
    %v1438 = vsel %vm1434, %v1432, %v1436
    %v1439 = vadd.f32 %v1437, 1.0
    %v1440 = vadd.f32 %v1438, 1.0
    %v1441 = vmul.f32 %v1363, %v1439
    %v1442 = vmul.f32 %v1364, %v1440
    %v1443 = vpack.c.bf16 %v1442, %v1441
    %v1444 = vld [vmem:[%s14] sm:$0xf]
    %v1445 = vld [vmem:[%s14 + $0x4] sm:$0xf]
    %v1446 = vld [vmem:[%s14 + $0x8] sm:$0xf]
    %v1447 = vld [vmem:[%s14 + $0xc] sm:$0xf]
    %v1448 = vld [vmem:[%s14 + $0x10] sm:$0xf]
    %v1449 = vld [vmem:[%s14 + $0x14] sm:$0xf]
    %v1450 = vld [vmem:[%s14 + $0x18] sm:$0xf]
    %v1451 = vld [vmem:[%s14 + $0x1c] sm:$0xf]
    %v1460 = vunpack.c.l.b16 %v1444
    %v1461 = vunpack.c.l.b16 %v1445
    %v1462 = vunpack.c.l.b16 %v1446
    %v1463 = vunpack.c.l.b16 %v1447
    %v1464 = vunpack.c.l.b16 %v1448
    %v1465 = vunpack.c.l.b16 %v1449
    %v1466 = vunpack.c.l.b16 %v1450
    %v1467 = vunpack.c.l.b16 %v1451
    %v1468 = vpack.c.b16 %v1461, %v1460
    %v1469 = vpack.c.b16 %v1463, %v1462
    %v1470 = vpack.c.b16 %v1465, %v1464
    %v1471 = vpack.c.b16 %v1467, %v1466
    %vm1476 = vcmask 523264
    %v1478 = vsel %vm1476, %v1443, 0
    %1480 = vmatpush.bf16.msra.mxu0 0
    %1481 = vmatpush.bf16.msra.mxu0 0
    %1482 = vmatpush.bf16.msra.mxu0 0
    %1483 = vmatpush.bf16.msra.mxu0 0
    %1484 = vmatpush.bf16.msra.mxu0 %v1471
    %1485 = vmatpush.bf16.msra.mxu0 %v1470
    %1486 = vmatpush.bf16.msra.mxu0 %v1469
    %1487 = vmatpush.bf16.msra.mxu0 %v1468
    %1488 = vmatmul.bf16.gmra.mxu0 %v1478
    %v1489 = vpop.f32.mrf.mxu0
    %v1490 = vadd.f32 0.0, %v1489
    %v1491 = vpop.f32.mrf.mxu0
    %v1492 = vadd.f32 0.0, %v1491
    %1493 = vdwg.mxu0
    %v1494 = vadd.f32 %v1323, %v1490
    %v1495 = vadd.f32 %v1324, %v1492
    %v1496 = vld [vmem:[%s15] sm:$0x1]
    %v1498 = vperm.slane %v1496, 0
    %v1500 = vadd.f32 %v1494, %v1498
    %v1501 = vadd.f32 %v1495, %v1498
    %v1502 = vld [vmem:[%s16] sm:$0x1]
    %v1503 = vld [vmem:[%s17] sm:$0x1]
    %v1504 = vsel %vm126, %v1500, 0.0
    %1505 = vadd.xlane.f32.xlu0 %v1504
    %v1506 = vpop.xlane.xlu0 %1505
    %v1507 = vsel %vm126, %v1501, 0.0
    %1508 = vadd.xlane.f32.xlu0 %v1507
    %v1509 = vpop.xlane.xlu0 %1508
    %v1510 = vmul.f32 %v1506, %v139
    %v1511 = vmul.f32 %v1509, %v139
    %v1512 = vsub.f32 %v1500, %v1510
    %v1513 = vsub.f32 %v1501, %v1511
    %v1514 = vmul.f32 %v1512, %v1512
    %v1515 = vmul.f32 %v1513, %v1513
    %v1516 = vsel %vm126, %v1514, 0.0
    %1517 = vadd.xlane.f32.xlu0 %v1516
    %v1518 = vpop.xlane.xlu0 %1517
    %v1519 = vsel %vm126, %v1515, 0.0
    %1520 = vadd.xlane.f32.xlu0 %v1519
    %v1521 = vpop.xlane.xlu0 %1520
    %v1522 = vmul.f32 %v1518, %v139
    %v1523 = vmul.f32 %v1521, %v139
    %v1524 = vadd.f32 %v1522, 1e-12
    %v1525 = vadd.f32 %v1523, 1e-12
    %v1526 = vrsqrt.pop %v1524
    %v1527 = vmul.f32 %v1526, %v1524
    %v1528 = vmul.f32 %v1527, %v1526
    %v1529 = vmul.f32 0.5, %v1528
    %v1530 = vsub.f32 1.5, %v1529
    %v1531 = vmul.f32 %v1526, %v1530
    %vm1532 = vweird.f32 %v1524
    %vm1533 = vweird.f32 %v1526
    %vm1534 = vmor %vm1532, %vm1533
    %v1535 = vsel %vm1534, %v1526, %v1531
    %v1536 = vrsqrt.pop %v1525
    %v1537 = vmul.f32 %v1536, %v1525
    %v1538 = vmul.f32 %v1537, %v1536
    %v1539 = vmul.f32 0.5, %v1538
    %v1540 = vsub.f32 1.5, %v1539
    %v1541 = vmul.f32 %v1536, %v1540
    %vm1542 = vweird.f32 %v1525
    %vm1543 = vweird.f32 %v1536
    %vm1544 = vmor %vm1542, %vm1543
    %v1545 = vsel %vm1544, %v1536, %v1541
    %v1546 = vmul.f32 %v1512, %v1535
    %v1547 = vmul.f32 %v1513, %v1545
    %v1549 = vperm.slane %v1502, 0
    %v1551 = vmul.f32 %v1546, %v1549
    %v1552 = vmul.f32 %v1547, %v1549
    %v1554 = vperm.slane %v1503, 0
    %v1556 = vadd.f32 %v1551, %v1554
    %v1557 = vadd.f32 %v1552, %v1554
    %s1558 = scalar_lea.vmem %s6, 192
    %v1559 = vld [vmem:[%s1558] sm:$0xf]
    %v1560 = vld [vmem:[%s1558 + $0x4] sm:$0xf]
    %v1561 = vld [vmem:[%s1558 + $0x8] sm:$0xf]
    %v1562 = vld [vmem:[%s1558 + $0xc] sm:$0xf]
    %v1563 = vld [vmem:[%s1558 + $0x10] sm:$0xf]
    %v1564 = vld [vmem:[%s1558 + $0x14] sm:$0xf]
    %v1565 = vld [vmem:[%s1558 + $0x18] sm:$0xf]
    %v1566 = vld [vmem:[%s1558 + $0x1c] sm:$0xf]
    %v1567 = vld [vmem:[%s1558 + $0x20] sm:$0xf]
    %v1568 = vld [vmem:[%s1558 + $0x24] sm:$0xf]
    %v1569 = vld [vmem:[%s1558 + $0x28] sm:$0xf]
    %v1570 = vld [vmem:[%s1558 + $0x2c] sm:$0xf]
    %v1571 = vld [vmem:[%s1558 + $0x30] sm:$0xf]
    %v1572 = vld [vmem:[%s1558 + $0x34] sm:$0xf]
    %v1573 = vld [vmem:[%s1558 + $0x38] sm:$0xf]
    %v1574 = vld [vmem:[%s1558 + $0x3c] sm:$0xf]
    %v1575 = vld [vmem:[%s1558 + $0x40] sm:$0xf]
    %v1576 = vld [vmem:[%s1558 + $0x44] sm:$0xf]
    %v1577 = vld [vmem:[%s1558 + $0x48] sm:$0xf]
    %v1578 = vld [vmem:[%s1558 + $0x4c] sm:$0xf]
    %v1579 = vld [vmem:[%s1558 + $0x50] sm:$0xf]
    %v1580 = vld [vmem:[%s1558 + $0x54] sm:$0xf]
    %v1581 = vld [vmem:[%s1558 + $0x58] sm:$0xf]
    %v1582 = vld [vmem:[%s1558 + $0x5c] sm:$0xf]
    %v1583 = vld [vmem:[%s1558 + $0x60] sm:$0xf]
    %v1584 = vld [vmem:[%s1558 + $0x64] sm:$0xf]
    %v1585 = vld [vmem:[%s1558 + $0x68] sm:$0xf]
    %v1586 = vld [vmem:[%s1558 + $0x6c] sm:$0xf]
    %v1587 = vld [vmem:[%s1558 + $0x70] sm:$0xf]
    %v1588 = vld [vmem:[%s1558 + $0x74] sm:$0xf]
    %v1589 = vld [vmem:[%s1558 + $0x78] sm:$0xf]
    %v1590 = vld [vmem:[%s1558 + $0x7c] sm:$0xf]
    %v1591 = vld [vmem:[%s1558 + $0x80] sm:$0xf]
    %v1592 = vld [vmem:[%s1558 + $0x84] sm:$0xf]
    %v1593 = vld [vmem:[%s1558 + $0x88] sm:$0xf]
    %v1594 = vld [vmem:[%s1558 + $0x8c] sm:$0xf]
    %v1595 = vld [vmem:[%s1558 + $0x90] sm:$0xf]
    %v1596 = vld [vmem:[%s1558 + $0x94] sm:$0xf]
    %v1597 = vld [vmem:[%s1558 + $0x98] sm:$0xf]
    %v1598 = vld [vmem:[%s1558 + $0x9c] sm:$0xf]
    %v1599 = vld [vmem:[%s1558 + $0xa0] sm:$0xf]
    %v1600 = vld [vmem:[%s1558 + $0xa4] sm:$0xf]
    %v1601 = vld [vmem:[%s1558 + $0xa8] sm:$0xf]
    %v1602 = vld [vmem:[%s1558 + $0xac] sm:$0xf]
    %v1603 = vld [vmem:[%s1558 + $0xb0] sm:$0xf]
    %v1604 = vld [vmem:[%s1558 + $0xb4] sm:$0xf]
    %v1605 = vld [vmem:[%s1558 + $0xb8] sm:$0xf]
    %v1606 = vld [vmem:[%s1558 + $0xbc] sm:$0xf]
    %s1607 = scalar_lea.vmem %s7, 12
    %v1608 = vld [vmem:[%s1607] sm:$0x1]
    %v1609 = vld [vmem:[%s1607 + $0x1] sm:$0x1]
    %v1610 = vld [vmem:[%s1607 + $0x2] sm:$0x1]
    %v1611 = vld [vmem:[%s1607 + $0x3] sm:$0x1]
    %v1612 = vld [vmem:[%s1607 + $0x4] sm:$0x1]
    %v1613 = vld [vmem:[%s1607 + $0x5] sm:$0x1]
    %v1614 = vld [vmem:[%s1607 + $0x6] sm:$0x1]
    %v1615 = vld [vmem:[%s1607 + $0x7] sm:$0x1]
    %v1616 = vld [vmem:[%s1607 + $0x8] sm:$0x1]
    %v1617 = vld [vmem:[%s1607 + $0x9] sm:$0x1]
    %v1618 = vld [vmem:[%s1607 + $0xa] sm:$0x1]
    %v1619 = vld [vmem:[%s1607 + $0xb] sm:$0x1]
    %s1620 = scalar_lea.vmem %s8, 16
    %v1621 = vld [vmem:[%s1620] sm:$0xf]
    %v1622 = vld [vmem:[%s1620 + $0x4] sm:$0xf]
    %v1623 = vld [vmem:[%s1620 + $0x8] sm:$0xf]
    %v1624 = vld [vmem:[%s1620 + $0xc] sm:$0xf]
    %v1625 = vpack.c.bf16 %v1556, %v1556
    %v1638 = vperm.slane %v1608, 0
    %v1639 = vperm.slane %v1609, 0
    %v1640 = vperm.slane %v1610, 0
    %v1641 = vperm.slane %v1611, 0
    %v1642 = vperm.slane %v1612, 0
    %v1643 = vperm.slane %v1613, 0
    %v1644 = vperm.slane %v1614, 0
    %v1645 = vperm.slane %v1615, 0
    %v1646 = vperm.slane %v1616, 0
    %v1647 = vperm.slane %v1617, 0
    %v1648 = vperm.slane %v1618, 0
    %v1649 = vperm.slane %v1619, 0
    %v1666 = vunpack.c.l.b16 %v1559
    %v1667 = vunpack.c.l.b16 %v1560
    %v1668 = vunpack.c.l.b16 %v1561
    %v1669 = vunpack.c.l.b16 %v1562
    %v1670 = vpack.c.b16 %v1667, %v1666
    %v1671 = vpack.c.b16 %v1669, %v1668
    %v1675 = vsel %vm126, %v1625, 0
    %1677 = vmatpush.bf16.msra.mxu0 0
    %1678 = vmatpush.bf16.msra.mxu0 0
    %1679 = vmatpush.bf16.msra.mxu0 0
    %1680 = vmatpush.bf16.msra.mxu0 0
    %1681 = vmatpush.bf16.msra.mxu0 0
    %1682 = vmatpush.bf16.msra.mxu0 0
    %1683 = vmatpush.bf16.msra.mxu0 %v1671
    %1684 = vmatpush.bf16.msra.mxu0 %v1670
    %1685 = vmatmul.bf16.gmra.mxu0 %v1675
    %v1686 = vpop.f32.mrf.mxu0
    %v1687 = vadd.f32 %v1638, %v1686
    %v1688 = vpop.f32.mrf.mxu0
    %1689 = vdwg.mxu0
    %v1694 = vunpack.c.l.b16 %v1563
    %v1695 = vunpack.c.l.b16 %v1564
    %v1696 = vunpack.c.l.b16 %v1565
    %v1697 = vunpack.c.l.b16 %v1566
    %v1698 = vpack.c.b16 %v1695, %v1694
    %v1699 = vpack.c.b16 %v1697, %v1696
    %1702 = vmatpush.bf16.msra.mxu0 0
    %1703 = vmatpush.bf16.msra.mxu0 0
    %1704 = vmatpush.bf16.msra.mxu0 0
    %1705 = vmatpush.bf16.msra.mxu0 0
    %1706 = vmatpush.bf16.msra.mxu0 0
    %1707 = vmatpush.bf16.msra.mxu0 0
    %1708 = vmatpush.bf16.msra.mxu0 %v1699
    %1709 = vmatpush.bf16.msra.mxu0 %v1698
    %1710 = vmatmul.bf16.gmra.mxu0 %v1675
    %v1711 = vpop.f32.mrf.mxu0
    %v1712 = vadd.f32 %v1639, %v1711
    %v1713 = vpop.f32.mrf.mxu0
    %1714 = vdwg.mxu0
    %v1719 = vunpack.c.l.b16 %v1567
    %v1720 = vunpack.c.l.b16 %v1568
    %v1721 = vunpack.c.l.b16 %v1569
    %v1722 = vunpack.c.l.b16 %v1570
    %v1723 = vpack.c.b16 %v1720, %v1719
    %v1724 = vpack.c.b16 %v1722, %v1721
    %1727 = vmatpush.bf16.msra.mxu0 0
    %1728 = vmatpush.bf16.msra.mxu0 0
    %1729 = vmatpush.bf16.msra.mxu0 0
    %1730 = vmatpush.bf16.msra.mxu0 0
    %1731 = vmatpush.bf16.msra.mxu0 0
    %1732 = vmatpush.bf16.msra.mxu0 0
    %1733 = vmatpush.bf16.msra.mxu0 %v1724
    %1734 = vmatpush.bf16.msra.mxu0 %v1723
    %1735 = vmatmul.bf16.gmra.mxu0 %v1675
    %v1736 = vpop.f32.mrf.mxu0
    %v1737 = vadd.f32 %v1640, %v1736
    %v1738 = vpop.f32.mrf.mxu0
    %1739 = vdwg.mxu0
    %v1744 = vunpack.c.l.b16 %v1571
    %v1745 = vunpack.c.l.b16 %v1572
    %v1746 = vunpack.c.l.b16 %v1573
    %v1747 = vunpack.c.l.b16 %v1574
    %v1748 = vpack.c.b16 %v1745, %v1744
    %v1749 = vpack.c.b16 %v1747, %v1746
    %1752 = vmatpush.bf16.msra.mxu0 0
    %1753 = vmatpush.bf16.msra.mxu0 0
    %1754 = vmatpush.bf16.msra.mxu0 0
    %1755 = vmatpush.bf16.msra.mxu0 0
    %1756 = vmatpush.bf16.msra.mxu0 0
    %1757 = vmatpush.bf16.msra.mxu0 0
    %1758 = vmatpush.bf16.msra.mxu0 %v1749
    %1759 = vmatpush.bf16.msra.mxu0 %v1748
    %1760 = vmatmul.bf16.gmra.mxu0 %v1675
    %v1761 = vpop.f32.mrf.mxu0
    %v1762 = vadd.f32 %v1641, %v1761
    %v1763 = vpop.f32.mrf.mxu0
    %1764 = vdwg.mxu0
    %v1769 = vunpack.c.l.b16 %v1575
    %v1770 = vunpack.c.l.b16 %v1576
    %v1771 = vunpack.c.l.b16 %v1577
    %v1772 = vunpack.c.l.b16 %v1578
    %v1773 = vpack.c.b16 %v1770, %v1769
    %v1774 = vpack.c.b16 %v1772, %v1771
    %1777 = vmatpush.bf16.msra.mxu0 0
    %1778 = vmatpush.bf16.msra.mxu0 0
    %1779 = vmatpush.bf16.msra.mxu0 0
    %1780 = vmatpush.bf16.msra.mxu0 0
    %1781 = vmatpush.bf16.msra.mxu0 0
    %1782 = vmatpush.bf16.msra.mxu0 0
    %1783 = vmatpush.bf16.msra.mxu0 %v1774
    %1784 = vmatpush.bf16.msra.mxu0 %v1773
    %1785 = vmatmul.bf16.gmra.mxu0 %v1675
    %v1786 = vpop.f32.mrf.mxu0
    %v1787 = vadd.f32 %v1642, %v1786
    %v1788 = vpop.f32.mrf.mxu0
    %1789 = vdwg.mxu0
    %v1794 = vunpack.c.l.b16 %v1579
    %v1795 = vunpack.c.l.b16 %v1580
    %v1796 = vunpack.c.l.b16 %v1581
    %v1797 = vunpack.c.l.b16 %v1582
    %v1798 = vpack.c.b16 %v1795, %v1794
    %v1799 = vpack.c.b16 %v1797, %v1796
    %1802 = vmatpush.bf16.msra.mxu0 0
    %1803 = vmatpush.bf16.msra.mxu0 0
    %1804 = vmatpush.bf16.msra.mxu0 0
    %1805 = vmatpush.bf16.msra.mxu0 0
    %1806 = vmatpush.bf16.msra.mxu0 0
    %1807 = vmatpush.bf16.msra.mxu0 0
    %1808 = vmatpush.bf16.msra.mxu0 %v1799
    %1809 = vmatpush.bf16.msra.mxu0 %v1798
    %1810 = vmatmul.bf16.gmra.mxu0 %v1675
    %v1811 = vpop.f32.mrf.mxu0
    %v1812 = vadd.f32 %v1643, %v1811
    %v1813 = vpop.f32.mrf.mxu0
    %1814 = vdwg.mxu0
    %v1819 = vunpack.c.l.b16 %v1583
    %v1820 = vunpack.c.l.b16 %v1584
    %v1821 = vunpack.c.l.b16 %v1585
    %v1822 = vunpack.c.l.b16 %v1586
    %v1823 = vpack.c.b16 %v1820, %v1819
    %v1824 = vpack.c.b16 %v1822, %v1821
    %1827 = vmatpush.bf16.msra.mxu0 0
    %1828 = vmatpush.bf16.msra.mxu0 0
    %1829 = vmatpush.bf16.msra.mxu0 0
    %1830 = vmatpush.bf16.msra.mxu0 0
    %1831 = vmatpush.bf16.msra.mxu0 0
    %1832 = vmatpush.bf16.msra.mxu0 0
    %1833 = vmatpush.bf16.msra.mxu0 %v1824
    %1834 = vmatpush.bf16.msra.mxu0 %v1823
    %1835 = vmatmul.bf16.gmra.mxu0 %v1675
    %v1836 = vpop.f32.mrf.mxu0
    %v1837 = vadd.f32 %v1644, %v1836
    %v1838 = vpop.f32.mrf.mxu0
    %1839 = vdwg.mxu0
    %v1844 = vunpack.c.l.b16 %v1587
    %v1845 = vunpack.c.l.b16 %v1588
    %v1846 = vunpack.c.l.b16 %v1589
    %v1847 = vunpack.c.l.b16 %v1590
    %v1848 = vpack.c.b16 %v1845, %v1844
    %v1849 = vpack.c.b16 %v1847, %v1846
    %1852 = vmatpush.bf16.msra.mxu0 0
    %1853 = vmatpush.bf16.msra.mxu0 0
    %1854 = vmatpush.bf16.msra.mxu0 0
    %1855 = vmatpush.bf16.msra.mxu0 0
    %1856 = vmatpush.bf16.msra.mxu0 0
    %1857 = vmatpush.bf16.msra.mxu0 0
    %1858 = vmatpush.bf16.msra.mxu0 %v1849
    %1859 = vmatpush.bf16.msra.mxu0 %v1848
    %1860 = vmatmul.bf16.gmra.mxu0 %v1675
    %v1861 = vpop.f32.mrf.mxu0
    %v1862 = vadd.f32 %v1645, %v1861
    %v1863 = vpop.f32.mrf.mxu0
    %1864 = vdwg.mxu0
    %v1869 = vunpack.c.l.b16 %v1591
    %v1870 = vunpack.c.l.b16 %v1592
    %v1871 = vunpack.c.l.b16 %v1593
    %v1872 = vunpack.c.l.b16 %v1594
    %v1873 = vpack.c.b16 %v1870, %v1869
    %v1874 = vpack.c.b16 %v1872, %v1871
    %1877 = vmatpush.bf16.msra.mxu0 0
    %1878 = vmatpush.bf16.msra.mxu0 0
    %1879 = vmatpush.bf16.msra.mxu0 0
    %1880 = vmatpush.bf16.msra.mxu0 0
    %1881 = vmatpush.bf16.msra.mxu0 0
    %1882 = vmatpush.bf16.msra.mxu0 0
    %1883 = vmatpush.bf16.msra.mxu0 %v1874
    %1884 = vmatpush.bf16.msra.mxu0 %v1873
    %1885 = vmatmul.bf16.gmra.mxu0 %v1675
    %v1886 = vpop.f32.mrf.mxu0
    %v1887 = vadd.f32 %v1646, %v1886
    %v1888 = vpop.f32.mrf.mxu0
    %1889 = vdwg.mxu0
    %v1894 = vunpack.c.l.b16 %v1595
    %v1895 = vunpack.c.l.b16 %v1596
    %v1896 = vunpack.c.l.b16 %v1597
    %v1897 = vunpack.c.l.b16 %v1598
    %v1898 = vpack.c.b16 %v1895, %v1894
    %v1899 = vpack.c.b16 %v1897, %v1896
    %1902 = vmatpush.bf16.msra.mxu0 0
    %1903 = vmatpush.bf16.msra.mxu0 0
    %1904 = vmatpush.bf16.msra.mxu0 0
    %1905 = vmatpush.bf16.msra.mxu0 0
    %1906 = vmatpush.bf16.msra.mxu0 0
    %1907 = vmatpush.bf16.msra.mxu0 0
    %1908 = vmatpush.bf16.msra.mxu0 %v1899
    %1909 = vmatpush.bf16.msra.mxu0 %v1898
    %1910 = vmatmul.bf16.gmra.mxu0 %v1675
    %v1911 = vpop.f32.mrf.mxu0
    %v1912 = vadd.f32 %v1647, %v1911
    %v1913 = vpop.f32.mrf.mxu0
    %1914 = vdwg.mxu0
    %v1919 = vunpack.c.l.b16 %v1599
    %v1920 = vunpack.c.l.b16 %v1600
    %v1921 = vunpack.c.l.b16 %v1601
    %v1922 = vunpack.c.l.b16 %v1602
    %v1923 = vpack.c.b16 %v1920, %v1919
    %v1924 = vpack.c.b16 %v1922, %v1921
    %1927 = vmatpush.bf16.msra.mxu0 0
    %1928 = vmatpush.bf16.msra.mxu0 0
    %1929 = vmatpush.bf16.msra.mxu0 0
    %1930 = vmatpush.bf16.msra.mxu0 0
    %1931 = vmatpush.bf16.msra.mxu0 0
    %1932 = vmatpush.bf16.msra.mxu0 0
    %1933 = vmatpush.bf16.msra.mxu0 %v1924
    %1934 = vmatpush.bf16.msra.mxu0 %v1923
    %1935 = vmatmul.bf16.gmra.mxu0 %v1675
    %v1936 = vpop.f32.mrf.mxu0
    %v1937 = vadd.f32 %v1648, %v1936
    %v1938 = vpop.f32.mrf.mxu0
    %1939 = vdwg.mxu0
    %v1944 = vunpack.c.l.b16 %v1603
    %v1945 = vunpack.c.l.b16 %v1604
    %v1946 = vunpack.c.l.b16 %v1605
    %v1947 = vunpack.c.l.b16 %v1606
    %v1948 = vpack.c.b16 %v1945, %v1944
    %v1949 = vpack.c.b16 %v1947, %v1946
    %1952 = vmatpush.bf16.msra.mxu0 0
    %1953 = vmatpush.bf16.msra.mxu0 0
    %1954 = vmatpush.bf16.msra.mxu0 0
    %1955 = vmatpush.bf16.msra.mxu0 0
    %1956 = vmatpush.bf16.msra.mxu0 0
    %1957 = vmatpush.bf16.msra.mxu0 0
    %1958 = vmatpush.bf16.msra.mxu0 %v1949
    %1959 = vmatpush.bf16.msra.mxu0 %v1948
    %1960 = vmatmul.bf16.gmra.mxu0 %v1675
    %v1961 = vpop.f32.mrf.mxu0
    %v1962 = vadd.f32 %v1649, %v1961
    %v1963 = vpop.f32.mrf.mxu0
    %1964 = vdwg.mxu0
    %v1965 = vpack.c.bf16 %v1687, %v1687
    %v1966 = vpack.c.bf16 %v1712, %v1712
    %v1967 = vpack.c.bf16 %v1737, %v1737
    %v1968 = vpack.c.bf16 %v1762, %v1762
    %v1969 = vpack.c.bf16 %v1787, %v1787
    %v1970 = vpack.c.bf16 %v1812, %v1812
    %v1971 = vpack.c.bf16 %v1837, %v1837
    %v1972 = vpack.c.bf16 %v1862, %v1862
    %v1974 = vsel %vm605, %v1965, 0
    %v1977 = vsel %vm605, %v1969, 0
    %1979 = vmatpush.bf16.xpose.msra.mxu0 0
    %1980 = vmatpush.bf16.xpose.msra.mxu0 0
    %1981 = vmatpush.bf16.xpose.msra.mxu0 0
    %1982 = vmatpush.bf16.xpose.msra.mxu0 0
    %1983 = vmatpush.bf16.xpose.msra.mxu0 0
    %1984 = vmatpush.bf16.xpose.msra.mxu0 0
    %1985 = vmatpush.bf16.xpose.msra.mxu0 0
    %1986 = vmatpush.bf16.xpose.msra.mxu0 %v1977
    %1987 = vmatmul.bf16.gmra.mxu0 %v1974
    %v1988 = vpop.f32.mrf.mxu0
    %v1989 = vadd.f32 %v191, %v1988
    %v1990 = vpop.f32.mrf.mxu0
    %1991 = vdwg.mxu0
    %v1993 = vsel %vm605, %v1966, 0
    %v1996 = vsel %vm605, %v1970, 0
    %1998 = vmatpush.bf16.xpose.msra.mxu0 0
    %1999 = vmatpush.bf16.xpose.msra.mxu0 0
    %2000 = vmatpush.bf16.xpose.msra.mxu0 0
    %2001 = vmatpush.bf16.xpose.msra.mxu0 0
    %2002 = vmatpush.bf16.xpose.msra.mxu0 0
    %2003 = vmatpush.bf16.xpose.msra.mxu0 0
    %2004 = vmatpush.bf16.xpose.msra.mxu0 0
    %2005 = vmatpush.bf16.xpose.msra.mxu0 %v1996
    %2006 = vmatmul.bf16.gmra.mxu0 %v1993
    %v2007 = vpop.f32.mrf.mxu0
    %v2008 = vadd.f32 %v191, %v2007
    %v2009 = vpop.f32.mrf.mxu0
    %2010 = vdwg.mxu0
    %v2012 = vsel %vm605, %v1967, 0
    %v2015 = vsel %vm605, %v1971, 0
    %2017 = vmatpush.bf16.xpose.msra.mxu0 0
    %2018 = vmatpush.bf16.xpose.msra.mxu0 0
    %2019 = vmatpush.bf16.xpose.msra.mxu0 0
    %2020 = vmatpush.bf16.xpose.msra.mxu0 0
    %2021 = vmatpush.bf16.xpose.msra.mxu0 0
    %2022 = vmatpush.bf16.xpose.msra.mxu0 0
    %2023 = vmatpush.bf16.xpose.msra.mxu0 0
    %2024 = vmatpush.bf16.xpose.msra.mxu0 %v2015
    %2025 = vmatmul.bf16.gmra.mxu0 %v2012
    %v2026 = vpop.f32.mrf.mxu0
    %v2027 = vadd.f32 %v191, %v2026
    %v2028 = vpop.f32.mrf.mxu0
    %2029 = vdwg.mxu0
    %v2031 = vsel %vm605, %v1968, 0
    %v2034 = vsel %vm605, %v1972, 0
    %2036 = vmatpush.bf16.xpose.msra.mxu0 0
    %2037 = vmatpush.bf16.xpose.msra.mxu0 0
    %2038 = vmatpush.bf16.xpose.msra.mxu0 0
    %2039 = vmatpush.bf16.xpose.msra.mxu0 0
    %2040 = vmatpush.bf16.xpose.msra.mxu0 0
    %2041 = vmatpush.bf16.xpose.msra.mxu0 0
    %2042 = vmatpush.bf16.xpose.msra.mxu0 0
    %2043 = vmatpush.bf16.xpose.msra.mxu0 %v2034
    %2044 = vmatmul.bf16.gmra.mxu0 %v2031
    %v2045 = vpop.f32.mrf.mxu0
    %v2046 = vadd.f32 %v191, %v2045
    %v2047 = vpop.f32.mrf.mxu0
    %2048 = vdwg.mxu0
    %v2049 = vsel %vm605, %v1989, -inf
    %2050 = vmax.xlane.f32.xlu0 %v2049
    %v2051 = vpop.xlane.xlu0 %2050
    %v2052 = vsel %vm605, %v2008, -inf
    %2053 = vmax.xlane.f32.xlu0 %v2052
    %v2054 = vpop.xlane.xlu0 %2053
    %v2055 = vsel %vm605, %v2027, -inf
    %2056 = vmax.xlane.f32.xlu0 %v2055
    %v2057 = vpop.xlane.xlu0 %2056
    %v2058 = vsel %vm605, %v2046, -inf
    %2059 = vmax.xlane.f32.xlu0 %v2058
    %v2060 = vpop.xlane.xlu0 %2059
    %v2061 = vsub.f32 %v1989, %v2051
    %v2062 = vsub.f32 %v2008, %v2054
    %v2063 = vsub.f32 %v2027, %v2057
    %v2064 = vsub.f32 %v2046, %v2060
    %v2065 = vmul.f32 %v2061, 1.442695
    %v2066 = vpow.pop %v2065
    %v2067 = vmul.f32 %v2062, 1.442695
    %v2068 = vpow.pop %v2067
    %v2069 = vmul.f32 %v2063, 1.442695
    %v2070 = vpow.pop %v2069
    %v2071 = vmul.f32 %v2064, 1.442695
    %v2072 = vpow.pop %v2071
    %v2073 = vsel %vm605, %v2066, 0.0
    %2074 = vadd.xlane.f32.xlu0 %v2073
    %v2075 = vpop.xlane.xlu0 %2074
    %v2076 = vsel %vm605, %v2068, 0.0
    %2077 = vadd.xlane.f32.xlu0 %v2076
    %v2078 = vpop.xlane.xlu0 %2077
    %v2079 = vsel %vm605, %v2070, 0.0
    %2080 = vadd.xlane.f32.xlu0 %v2079
    %v2081 = vpop.xlane.xlu0 %2080
    %v2082 = vsel %vm605, %v2072, 0.0
    %2083 = vadd.xlane.f32.xlu0 %v2082
    %v2084 = vpop.xlane.xlu0 %2083
    %v2085 = vrcp.pop %v2075
    %v2086 = vrcp.pop %v2078
    %v2087 = vrcp.pop %v2081
    %v2088 = vrcp.pop %v2084
    %v2089 = vmul.f32 %v2066, %v2085
    %v2090 = vmul.f32 %v2068, %v2086
    %v2091 = vmul.f32 %v2070, %v2087
    %v2092 = vmul.f32 %v2072, %v2088
    %v2093 = vpack.c.bf16 %v2089, %v2089
    %v2094 = vpack.c.bf16 %v2090, %v2090
    %v2095 = vpack.c.bf16 %v2091, %v2091
    %v2096 = vpack.c.bf16 %v2092, %v2092
    %v2097 = vpack.c.bf16 %v1887, %v1887
    %v2098 = vpack.c.bf16 %v1912, %v1912
    %v2099 = vpack.c.bf16 %v1937, %v1937
    %v2100 = vpack.c.bf16 %v1962, %v1962
    %v2102 = vsel %vm605, %v2093, 0
    %v2105 = vsel %vm737, %v2097, 0
    %2107 = vmatpush.bf16.msra.mxu0 0
    %2108 = vmatpush.bf16.msra.mxu0 0
    %2109 = vmatpush.bf16.msra.mxu0 0
    %2110 = vmatpush.bf16.msra.mxu0 0
    %2111 = vmatpush.bf16.msra.mxu0 0
    %2112 = vmatpush.bf16.msra.mxu0 0
    %2113 = vmatpush.bf16.msra.mxu0 0
    %2114 = vmatpush.bf16.msra.mxu0 %v2105
    %2115 = vmatmul.bf16.gmra.mxu0 %v2102
    %v2116 = vpop.f32.mrf.mxu0
    %v2117 = vadd.f32 0.0, %v2116
    %v2118 = vpop.f32.mrf.mxu0
    %2119 = vdwg.mxu0
    %v2121 = vsel %vm605, %v2094, 0
    %v2124 = vsel %vm737, %v2098, 0
    %2126 = vmatpush.bf16.msra.mxu0 0
    %2127 = vmatpush.bf16.msra.mxu0 0
    %2128 = vmatpush.bf16.msra.mxu0 0
    %2129 = vmatpush.bf16.msra.mxu0 0
    %2130 = vmatpush.bf16.msra.mxu0 0
    %2131 = vmatpush.bf16.msra.mxu0 0
    %2132 = vmatpush.bf16.msra.mxu0 0
    %2133 = vmatpush.bf16.msra.mxu0 %v2124
    %2134 = vmatmul.bf16.gmra.mxu0 %v2121
    %v2135 = vpop.f32.mrf.mxu0
    %v2136 = vadd.f32 0.0, %v2135
    %v2137 = vpop.f32.mrf.mxu0
    %2138 = vdwg.mxu0
    %v2140 = vsel %vm605, %v2095, 0
    %v2143 = vsel %vm737, %v2099, 0
    %2145 = vmatpush.bf16.msra.mxu0 0
    %2146 = vmatpush.bf16.msra.mxu0 0
    %2147 = vmatpush.bf16.msra.mxu0 0
    %2148 = vmatpush.bf16.msra.mxu0 0
    %2149 = vmatpush.bf16.msra.mxu0 0
    %2150 = vmatpush.bf16.msra.mxu0 0
    %2151 = vmatpush.bf16.msra.mxu0 0
    %2152 = vmatpush.bf16.msra.mxu0 %v2143
    %2153 = vmatmul.bf16.gmra.mxu0 %v2140
    %v2154 = vpop.f32.mrf.mxu0
    %v2155 = vadd.f32 0.0, %v2154
    %v2156 = vpop.f32.mrf.mxu0
    %2157 = vdwg.mxu0
    %v2159 = vsel %vm605, %v2096, 0
    %v2162 = vsel %vm737, %v2100, 0
    %2164 = vmatpush.bf16.msra.mxu0 0
    %2165 = vmatpush.bf16.msra.mxu0 0
    %2166 = vmatpush.bf16.msra.mxu0 0
    %2167 = vmatpush.bf16.msra.mxu0 0
    %2168 = vmatpush.bf16.msra.mxu0 0
    %2169 = vmatpush.bf16.msra.mxu0 0
    %2170 = vmatpush.bf16.msra.mxu0 0
    %2171 = vmatpush.bf16.msra.mxu0 %v2162
    %2172 = vmatmul.bf16.gmra.mxu0 %v2159
    %v2173 = vpop.f32.mrf.mxu0
    %v2174 = vadd.f32 0.0, %v2173
    %v2175 = vpop.f32.mrf.mxu0
    %2176 = vdwg.mxu0
    %2178 = vrot.lane.b32.xlu0 %v2136, 8
    %v2179 = vpop.permute.xlu0 %2178
    %2182 = vrot.lane.b32.xlu0 %v2155, 16
    %v2183 = vpop.permute.xlu0 %2182
    %2186 = vrot.lane.b32.xlu0 %v2174, 24
    %v2187 = vpop.permute.xlu0 %2186
    %v2189 = vsel %vm605, %v2117, %v2179
    %v2190 = vsel %vm824, %v2189, %v2183
    %v2191 = vsel %vm826, %v2190, %v2187
    %v2192 = vpack.c.bf16 %v2191, %v2191
    %v2197 = vunpack.c.l.b16 %v1621
    %v2198 = vunpack.c.l.b16 %v1622
    %v2199 = vunpack.c.l.b16 %v1623
    %v2200 = vunpack.c.l.b16 %v1624
    %v2201 = vpack.c.b16 %v2198, %v2197
    %v2202 = vpack.c.b16 %v2200, %v2199
    %v2206 = vsel %vm126, %v2192, 0
    %2208 = vmatpush.bf16.msra.mxu0 0
    %2209 = vmatpush.bf16.msra.mxu0 0
    %2210 = vmatpush.bf16.msra.mxu0 0
    %2211 = vmatpush.bf16.msra.mxu0 0
    %2212 = vmatpush.bf16.msra.mxu0 0
    %2213 = vmatpush.bf16.msra.mxu0 0
    %2214 = vmatpush.bf16.msra.mxu0 %v2202
    %2215 = vmatpush.bf16.msra.mxu0 %v2201
    %2216 = vmatmul.bf16.gmra.mxu0 %v2206
    %v2217 = vpop.f32.mrf.mxu0
    %v2218 = vadd.f32 0.0, %v2217
    %v2219 = vpop.f32.mrf.mxu0
    %2220 = vdwg.mxu0
    %v2221 = vpack.c.bf16 %v1557, %v1557
    %v2223 = vsel %vm126, %v2221, 0
    %2225 = vmatpush.bf16.msra.mxu0 0
    %2226 = vmatpush.bf16.msra.mxu0 0
    %2227 = vmatpush.bf16.msra.mxu0 0
    %2228 = vmatpush.bf16.msra.mxu0 0
    %2229 = vmatpush.bf16.msra.mxu0 0
    %2230 = vmatpush.bf16.msra.mxu0 0
    %2231 = vmatpush.bf16.msra.mxu0 %v1671
    %2232 = vmatpush.bf16.msra.mxu0 %v1670
    %2233 = vmatmul.bf16.gmra.mxu0 %v2223
    %v2234 = vpop.f32.mrf.mxu0
    %v2235 = vadd.f32 %v1638, %v2234
    %v2236 = vpop.f32.mrf.mxu0
    %2237 = vdwg.mxu0
    %2238 = vmatpush.bf16.msra.mxu0 0
    %2239 = vmatpush.bf16.msra.mxu0 0
    %2240 = vmatpush.bf16.msra.mxu0 0
    %2241 = vmatpush.bf16.msra.mxu0 0
    %2242 = vmatpush.bf16.msra.mxu0 0
    %2243 = vmatpush.bf16.msra.mxu0 0
    %2244 = vmatpush.bf16.msra.mxu0 %v1699
    %2245 = vmatpush.bf16.msra.mxu0 %v1698
    %2246 = vmatmul.bf16.gmra.mxu0 %v2223
    %v2247 = vpop.f32.mrf.mxu0
    %v2248 = vadd.f32 %v1639, %v2247
    %v2249 = vpop.f32.mrf.mxu0
    %2250 = vdwg.mxu0
    %2251 = vmatpush.bf16.msra.mxu0 0
    %2252 = vmatpush.bf16.msra.mxu0 0
    %2253 = vmatpush.bf16.msra.mxu0 0
    %2254 = vmatpush.bf16.msra.mxu0 0
    %2255 = vmatpush.bf16.msra.mxu0 0
    %2256 = vmatpush.bf16.msra.mxu0 0
    %2257 = vmatpush.bf16.msra.mxu0 %v1724
    %2258 = vmatpush.bf16.msra.mxu0 %v1723
    %2259 = vmatmul.bf16.gmra.mxu0 %v2223
    %v2260 = vpop.f32.mrf.mxu0
    %v2261 = vadd.f32 %v1640, %v2260
    %v2262 = vpop.f32.mrf.mxu0
    %2263 = vdwg.mxu0
    %2264 = vmatpush.bf16.msra.mxu0 0
    %2265 = vmatpush.bf16.msra.mxu0 0
    %2266 = vmatpush.bf16.msra.mxu0 0
    %2267 = vmatpush.bf16.msra.mxu0 0
    %2268 = vmatpush.bf16.msra.mxu0 0
    %2269 = vmatpush.bf16.msra.mxu0 0
    %2270 = vmatpush.bf16.msra.mxu0 %v1749
    %2271 = vmatpush.bf16.msra.mxu0 %v1748
    %2272 = vmatmul.bf16.gmra.mxu0 %v2223
    %v2273 = vpop.f32.mrf.mxu0
    %v2274 = vadd.f32 %v1641, %v2273
    %v2275 = vpop.f32.mrf.mxu0
    %2276 = vdwg.mxu0
    %2277 = vmatpush.bf16.msra.mxu0 0
    %2278 = vmatpush.bf16.msra.mxu0 0
    %2279 = vmatpush.bf16.msra.mxu0 0
    %2280 = vmatpush.bf16.msra.mxu0 0
    %2281 = vmatpush.bf16.msra.mxu0 0
    %2282 = vmatpush.bf16.msra.mxu0 0
    %2283 = vmatpush.bf16.msra.mxu0 %v1774
    %2284 = vmatpush.bf16.msra.mxu0 %v1773
    %2285 = vmatmul.bf16.gmra.mxu0 %v2223
    %v2286 = vpop.f32.mrf.mxu0
    %v2287 = vadd.f32 %v1642, %v2286
    %v2288 = vpop.f32.mrf.mxu0
    %2289 = vdwg.mxu0
    %2290 = vmatpush.bf16.msra.mxu0 0
    %2291 = vmatpush.bf16.msra.mxu0 0
    %2292 = vmatpush.bf16.msra.mxu0 0
    %2293 = vmatpush.bf16.msra.mxu0 0
    %2294 = vmatpush.bf16.msra.mxu0 0
    %2295 = vmatpush.bf16.msra.mxu0 0
    %2296 = vmatpush.bf16.msra.mxu0 %v1799
    %2297 = vmatpush.bf16.msra.mxu0 %v1798
    %2298 = vmatmul.bf16.gmra.mxu0 %v2223
    %v2299 = vpop.f32.mrf.mxu0
    %v2300 = vadd.f32 %v1643, %v2299
    %v2301 = vpop.f32.mrf.mxu0
    %2302 = vdwg.mxu0
    %2303 = vmatpush.bf16.msra.mxu0 0
    %2304 = vmatpush.bf16.msra.mxu0 0
    %2305 = vmatpush.bf16.msra.mxu0 0
    %2306 = vmatpush.bf16.msra.mxu0 0
    %2307 = vmatpush.bf16.msra.mxu0 0
    %2308 = vmatpush.bf16.msra.mxu0 0
    %2309 = vmatpush.bf16.msra.mxu0 %v1824
    %2310 = vmatpush.bf16.msra.mxu0 %v1823
    %2311 = vmatmul.bf16.gmra.mxu0 %v2223
    %v2312 = vpop.f32.mrf.mxu0
    %v2313 = vadd.f32 %v1644, %v2312
    %v2314 = vpop.f32.mrf.mxu0
    %2315 = vdwg.mxu0
    %2316 = vmatpush.bf16.msra.mxu0 0
    %2317 = vmatpush.bf16.msra.mxu0 0
    %2318 = vmatpush.bf16.msra.mxu0 0
    %2319 = vmatpush.bf16.msra.mxu0 0
    %2320 = vmatpush.bf16.msra.mxu0 0
    %2321 = vmatpush.bf16.msra.mxu0 0
    %2322 = vmatpush.bf16.msra.mxu0 %v1849
    %2323 = vmatpush.bf16.msra.mxu0 %v1848
    %2324 = vmatmul.bf16.gmra.mxu0 %v2223
    %v2325 = vpop.f32.mrf.mxu0
    %v2326 = vadd.f32 %v1645, %v2325
    %v2327 = vpop.f32.mrf.mxu0
    %2328 = vdwg.mxu0
    %2329 = vmatpush.bf16.msra.mxu0 0
    %2330 = vmatpush.bf16.msra.mxu0 0
    %2331 = vmatpush.bf16.msra.mxu0 0
    %2332 = vmatpush.bf16.msra.mxu0 0
    %2333 = vmatpush.bf16.msra.mxu0 0
    %2334 = vmatpush.bf16.msra.mxu0 0
    %2335 = vmatpush.bf16.msra.mxu0 %v1874
    %2336 = vmatpush.bf16.msra.mxu0 %v1873
    %2337 = vmatmul.bf16.gmra.mxu0 %v2223
    %v2338 = vpop.f32.mrf.mxu0
    %v2339 = vadd.f32 %v1646, %v2338
    %v2340 = vpop.f32.mrf.mxu0
    %2341 = vdwg.mxu0
    %2342 = vmatpush.bf16.msra.mxu0 0
    %2343 = vmatpush.bf16.msra.mxu0 0
    %2344 = vmatpush.bf16.msra.mxu0 0
    %2345 = vmatpush.bf16.msra.mxu0 0
    %2346 = vmatpush.bf16.msra.mxu0 0
    %2347 = vmatpush.bf16.msra.mxu0 0
    %2348 = vmatpush.bf16.msra.mxu0 %v1899
    %2349 = vmatpush.bf16.msra.mxu0 %v1898
    %2350 = vmatmul.bf16.gmra.mxu0 %v2223
    %v2351 = vpop.f32.mrf.mxu0
    %v2352 = vadd.f32 %v1647, %v2351
    %v2353 = vpop.f32.mrf.mxu0
    %2354 = vdwg.mxu0
    %2355 = vmatpush.bf16.msra.mxu0 0
    %2356 = vmatpush.bf16.msra.mxu0 0
    %2357 = vmatpush.bf16.msra.mxu0 0
    %2358 = vmatpush.bf16.msra.mxu0 0
    %2359 = vmatpush.bf16.msra.mxu0 0
    %2360 = vmatpush.bf16.msra.mxu0 0
    %2361 = vmatpush.bf16.msra.mxu0 %v1924
    %2362 = vmatpush.bf16.msra.mxu0 %v1923
    %2363 = vmatmul.bf16.gmra.mxu0 %v2223
    %v2364 = vpop.f32.mrf.mxu0
    %v2365 = vadd.f32 %v1648, %v2364
    %v2366 = vpop.f32.mrf.mxu0
    %2367 = vdwg.mxu0
    %2368 = vmatpush.bf16.msra.mxu0 0
    %2369 = vmatpush.bf16.msra.mxu0 0
    %2370 = vmatpush.bf16.msra.mxu0 0
    %2371 = vmatpush.bf16.msra.mxu0 0
    %2372 = vmatpush.bf16.msra.mxu0 0
    %2373 = vmatpush.bf16.msra.mxu0 0
    %2374 = vmatpush.bf16.msra.mxu0 %v1949
    %2375 = vmatpush.bf16.msra.mxu0 %v1948
    %2376 = vmatmul.bf16.gmra.mxu0 %v2223
    %v2377 = vpop.f32.mrf.mxu0
    %v2378 = vadd.f32 %v1649, %v2377
    %v2379 = vpop.f32.mrf.mxu0
    %2380 = vdwg.mxu0
    %v2381 = vpack.c.bf16 %v2235, %v2235
    %v2382 = vpack.c.bf16 %v2248, %v2248
    %v2383 = vpack.c.bf16 %v2261, %v2261
    %v2384 = vpack.c.bf16 %v2274, %v2274
    %v2385 = vpack.c.bf16 %v2287, %v2287
    %v2386 = vpack.c.bf16 %v2300, %v2300
    %v2387 = vpack.c.bf16 %v2313, %v2313
    %v2388 = vpack.c.bf16 %v2326, %v2326
    %v2390 = vsel %vm605, %v2381, 0
    %v2393 = vsel %vm605, %v2385, 0
    %2395 = vmatpush.bf16.xpose.msra.mxu0 0
    %2396 = vmatpush.bf16.xpose.msra.mxu0 0
    %2397 = vmatpush.bf16.xpose.msra.mxu0 0
    %2398 = vmatpush.bf16.xpose.msra.mxu0 0
    %2399 = vmatpush.bf16.xpose.msra.mxu0 0
    %2400 = vmatpush.bf16.xpose.msra.mxu0 0
    %2401 = vmatpush.bf16.xpose.msra.mxu0 0
    %2402 = vmatpush.bf16.xpose.msra.mxu0 %v2393
    %2403 = vmatmul.bf16.gmra.mxu0 %v2390
    %v2404 = vpop.f32.mrf.mxu0
    %v2405 = vadd.f32 %v192, %v2404
    %v2406 = vpop.f32.mrf.mxu0
    %2407 = vdwg.mxu0
    %v2409 = vsel %vm605, %v2382, 0
    %v2412 = vsel %vm605, %v2386, 0
    %2414 = vmatpush.bf16.xpose.msra.mxu0 0
    %2415 = vmatpush.bf16.xpose.msra.mxu0 0
    %2416 = vmatpush.bf16.xpose.msra.mxu0 0
    %2417 = vmatpush.bf16.xpose.msra.mxu0 0
    %2418 = vmatpush.bf16.xpose.msra.mxu0 0
    %2419 = vmatpush.bf16.xpose.msra.mxu0 0
    %2420 = vmatpush.bf16.xpose.msra.mxu0 0
    %2421 = vmatpush.bf16.xpose.msra.mxu0 %v2412
    %2422 = vmatmul.bf16.gmra.mxu0 %v2409
    %v2423 = vpop.f32.mrf.mxu0
    %v2424 = vadd.f32 %v192, %v2423
    %v2425 = vpop.f32.mrf.mxu0
    %2426 = vdwg.mxu0
    %v2428 = vsel %vm605, %v2383, 0
    %v2431 = vsel %vm605, %v2387, 0
    %2433 = vmatpush.bf16.xpose.msra.mxu0 0
    %2434 = vmatpush.bf16.xpose.msra.mxu0 0
    %2435 = vmatpush.bf16.xpose.msra.mxu0 0
    %2436 = vmatpush.bf16.xpose.msra.mxu0 0
    %2437 = vmatpush.bf16.xpose.msra.mxu0 0
    %2438 = vmatpush.bf16.xpose.msra.mxu0 0
    %2439 = vmatpush.bf16.xpose.msra.mxu0 0
    %2440 = vmatpush.bf16.xpose.msra.mxu0 %v2431
    %2441 = vmatmul.bf16.gmra.mxu0 %v2428
    %v2442 = vpop.f32.mrf.mxu0
    %v2443 = vadd.f32 %v192, %v2442
    %v2444 = vpop.f32.mrf.mxu0
    %2445 = vdwg.mxu0
    %v2447 = vsel %vm605, %v2384, 0
    %v2450 = vsel %vm605, %v2388, 0
    %2452 = vmatpush.bf16.xpose.msra.mxu0 0
    %2453 = vmatpush.bf16.xpose.msra.mxu0 0
    %2454 = vmatpush.bf16.xpose.msra.mxu0 0
    %2455 = vmatpush.bf16.xpose.msra.mxu0 0
    %2456 = vmatpush.bf16.xpose.msra.mxu0 0
    %2457 = vmatpush.bf16.xpose.msra.mxu0 0
    %2458 = vmatpush.bf16.xpose.msra.mxu0 0
    %2459 = vmatpush.bf16.xpose.msra.mxu0 %v2450
    %2460 = vmatmul.bf16.gmra.mxu0 %v2447
    %v2461 = vpop.f32.mrf.mxu0
    %v2462 = vadd.f32 %v192, %v2461
    %v2463 = vpop.f32.mrf.mxu0
    %2464 = vdwg.mxu0
    %v2465 = vsel %vm605, %v2405, -inf
    %2466 = vmax.xlane.f32.xlu0 %v2465
    %v2467 = vpop.xlane.xlu0 %2466
    %v2468 = vsel %vm605, %v2424, -inf
    %2469 = vmax.xlane.f32.xlu0 %v2468
    %v2470 = vpop.xlane.xlu0 %2469
    %v2471 = vsel %vm605, %v2443, -inf
    %2472 = vmax.xlane.f32.xlu0 %v2471
    %v2473 = vpop.xlane.xlu0 %2472
    %v2474 = vsel %vm605, %v2462, -inf
    %2475 = vmax.xlane.f32.xlu0 %v2474
    %v2476 = vpop.xlane.xlu0 %2475
    %v2477 = vsub.f32 %v2405, %v2467
    %v2478 = vsub.f32 %v2424, %v2470
    %v2479 = vsub.f32 %v2443, %v2473
    %v2480 = vsub.f32 %v2462, %v2476
    %v2481 = vmul.f32 %v2477, 1.442695
    %v2482 = vpow.pop %v2481
    %v2483 = vmul.f32 %v2478, 1.442695
    %v2484 = vpow.pop %v2483
    %v2485 = vmul.f32 %v2479, 1.442695
    %v2486 = vpow.pop %v2485
    %v2487 = vmul.f32 %v2480, 1.442695
    %v2488 = vpow.pop %v2487
    %v2489 = vsel %vm605, %v2482, 0.0
    %2490 = vadd.xlane.f32.xlu0 %v2489
    %v2491 = vpop.xlane.xlu0 %2490
    %v2492 = vsel %vm605, %v2484, 0.0
    %2493 = vadd.xlane.f32.xlu0 %v2492
    %v2494 = vpop.xlane.xlu0 %2493
    %v2495 = vsel %vm605, %v2486, 0.0
    %2496 = vadd.xlane.f32.xlu0 %v2495
    %v2497 = vpop.xlane.xlu0 %2496
    %v2498 = vsel %vm605, %v2488, 0.0
    %2499 = vadd.xlane.f32.xlu0 %v2498
    %v2500 = vpop.xlane.xlu0 %2499
    %v2501 = vrcp.pop %v2491
    %v2502 = vrcp.pop %v2494
    %v2503 = vrcp.pop %v2497
    %v2504 = vrcp.pop %v2500
    %v2505 = vmul.f32 %v2482, %v2501
    %v2506 = vmul.f32 %v2484, %v2502
    %v2507 = vmul.f32 %v2486, %v2503
    %v2508 = vmul.f32 %v2488, %v2504
    %v2509 = vpack.c.bf16 %v2505, %v2505
    %v2510 = vpack.c.bf16 %v2506, %v2506
    %v2511 = vpack.c.bf16 %v2507, %v2507
    %v2512 = vpack.c.bf16 %v2508, %v2508
    %v2513 = vpack.c.bf16 %v2339, %v2339
    %v2514 = vpack.c.bf16 %v2352, %v2352
    %v2515 = vpack.c.bf16 %v2365, %v2365
    %v2516 = vpack.c.bf16 %v2378, %v2378
    %v2518 = vsel %vm605, %v2509, 0
    %v2521 = vsel %vm737, %v2513, 0
    %2523 = vmatpush.bf16.msra.mxu0 0
    %2524 = vmatpush.bf16.msra.mxu0 0
    %2525 = vmatpush.bf16.msra.mxu0 0
    %2526 = vmatpush.bf16.msra.mxu0 0
    %2527 = vmatpush.bf16.msra.mxu0 0
    %2528 = vmatpush.bf16.msra.mxu0 0
    %2529 = vmatpush.bf16.msra.mxu0 0
    %2530 = vmatpush.bf16.msra.mxu0 %v2521
    %2531 = vmatmul.bf16.gmra.mxu0 %v2518
    %v2532 = vpop.f32.mrf.mxu0
    %v2533 = vadd.f32 0.0, %v2532
    %v2534 = vpop.f32.mrf.mxu0
    %2535 = vdwg.mxu0
    %v2537 = vsel %vm605, %v2510, 0
    %v2540 = vsel %vm737, %v2514, 0
    %2542 = vmatpush.bf16.msra.mxu0 0
    %2543 = vmatpush.bf16.msra.mxu0 0
    %2544 = vmatpush.bf16.msra.mxu0 0
    %2545 = vmatpush.bf16.msra.mxu0 0
    %2546 = vmatpush.bf16.msra.mxu0 0
    %2547 = vmatpush.bf16.msra.mxu0 0
    %2548 = vmatpush.bf16.msra.mxu0 0
    %2549 = vmatpush.bf16.msra.mxu0 %v2540
    %2550 = vmatmul.bf16.gmra.mxu0 %v2537
    %v2551 = vpop.f32.mrf.mxu0
    %v2552 = vadd.f32 0.0, %v2551
    %v2553 = vpop.f32.mrf.mxu0
    %2554 = vdwg.mxu0
    %v2556 = vsel %vm605, %v2511, 0
    %v2559 = vsel %vm737, %v2515, 0
    %2561 = vmatpush.bf16.msra.mxu0 0
    %2562 = vmatpush.bf16.msra.mxu0 0
    %2563 = vmatpush.bf16.msra.mxu0 0
    %2564 = vmatpush.bf16.msra.mxu0 0
    %2565 = vmatpush.bf16.msra.mxu0 0
    %2566 = vmatpush.bf16.msra.mxu0 0
    %2567 = vmatpush.bf16.msra.mxu0 0
    %2568 = vmatpush.bf16.msra.mxu0 %v2559
    %2569 = vmatmul.bf16.gmra.mxu0 %v2556
    %v2570 = vpop.f32.mrf.mxu0
    %v2571 = vadd.f32 0.0, %v2570
    %v2572 = vpop.f32.mrf.mxu0
    %2573 = vdwg.mxu0
    %v2575 = vsel %vm605, %v2512, 0
    %v2578 = vsel %vm737, %v2516, 0
    %2580 = vmatpush.bf16.msra.mxu0 0
    %2581 = vmatpush.bf16.msra.mxu0 0
    %2582 = vmatpush.bf16.msra.mxu0 0
    %2583 = vmatpush.bf16.msra.mxu0 0
    %2584 = vmatpush.bf16.msra.mxu0 0
    %2585 = vmatpush.bf16.msra.mxu0 0
    %2586 = vmatpush.bf16.msra.mxu0 0
    %2587 = vmatpush.bf16.msra.mxu0 %v2578
    %2588 = vmatmul.bf16.gmra.mxu0 %v2575
    %v2589 = vpop.f32.mrf.mxu0
    %v2590 = vadd.f32 0.0, %v2589
    %v2591 = vpop.f32.mrf.mxu0
    %2592 = vdwg.mxu0
    %2594 = vrot.lane.b32.xlu0 %v2552, 8
    %v2595 = vpop.permute.xlu0 %2594
    %2598 = vrot.lane.b32.xlu0 %v2571, 16
    %v2599 = vpop.permute.xlu0 %2598
    %2602 = vrot.lane.b32.xlu0 %v2590, 24
    %v2603 = vpop.permute.xlu0 %2602
    %v2605 = vsel %vm605, %v2533, %v2595
    %v2606 = vsel %vm824, %v2605, %v2599
    %v2607 = vsel %vm826, %v2606, %v2603
    %v2608 = vpack.c.bf16 %v2607, %v2607
    %v2610 = vsel %vm126, %v2608, 0
    %2612 = vmatpush.bf16.msra.mxu0 0
    %2613 = vmatpush.bf16.msra.mxu0 0
    %2614 = vmatpush.bf16.msra.mxu0 0
    %2615 = vmatpush.bf16.msra.mxu0 0
    %2616 = vmatpush.bf16.msra.mxu0 0
    %2617 = vmatpush.bf16.msra.mxu0 0
    %2618 = vmatpush.bf16.msra.mxu0 %v2202
    %2619 = vmatpush.bf16.msra.mxu0 %v2201
    %2620 = vmatmul.bf16.gmra.mxu0 %v2610
    %v2621 = vpop.f32.mrf.mxu0
    %v2622 = vadd.f32 0.0, %v2621
    %v2623 = vpop.f32.mrf.mxu0
    %2624 = vdwg.mxu0
    %s2625 = scalar_lea.vmem %s9, 1
    %v2626 = vld [vmem:[%s2625] sm:$0x1]
    %v2628 = vperm.slane %v2626, 0
    %v2630 = vadd.f32 %v2218, %v2628
    %v2631 = vadd.f32 %v2622, %v2628
    %v2632 = vadd.f32 %v1556, %v2630
    %v2633 = vadd.f32 %v1557, %v2631
    %s2634 = scalar_lea.vmem %s10, 1
    %v2635 = vld [vmem:[%s2634] sm:$0x1]
    %s2636 = scalar_lea.vmem %s11, 1
    %v2637 = vld [vmem:[%s2636] sm:$0x1]
    %v2638 = vsel %vm126, %v2632, 0.0
    %2639 = vadd.xlane.f32.xlu0 %v2638
    %v2640 = vpop.xlane.xlu0 %2639
    %v2641 = vsel %vm126, %v2633, 0.0
    %2642 = vadd.xlane.f32.xlu0 %v2641
    %v2643 = vpop.xlane.xlu0 %2642
    %v2644 = vmul.f32 %v2640, %v139
    %v2645 = vmul.f32 %v2643, %v139
    %v2646 = vsub.f32 %v2632, %v2644
    %v2647 = vsub.f32 %v2633, %v2645
    %v2648 = vmul.f32 %v2646, %v2646
    %v2649 = vmul.f32 %v2647, %v2647
    %v2650 = vsel %vm126, %v2648, 0.0
    %2651 = vadd.xlane.f32.xlu0 %v2650
    %v2652 = vpop.xlane.xlu0 %2651
    %v2653 = vsel %vm126, %v2649, 0.0
    %2654 = vadd.xlane.f32.xlu0 %v2653
    %v2655 = vpop.xlane.xlu0 %2654
    %v2656 = vmul.f32 %v2652, %v139
    %v2657 = vmul.f32 %v2655, %v139
    %v2658 = vadd.f32 %v2656, 1e-12
    %v2659 = vadd.f32 %v2657, 1e-12
    %v2660 = vrsqrt.pop %v2658
    %v2661 = vmul.f32 %v2660, %v2658
    %v2662 = vmul.f32 %v2661, %v2660
    %v2663 = vmul.f32 0.5, %v2662
    %v2664 = vsub.f32 1.5, %v2663
    %v2665 = vmul.f32 %v2660, %v2664
    %vm2666 = vweird.f32 %v2658
    %vm2667 = vweird.f32 %v2660
    %vm2668 = vmor %vm2666, %vm2667
    %v2669 = vsel %vm2668, %v2660, %v2665
    %v2670 = vrsqrt.pop %v2659
    %v2671 = vmul.f32 %v2670, %v2659
    %v2672 = vmul.f32 %v2671, %v2670
    %v2673 = vmul.f32 0.5, %v2672
    %v2674 = vsub.f32 1.5, %v2673
    %v2675 = vmul.f32 %v2670, %v2674
    %vm2676 = vweird.f32 %v2659
    %vm2677 = vweird.f32 %v2670
    %vm2678 = vmor %vm2676, %vm2677
    %v2679 = vsel %vm2678, %v2670, %v2675
    %v2680 = vmul.f32 %v2646, %v2669
    %v2681 = vmul.f32 %v2647, %v2679
    %v2683 = vperm.slane %v2635, 0
    %v2685 = vmul.f32 %v2680, %v2683
    %v2686 = vmul.f32 %v2681, %v2683
    %v2688 = vperm.slane %v2637, 0
    %v2690 = vadd.f32 %v2685, %v2688
    %v2691 = vadd.f32 %v2686, %v2688
    %v2692 = vpack.c.bf16 %v2691, %v2690
    %s2693 = scalar_lea.vmem %s12, 16
    %v2694 = vld [vmem:[%s2693] sm:$0xf]
    %v2695 = vld [vmem:[%s2693 + $0x4] sm:$0xf]
    %v2696 = vld [vmem:[%s2693 + $0x8] sm:$0xf]
    %v2697 = vld [vmem:[%s2693 + $0xc] sm:$0xf]
    %s2698 = scalar_lea.vmem %s13, 1
    %v2699 = vld [vmem:[%s2698] sm:$0x1]
    %v2701 = vperm.slane %v2699, 0
    %v2707 = vunpack.c.l.b16 %v2694
    %v2708 = vunpack.c.l.b16 %v2695
    %v2709 = vunpack.c.l.b16 %v2696
    %v2710 = vunpack.c.l.b16 %v2697
    %v2711 = vpack.c.b16 %v2708, %v2707
    %v2712 = vpack.c.b16 %v2710, %v2709
    %v2716 = vsel %vm126, %v2692, 0
    %2718 = vmatpush.bf16.msra.mxu0 0
    %2719 = vmatpush.bf16.msra.mxu0 0
    %2720 = vmatpush.bf16.msra.mxu0 0
    %2721 = vmatpush.bf16.msra.mxu0 0
    %2722 = vmatpush.bf16.msra.mxu0 0
    %2723 = vmatpush.bf16.msra.mxu0 0
    %2724 = vmatpush.bf16.msra.mxu0 %v2712
    %2725 = vmatpush.bf16.msra.mxu0 %v2711
    %2726 = vmatmul.bf16.gmra.mxu0 %v2716
    %v2727 = vpop.f32.mrf.mxu0
    %v2728 = vadd.f32 %v2701, %v2727
    %v2729 = vpop.f32.mrf.mxu0
    %v2730 = vadd.f32 %v2701, %v2729
    %2731 = vdwg.mxu0
    %v2732 = vmul.f32 %v2728, 0.5
    %v2733 = vmul.f32 %v2730, 0.5
    %v2734 = vmul.f32 %v2728, 0.70710677
    %v2735 = vmul.f32 %v2730, 0.70710677
    %v2736 = vand.u32 2147483647, %v2734
    %v2737 = vand.u32 2147483647, %v2735
    %v2738 = vmul.f32 %v2736, 0.3275911
    %v2739 = vmul.f32 %v2737, 0.3275911
    %v2740 = vadd.f32 %v2738, 1.0
    %v2741 = vadd.f32 %v2739, 1.0
    %v2742 = vrcp.pop %v2740
    %v2743 = vmul.f32 %v2740, %v2742
    %v2744 = vsub.f32 1.0, %v2743
    %v2745 = vmul.f32 %v2742, %v2744
    %v2746 = vadd.f32 %v2742, %v2745
    %vm2747 = vweird.f32 %v2740
    %vm2748 = vweird.f32 %v2742
    %vm2749 = vmor %vm2747, %vm2748
    %v2750 = vsel %vm2749, %v2742, %v2746
    %v2751 = vand.u32 2147483647, %v2740
    %vm2752 = vcmp.eq.f32.partialorder %v2751, 8.507059e+37
    %v2753 = vand.u32 %v2740, 2147483648
    %v2754 = vor.u32 1.1754944e-38, %v2753
    %v2755 = vsel %vm2752, %v2754, %v2750
    %v2756 = vmul.f32 1.0, %v2755
    %v2757 = vrcp.pop %v2741
    %v2758 = vmul.f32 %v2741, %v2757
    %v2759 = vsub.f32 1.0, %v2758
    %v2760 = vmul.f32 %v2757, %v2759
    %v2761 = vadd.f32 %v2757, %v2760
    %vm2762 = vweird.f32 %v2741
    %vm2763 = vweird.f32 %v2757
    %vm2764 = vmor %vm2762, %vm2763
    %v2765 = vsel %vm2764, %v2757, %v2761
    %v2766 = vand.u32 2147483647, %v2741
    %vm2767 = vcmp.eq.f32.partialorder %v2766, 8.507059e+37
    %v2768 = vand.u32 %v2741, 2147483648
    %v2769 = vor.u32 1.1754944e-38, %v2768
    %v2770 = vsel %vm2767, %v2769, %v2765
    %v2771 = vmul.f32 1.0, %v2770
    %v2772 = vmul.f32 %v2756, 1.0614054
    %v2773 = vmul.f32 %v2771, 1.0614054
    %v2774 = vadd.f32 %v2772, -1.4531521
    %v2775 = vadd.f32 %v2773, -1.4531521
    %v2776 = vmul.f32 %v2774, %v2756
    %v2777 = vmul.f32 %v2775, %v2771
    %v2778 = vadd.f32 %v2776, 1.4214138
    %v2779 = vadd.f32 %v2777, 1.4214138
    %v2780 = vmul.f32 %v2778, %v2756
    %v2781 = vmul.f32 %v2779, %v2771
    %v2782 = vadd.f32 %v2780, -0.28449672
    %v2783 = vadd.f32 %v2781, -0.28449672
    %v2784 = vmul.f32 %v2782, %v2756
    %v2785 = vmul.f32 %v2783, %v2771
    %v2786 = vadd.f32 %v2784, 0.2548296
    %v2787 = vadd.f32 %v2785, 0.2548296
    %v2788 = vmul.f32 %v2786, %v2756
    %v2789 = vmul.f32 %v2787, %v2771
    %v2790 = vsub.f32 0.0, %v2736
    %v2791 = vsub.f32 0.0, %v2737
    %v2792 = vmul.f32 %v2790, %v2736
    %v2793 = vmul.f32 %v2791, %v2737
    %v2794 = vmul.f32 %v2792, 1.442695
    %v2795 = vpow.pop %v2794
    %v2796 = vmul.f32 %v2793, 1.442695
    %v2797 = vpow.pop %v2796
    %v2798 = vmul.f32 %v2788, %v2795
    %v2799 = vmul.f32 %v2789, %v2797
    %v2800 = vsub.f32 1.0, %v2798
    %v2801 = vsub.f32 1.0, %v2799
    %vm2802 = vcmp.ge.f32.partialorder %v2734, 0.0
    %vm2803 = vcmp.ge.f32.partialorder %v2735, 0.0
    %v2804 = vsub.f32 0.0, %v2800
    %v2805 = vsub.f32 0.0, %v2801
    %v2806 = vsel %vm2802, %v2800, %v2804
    %v2807 = vsel %vm2803, %v2801, %v2805
    %v2808 = vadd.f32 %v2806, 1.0
    %v2809 = vadd.f32 %v2807, 1.0
    %v2810 = vmul.f32 %v2732, %v2808
    %v2811 = vmul.f32 %v2733, %v2809
    %v2812 = vpack.c.bf16 %v2811, %v2810
    %s2813 = scalar_lea.vmem %s14, 32
    %v2814 = vld [vmem:[%s2813] sm:$0xf]
    %v2815 = vld [vmem:[%s2813 + $0x4] sm:$0xf]
    %v2816 = vld [vmem:[%s2813 + $0x8] sm:$0xf]
    %v2817 = vld [vmem:[%s2813 + $0xc] sm:$0xf]
    %v2818 = vld [vmem:[%s2813 + $0x10] sm:$0xf]
    %v2819 = vld [vmem:[%s2813 + $0x14] sm:$0xf]
    %v2820 = vld [vmem:[%s2813 + $0x18] sm:$0xf]
    %v2821 = vld [vmem:[%s2813 + $0x1c] sm:$0xf]
    %v2830 = vunpack.c.l.b16 %v2814
    %v2831 = vunpack.c.l.b16 %v2815
    %v2832 = vunpack.c.l.b16 %v2816
    %v2833 = vunpack.c.l.b16 %v2817
    %v2834 = vunpack.c.l.b16 %v2818
    %v2835 = vunpack.c.l.b16 %v2819
    %v2836 = vunpack.c.l.b16 %v2820
    %v2837 = vunpack.c.l.b16 %v2821
    %v2838 = vpack.c.b16 %v2831, %v2830
    %v2839 = vpack.c.b16 %v2833, %v2832
    %v2840 = vpack.c.b16 %v2835, %v2834
    %v2841 = vpack.c.b16 %v2837, %v2836
    %v2847 = vsel %vm1476, %v2812, 0
    %2849 = vmatpush.bf16.msra.mxu0 0
    %2850 = vmatpush.bf16.msra.mxu0 0
    %2851 = vmatpush.bf16.msra.mxu0 0
    %2852 = vmatpush.bf16.msra.mxu0 0
    %2853 = vmatpush.bf16.msra.mxu0 %v2841
    %2854 = vmatpush.bf16.msra.mxu0 %v2840
    %2855 = vmatpush.bf16.msra.mxu0 %v2839
    %2856 = vmatpush.bf16.msra.mxu0 %v2838
    %2857 = vmatmul.bf16.gmra.mxu0 %v2847
    %v2858 = vpop.f32.mrf.mxu0
    %v2859 = vadd.f32 0.0, %v2858
    %v2860 = vpop.f32.mrf.mxu0
    %v2861 = vadd.f32 0.0, %v2860
    %2862 = vdwg.mxu0
    %v2863 = vadd.f32 %v2690, %v2859
    %v2864 = vadd.f32 %v2691, %v2861
    %s2865 = scalar_lea.vmem %s15, 1
    %v2866 = vld [vmem:[%s2865] sm:$0x1]
    %v2868 = vperm.slane %v2866, 0
    %v2870 = vadd.f32 %v2863, %v2868
    %v2871 = vadd.f32 %v2864, %v2868
    %s2872 = scalar_lea.vmem %s16, 1
    %v2873 = vld [vmem:[%s2872] sm:$0x1]
    %s2874 = scalar_lea.vmem %s17, 1
    %v2875 = vld [vmem:[%s2874] sm:$0x1]
    %v2876 = vsel %vm126, %v2870, 0.0
    %2877 = vadd.xlane.f32.xlu0 %v2876
    %v2878 = vpop.xlane.xlu0 %2877
    %v2879 = vsel %vm126, %v2871, 0.0
    %2880 = vadd.xlane.f32.xlu0 %v2879
    %v2881 = vpop.xlane.xlu0 %2880
    %v2882 = vmul.f32 %v2878, %v139
    %v2883 = vmul.f32 %v2881, %v139
    %v2884 = vsub.f32 %v2870, %v2882
    %v2885 = vsub.f32 %v2871, %v2883
    %v2886 = vmul.f32 %v2884, %v2884
    %v2887 = vmul.f32 %v2885, %v2885
    %v2888 = vsel %vm126, %v2886, 0.0
    %2889 = vadd.xlane.f32.xlu0 %v2888
    %v2890 = vpop.xlane.xlu0 %2889
    %v2891 = vsel %vm126, %v2887, 0.0
    %2892 = vadd.xlane.f32.xlu0 %v2891
    %v2893 = vpop.xlane.xlu0 %2892
    %v2894 = vmul.f32 %v2890, %v139
    %v2895 = vmul.f32 %v2893, %v139
    %v2896 = vadd.f32 %v2894, 1e-12
    %v2897 = vadd.f32 %v2895, 1e-12
    %v2898 = vrsqrt.pop %v2896
    %v2899 = vmul.f32 %v2898, %v2896
    %v2900 = vmul.f32 %v2899, %v2898
    %v2901 = vmul.f32 0.5, %v2900
    %v2902 = vsub.f32 1.5, %v2901
    %v2903 = vmul.f32 %v2898, %v2902
    %vm2904 = vweird.f32 %v2896
    %vm2905 = vweird.f32 %v2898
    %vm2906 = vmor %vm2904, %vm2905
    %v2907 = vsel %vm2906, %v2898, %v2903
    %v2908 = vrsqrt.pop %v2897
    %v2909 = vmul.f32 %v2908, %v2897
    %v2910 = vmul.f32 %v2909, %v2908
    %v2911 = vmul.f32 0.5, %v2910
    %v2912 = vsub.f32 1.5, %v2911
    %v2913 = vmul.f32 %v2908, %v2912
    %vm2914 = vweird.f32 %v2897
    %vm2915 = vweird.f32 %v2908
    %vm2916 = vmor %vm2914, %vm2915
    %v2917 = vsel %vm2916, %v2908, %v2913
    %v2918 = vmul.f32 %v2884, %v2907
    %v2919 = vmul.f32 %v2885, %v2917
    %v2921 = vperm.slane %v2873, 0
    %v2923 = vmul.f32 %v2918, %v2921
    %v2924 = vmul.f32 %v2919, %v2921
    %v2926 = vperm.slane %v2875, 0
    %v2928 = vadd.f32 %v2923, %v2926
    %v2929 = vadd.f32 %v2924, %v2926
    %v2931 = vrot.slane %v2929, 7
    %vm2933 = vcmask 1040384
    %v2934 = vsel %vm2933, %v2928, %v2931
    %v2935 = vpack.c.bf16 %v2934, %v2934
    %v2936 = vld [vmem:[%s18] sm:$0xf]
    %v2937 = vld [vmem:[%s18 + $0x4] sm:$0xf]
    %v2938 = vld [vmem:[%s18 + $0x8] sm:$0xf]
    %v2939 = vld [vmem:[%s18 + $0xc] sm:$0xf]
    %v2940 = vld [vmem:[%s19] sm:$0x1]
    %v2942 = vperm.slane %v2940, 0
    %v2948 = vunpack.c.l.b16 %v2936
    %v2949 = vunpack.c.l.b16 %v2937
    %v2950 = vunpack.c.l.b16 %v2938
    %v2951 = vunpack.c.l.b16 %v2939
    %v2952 = vpack.c.b16 %v2949, %v2948
    %v2953 = vpack.c.b16 %v2951, %v2950
    %v2957 = vsel %vm126, %v2935, 0
    %2959 = vmatpush.bf16.msra.mxu0 0
    %2960 = vmatpush.bf16.msra.mxu0 0
    %2961 = vmatpush.bf16.msra.mxu0 0
    %2962 = vmatpush.bf16.msra.mxu0 0
    %2963 = vmatpush.bf16.msra.mxu0 0
    %2964 = vmatpush.bf16.msra.mxu0 0
    %2965 = vmatpush.bf16.msra.mxu0 %v2953
    %2966 = vmatpush.bf16.msra.mxu0 %v2952
    %2967 = vmatmul.bf16.gmra.mxu0 %v2957
    %v2968 = vpop.f32.mrf.mxu0
    %v2969 = vadd.f32 %v2942, %v2968
    %v2970 = vpop.f32.mrf.mxu0
    %2971 = vdwg.mxu0
    %2972 = vst [vmem:[#allocation2] sm:$0x3] %v2969
    // Predicated region
    $region82: #{tpu_custom_call.1} parent=1 // pred_check
      _
    $region83: #{tpu_custom_call.1} parent=1 // pred_check_branch
      %2974 = sbr.rel (0) target = $region85
    $region84: #{tpu_custom_call.1} parent=1 // pred_region
      %2976 = vsyncadd [#allocation3], 0
      %s2978 = sshll.u32 [#allocation2], 4
      %s2979 = int_to_ptr.vmem [resolvable:$true] %s2978
      %s2980 = sshll.u32 %s20, 4
      %s2981 = int_to_ptr.hbm [resolvable:$true] %s2980
      %2983 = dma.vmem_to_hbm [thread:$0]  %s2979, 32, %s2981, [#allocation3]
    $region85: #{tpu_custom_call.1} parent=1 // pred_fallthru
      _
    // Predicated region
    $region86: #{tpu_custom_call.1} parent=1 // pred_check
      _
    $region87: #{tpu_custom_call.1} parent=1 // pred_check_branch
      %2985 = sbr.rel (0) target = $region89
    $region88: #{tpu_custom_call.1} parent=1 // pred_region
      %2987 = dma.done [#allocation3], 32
    $region89: #{tpu_custom_call.1} parent=1 // pred_fallthru
      _
    %2988 = vsyncpa [#allocation3], 1

</llo_original>
